<compile_context>
chip_gen: v7x
topology: tpu7x:2x2x1
jax: 0.10.0
libtpu: 0.0.40
codegen_flags: <defaults>
</compile_context>

<pallas_src>
import numpy as np
import jax
import jax.numpy as jnp
from jax.experimental import pallas as pl
from jax.experimental.pallas import tpu as pltpu


KH = KW = 4
STRIDE = 2
PAD = 1
LATENT_DIM = 10
CHANNELS = (1, 32, 32, 64)   # C_in -> conv1 -> conv2 -> conv3
IMG_HW = 32


# ------------------------------ Pallas kernel -------------------------------

def _fused_encoder_kernel(x_ref, eps_ref,
                          selht0, bw0, bt0,
                          selht1, bw1, bt1,
                          selht2, bw2, bt2,
                          wfc_ref, bfc_ref,
                          z_ref):
    """Whole encoder forward for ONE image (one grid step).

    Activation layout is [H, W*C] (row h, lane index w*C + c).  All
    intermediates live in registers/VMEM; matmul inputs are bf16, accumulation
    and all elementwise math are f32.
    """

    def conv_block(x_bf, selht_ref, bw_ref, b_ref):
        # x_bf: [H_in, W_in*C_in] bf16
        acc = None
        for i in range(selht_ref.shape[0]):               # KH taps, unrolled
            # Pick input rows 2*ho - 1 + i (zero rows when out of range).
            y = jnp.dot(selht_ref[i], x_bf,
                        preferred_element_type=jnp.float32)        # [Ho, Win*Cin]
            # Block-Toeplitz weights do the W-direction gather + channel mix.
            z = jnp.dot(y.astype(jnp.bfloat16), bw_ref[i],
                        preferred_element_type=jnp.float32)        # [Ho, Wo*Cout]
            acc = z if acc is None else acc + z
        return jnp.maximum(acc + b_ref[...], 0.0)                  # f32

    x = x_ref[0]                                                   # [32, 32] bf16
    h = conv_block(x, selht0, bw0, bt0)                            # [16, 16*32]
    h = conv_block(h.astype(jnp.bfloat16), selht1, bw1, bt1)       # [ 8,  8*32]
    h = conv_block(h.astype(jnp.bfloat16), selht2, bw2, bt2)       # [ 4,  4*64]

    # FC head: feature order is (h, w, c) == row-major flatten of `h`.
    h_bf = h.astype(jnp.bfloat16)
    rows, cols = h_bf.shape
    stats = bfc_ref[...]                                           # [1, 2*latent] f32
    for r in range(rows):
        stats = stats + jnp.dot(h_bf[r:r + 1, :],
                                wfc_ref[pl.ds(r * cols, cols), :],
                                preferred_element_type=jnp.float32)

    # Fused reparameterization (exp -> EUP slot, essentially free here).
    half = stats.shape[1] // 2
    mu = stats[:, :half]
    logvar = stats[:, half:]
    z_ref[0] = mu + jnp.exp(0.5 * logvar) * eps_ref[0]


# ----------------------- weight -> kernel-constant prep ---------------------

def _taps_selection(n_in, n_out):
    """sel[i, o, p] = 1 iff p == STRIDE*o - PAD + i (zero padding baked in)."""
    sel = np.zeros((KH, n_out, n_in), np.float32)
    for i in range(KH):
        for o in range(n_out):
            p = STRIDE * o - PAD + i
            if 0 <= p < n_in:
                sel[i, o, p] = 1.0
    return sel


def prepare_params(params, img_hw=IMG_HW):
    """One-time transformation of the encoder weights into kernel constants.

    Conv weight layout here is (kh, kw, c_in, c_out).
    NOTE: to load a real PyTorch checkpoint, permute Conv2d weights from OIHW
    to (kh, kw, c_in, c_out) and reorder FC-weight rows from PyTorch's
    (c, h, w) flatten order to the (h, w, c) order used here.
    """
    prepped = {}
    h_in = w_in = img_hw
    for li in range(3):
        cin, cout = CHANNELS[li], CHANNELS[li + 1]
        h_out = (h_in + 2 * PAD - KH) // STRIDE + 1
        w_out = (w_in + 2 * PAD - KW) // STRIDE + 1
        selht = _taps_selection(h_in, h_out)            # [KH, Ho, Hin]
        selw = _taps_selection(w_in, w_out)             # [KW, Wo, Win]
        w = params[f"w{li}"]                            # [KH, KW, Cin, Cout]
        bw = jnp.einsum("juw,ijcd->iwcud", jnp.asarray(selw), w)
        bw = bw.reshape(KH, w_in * cin, w_out * cout)   # block-Toeplitz weights
        prepped[f"selht{li}"] = jnp.asarray(selht, jnp.bfloat16)
        prepped[f"bw{li}"] = bw.astype(jnp.bfloat16)
        prepped[f"bt{li}"] = (jnp.tile(params[f"b{li}"], w_out)
                              .reshape(1, w_out * cout).astype(jnp.float32))
        h_in, w_in = h_out, w_out
    prepped["wfc"] = params["w_fc"].astype(jnp.bfloat16)
    prepped["bfc"] = params["b_fc"].reshape(1, -1).astype(jnp.float32)
    return prepped


# --------------------------------- wrapper ----------------------------------

def _replicated_spec(arr):
    zeros = (0,) * arr.ndim
    return pl.BlockSpec(arr.shape, lambda b: zeros)


def encode_sample(prepped, image_nchw, eps):
    """Mirror of Wrapper.forward: returns only the latent sample z."""
    B, C, H, W = image_nchw.shape
    x = jnp.transpose(image_nchw, (0, 2, 3, 1)).reshape(B, H, W * C)
    x = x.astype(jnp.bfloat16)
    eps3 = eps.reshape(B, 1, LATENT_DIM).astype(jnp.float32)

    weight_args = []
    weight_specs = []
    for li in range(3):
        for name in (f"selht{li}", f"bw{li}", f"bt{li}"):
            weight_args.append(prepped[name])
            weight_specs.append(_replicated_spec(prepped[name]))
    for name in ("wfc", "bfc"):
        weight_args.append(prepped[name])
        weight_specs.append(_replicated_spec(prepped[name]))

    z3 = pl.pallas_call(
        _fused_encoder_kernel,
        out_shape=jax.ShapeDtypeStruct((B, 1, LATENT_DIM), jnp.float32),
        grid=(B,),
        in_specs=[
            pl.BlockSpec((1, H, W * C), lambda b: (b, 0, 0)),
            pl.BlockSpec((1, 1, LATENT_DIM), lambda b: (b, 0, 0)),
            *weight_specs,
        ],
        out_specs=pl.BlockSpec((1, 1, LATENT_DIM), lambda b: (b, 0, 0)),
        compiler_params=pltpu.CompilerParams(
            dimension_semantics=("parallel",)),
    )(x, eps3, *weight_args)
    return z3.reshape(B, LATENT_DIM)


# ---------------------- synthetic params + pure-JAX reference ---------------

def init_params(key):
    params = {}
    keys = jax.random.split(key, 4)
    for li in range(3):
        cin, cout = CHANNELS[li], CHANNELS[li + 1]
        fan_in = KH * KW * cin
        params[f"w{li}"] = (jax.random.normal(keys[li], (KH, KW, cin, cout),
                                              jnp.float32) / np.sqrt(fan_in))
        params[f"b{li}"] = jnp.zeros((cout,), jnp.float32)
    feat = CHANNELS[-1] * (IMG_HW // 8) * (IMG_HW // 8)   # 64 * 4 * 4 = 1024
    params["w_fc"] = (jax.random.normal(keys[3], (feat, 2 * LATENT_DIM),
                                        jnp.float32) / np.sqrt(feat))
    params["b_fc"] = jnp.zeros((2 * LATENT_DIM,), jnp.float32)
    return params


def encode_sample_reference(params, image_nchw, eps):
    x = jnp.transpose(image_nchw, (0, 2, 3, 1)).astype(jnp.float32)
    for li in range(3):
        x = jax.lax.conv_general_dilated(
            x, params[f"w{li}"], window_strides=(STRIDE, STRIDE),
            padding=((PAD, PAD), (PAD, PAD)),
            dimension_numbers=("NHWC", "HWIO", "NHWC"))
        x = jnp.maximum(x + params[f"b{li}"], 0.0)
    flat = x.reshape(x.shape[0], -1)                      # (h, w, c) order
    stats = flat @ params["w_fc"] + params["b_fc"]
    mu, logvar = stats[:, :LATENT_DIM], stats[:, LATENT_DIM:]
    return mu + jnp.exp(0.5 * logvar) * eps


if __name__ == "__main__":
    key = jax.random.PRNGKey(0)
    k_img, k_par, k_eps = jax.random.split(key, 3)

    B, C, H, W = 2, 1, IMG_HW, IMG_HW
    image = jax.random.normal(k_img, (B, C, H, W), jnp.float32)   # NCHW like PyTorch
    eps = jax.random.normal(k_eps, (B, LATENT_DIM), jnp.float32)

    params = init_params(k_par)
    prepped = prepare_params(params)      # one-time weight transformation

    encode = jax.jit(encode_sample)
    z = encode(prepped, image, eps)
    jax.block_until_ready(z)

    assert z.shape == (B, LATENT_DIM) and z.dtype == jnp.float32
    z_ref = encode_sample_reference(params, image, eps)
    assert jnp.allclose(z, z_ref, rtol=2e-1, atol=2e-1), (
        "Pallas encoder output mismatch vs pure-JAX reference")
    print("KERNEL_OK")
</pallas_src>

<mosaic_0001>
module attributes {stable_mosaic.version = 11 : i64} {
  func.func @_fused_encoder_kernel(%arg0: i32, %arg1: memref<1x32x32xbf16, #tpu.memory_space<vmem>>, %arg2: memref<1x1x10xf32, #tpu.memory_space<vmem>>, %arg3: memref<4x16x32xbf16, #tpu.memory_space<vmem>>, %arg4: memref<4x32x512xbf16, #tpu.memory_space<vmem>>, %arg5: memref<1x512xf32, #tpu.memory_space<vmem>>, %arg6: memref<4x8x16xbf16, #tpu.memory_space<vmem>>, %arg7: memref<4x512x256xbf16, #tpu.memory_space<vmem>>, %arg8: memref<1x256xf32, #tpu.memory_space<vmem>>, %arg9: memref<4x4x8xbf16, #tpu.memory_space<vmem>>, %arg10: memref<4x256x256xbf16, #tpu.memory_space<vmem>>, %arg11: memref<1x256xf32, #tpu.memory_space<vmem>>, %arg12: memref<1024x20xbf16, #tpu.memory_space<vmem>>, %arg13: memref<1x20xf32, #tpu.memory_space<vmem>>, %arg14: memref<1x1x10xf32, #tpu.memory_space<vmem>>) attributes {dimension_semantics = [#tpu.dimension_semantics<parallel>], iteration_bounds = array<i64: 2>, scalar_prefetch = 0 : i64, scratch_operands = 0 : i64, tpu.core_type = #tpu.core_type<tc>, window_params = [{transform_indices = @transform_0, window_bounds = array<i64: 1, 32, 32>}, {transform_indices = @transform_1, window_bounds = array<i64: 1, 1, 10>}, {pipeline_mode = #tpu.pipeline_mode<synchronous>, transform_indices = @transform_2, window_bounds = array<i64: 4, 16, 32>}, {pipeline_mode = #tpu.pipeline_mode<synchronous>, transform_indices = @transform_3, window_bounds = array<i64: 4, 32, 512>}, {pipeline_mode = #tpu.pipeline_mode<synchronous>, transform_indices = @transform_4, window_bounds = array<i64: 1, 512>}, {pipeline_mode = #tpu.pipeline_mode<synchronous>, transform_indices = @transform_5, window_bounds = array<i64: 4, 8, 16>}, {pipeline_mode = #tpu.pipeline_mode<synchronous>, transform_indices = @transform_6, window_bounds = array<i64: 4, 512, 256>}, {pipeline_mode = #tpu.pipeline_mode<synchronous>, transform_indices = @transform_7, window_bounds = array<i64: 1, 256>}, {pipeline_mode = #tpu.pipeline_mode<synchronous>, transform_indices = @transform_8, window_bounds = array<i64: 4, 4, 8>}, {pipeline_mode = #tpu.pipeline_mode<synchronous>, transform_indices = @transform_9, window_bounds = array<i64: 4, 256, 256>}, {pipeline_mode = #tpu.pipeline_mode<synchronous>, transform_indices = @transform_10, window_bounds = array<i64: 1, 256>}, {pipeline_mode = #tpu.pipeline_mode<synchronous>, transform_indices = @transform_11, window_bounds = array<i64: 1024, 20>}, {pipeline_mode = #tpu.pipeline_mode<synchronous>, transform_indices = @transform_12, window_bounds = array<i64: 1, 20>}, {transform_indices = @transform_13, window_bounds = array<i64: 1, 1, 10>}]} {
    %c0 = arith.constant 0 : index
    %c0_0 = arith.constant 0 : index
    %c0_1 = arith.constant 0 : index
    %0 = vector.load %arg1[%c0, %c0_0, %c0_1] : memref<1x32x32xbf16, #tpu.memory_space<vmem>>, vector<1x32x32xbf16>
    %1 = vector.shape_cast %0 : vector<1x32x32xbf16> to vector<32x32xbf16>
    %c0_2 = arith.constant 0 : index
    %c0_3 = arith.constant 0 : index
    %c0_4 = arith.constant 0 : index
    %2 = vector.load %arg3[%c0_2, %c0_3, %c0_4] : memref<4x16x32xbf16, #tpu.memory_space<vmem>>, vector<1x16x32xbf16>
    %3 = vector.shape_cast %2 : vector<1x16x32xbf16> to vector<16x32xbf16>
    %cst = arith.constant dense<0.000000e+00> : vector<16x32xf32>
    %4 = tpu.matmul %3, %1, %cst {dimension_numbers = #tpu.dot_dimension_numbers<[1], [0], [0], [1], [0, 0, 1, 1], [], []>} : vector<16x32xbf16>, vector<32x32xbf16>, vector<16x32xf32> -> vector<16x32xf32>
    %5 = arith.truncf %4 : vector<16x32xf32> to vector<16x32xbf16>
    %c0_5 = arith.constant 0 : index
    %c0_6 = arith.constant 0 : index
    %c0_7 = arith.constant 0 : index
    %6 = vector.load %arg4[%c0_5, %c0_6, %c0_7] : memref<4x32x512xbf16, #tpu.memory_space<vmem>>, vector<1x32x512xbf16>
    %7 = vector.shape_cast %6 : vector<1x32x512xbf16> to vector<32x512xbf16>
    %cst_8 = arith.constant dense<0.000000e+00> : vector<16x512xf32>
    %8 = tpu.matmul %5, %7, %cst_8 {dimension_numbers = #tpu.dot_dimension_numbers<[1], [0], [0], [1], [0, 0, 1, 1], [], []>} : vector<16x32xbf16>, vector<32x512xbf16>, vector<16x512xf32> -> vector<16x512xf32>
    %c1 = arith.constant 1 : index
    %c0_9 = arith.constant 0 : index
    %c0_10 = arith.constant 0 : index
    %9 = vector.load %arg3[%c1, %c0_9, %c0_10] : memref<4x16x32xbf16, #tpu.memory_space<vmem>>, vector<1x16x32xbf16>
    %10 = vector.shape_cast %9 : vector<1x16x32xbf16> to vector<16x32xbf16>
    %cst_11 = arith.constant dense<0.000000e+00> : vector<16x32xf32>
    %11 = tpu.matmul %10, %1, %cst_11 {dimension_numbers = #tpu.dot_dimension_numbers<[1], [0], [0], [1], [0, 0, 1, 1], [], []>} : vector<16x32xbf16>, vector<32x32xbf16>, vector<16x32xf32> -> vector<16x32xf32>
    %12 = arith.truncf %11 : vector<16x32xf32> to vector<16x32xbf16>
    %c1_12 = arith.constant 1 : index
    %c0_13 = arith.constant 0 : index
    %c0_14 = arith.constant 0 : index
    %13 = vector.load %arg4[%c1_12, %c0_13, %c0_14] : memref<4x32x512xbf16, #tpu.memory_space<vmem>>, vector<1x32x512xbf16>
    %14 = vector.shape_cast %13 : vector<1x32x512xbf16> to vector<32x512xbf16>
    %cst_15 = arith.constant dense<0.000000e+00> : vector<16x512xf32>
    %15 = tpu.matmul %12, %14, %cst_15 {dimension_numbers = #tpu.dot_dimension_numbers<[1], [0], [0], [1], [0, 0, 1, 1], [], []>} : vector<16x32xbf16>, vector<32x512xbf16>, vector<16x512xf32> -> vector<16x512xf32>
    %16 = arith.addf %8, %15 : vector<16x512xf32>
    %c2 = arith.constant 2 : index
    %c0_16 = arith.constant 0 : index
    %c0_17 = arith.constant 0 : index
    %17 = vector.load %arg3[%c2, %c0_16, %c0_17] : memref<4x16x32xbf16, #tpu.memory_space<vmem>>, vector<1x16x32xbf16>
    %18 = vector.shape_cast %17 : vector<1x16x32xbf16> to vector<16x32xbf16>
    %cst_18 = arith.constant dense<0.000000e+00> : vector<16x32xf32>
    %19 = tpu.matmul %18, %1, %cst_18 {dimension_numbers = #tpu.dot_dimension_numbers<[1], [0], [0], [1], [0, 0, 1, 1], [], []>} : vector<16x32xbf16>, vector<32x32xbf16>, vector<16x32xf32> -> vector<16x32xf32>
    %20 = arith.truncf %19 : vector<16x32xf32> to vector<16x32xbf16>
    %c2_19 = arith.constant 2 : index
    %c0_20 = arith.constant 0 : index
    %c0_21 = arith.constant 0 : index
    %21 = vector.load %arg4[%c2_19, %c0_20, %c0_21] : memref<4x32x512xbf16, #tpu.memory_space<vmem>>, vector<1x32x512xbf16>
    %22 = vector.shape_cast %21 : vector<1x32x512xbf16> to vector<32x512xbf16>
    %cst_22 = arith.constant dense<0.000000e+00> : vector<16x512xf32>
    %23 = tpu.matmul %20, %22, %cst_22 {dimension_numbers = #tpu.dot_dimension_numbers<[1], [0], [0], [1], [0, 0, 1, 1], [], []>} : vector<16x32xbf16>, vector<32x512xbf16>, vector<16x512xf32> -> vector<16x512xf32>
    %24 = arith.addf %16, %23 : vector<16x512xf32>
    %c3 = arith.constant 3 : index
    %c0_23 = arith.constant 0 : index
    %c0_24 = arith.constant 0 : index
    %25 = vector.load %arg3[%c3, %c0_23, %c0_24] : memref<4x16x32xbf16, #tpu.memory_space<vmem>>, vector<1x16x32xbf16>
    %26 = vector.shape_cast %25 : vector<1x16x32xbf16> to vector<16x32xbf16>
    %cst_25 = arith.constant dense<0.000000e+00> : vector<16x32xf32>
    %27 = tpu.matmul %26, %1, %cst_25 {dimension_numbers = #tpu.dot_dimension_numbers<[1], [0], [0], [1], [0, 0, 1, 1], [], []>} : vector<16x32xbf16>, vector<32x32xbf16>, vector<16x32xf32> -> vector<16x32xf32>
    %28 = arith.truncf %27 : vector<16x32xf32> to vector<16x32xbf16>
    %c3_26 = arith.constant 3 : index
    %c0_27 = arith.constant 0 : index
    %c0_28 = arith.constant 0 : index
    %29 = vector.load %arg4[%c3_26, %c0_27, %c0_28] : memref<4x32x512xbf16, #tpu.memory_space<vmem>>, vector<1x32x512xbf16>
    %30 = vector.shape_cast %29 : vector<1x32x512xbf16> to vector<32x512xbf16>
    %cst_29 = arith.constant dense<0.000000e+00> : vector<16x512xf32>
    %31 = tpu.matmul %28, %30, %cst_29 {dimension_numbers = #tpu.dot_dimension_numbers<[1], [0], [0], [1], [0, 0, 1, 1], [], []>} : vector<16x32xbf16>, vector<32x512xbf16>, vector<16x512xf32> -> vector<16x512xf32>
    %32 = arith.addf %24, %31 : vector<16x512xf32>
    %c0_30 = arith.constant 0 : index
    %c0_31 = arith.constant 0 : index
    %33 = vector.load %arg5[%c0_30, %c0_31] : memref<1x512xf32, #tpu.memory_space<vmem>>, vector<1x512xf32>
    %34 = vector.broadcast %33 : vector<1x512xf32> to vector<16x512xf32>
    %35 = arith.addf %32, %34 : vector<16x512xf32>
    %cst_32 = arith.constant 0.000000e+00 : f32
    %36 = vector.broadcast %cst_32 : f32 to vector<16x512xf32>
    %37 = arith.maximumf %35, %36 : vector<16x512xf32>
    %38 = arith.truncf %37 : vector<16x512xf32> to vector<16x512xbf16>
    %c0_33 = arith.constant 0 : index
    %c0_34 = arith.constant 0 : index
    %c0_35 = arith.constant 0 : index
    %39 = vector.load %arg6[%c0_33, %c0_34, %c0_35] : memref<4x8x16xbf16, #tpu.memory_space<vmem>>, vector<1x8x16xbf16>
    %40 = vector.shape_cast %39 : vector<1x8x16xbf16> to vector<8x16xbf16>
    %cst_36 = arith.constant dense<0.000000e+00> : vector<8x512xf32>
    %41 = tpu.matmul %40, %38, %cst_36 {dimension_numbers = #tpu.dot_dimension_numbers<[1], [0], [0], [1], [0, 0, 1, 1], [], []>} : vector<8x16xbf16>, vector<16x512xbf16>, vector<8x512xf32> -> vector<8x512xf32>
    %42 = arith.truncf %41 : vector<8x512xf32> to vector<8x512xbf16>
    %c0_37 = arith.constant 0 : index
    %c0_38 = arith.constant 0 : index
    %c0_39 = arith.constant 0 : index
    %43 = vector.load %arg7[%c0_37, %c0_38, %c0_39] : memref<4x512x256xbf16, #tpu.memory_space<vmem>>, vector<1x512x256xbf16>
    %44 = vector.shape_cast %43 : vector<1x512x256xbf16> to vector<512x256xbf16>
    %cst_40 = arith.constant dense<0.000000e+00> : vector<8x256xf32>
    %45 = tpu.matmul %42, %44, %cst_40 {dimension_numbers = #tpu.dot_dimension_numbers<[1], [0], [0], [1], [0, 0, 1, 1], [], []>} : vector<8x512xbf16>, vector<512x256xbf16>, vector<8x256xf32> -> vector<8x256xf32>
    %c1_41 = arith.constant 1 : index
    %c0_42 = arith.constant 0 : index
    %c0_43 = arith.constant 0 : index
    %46 = vector.load %arg6[%c1_41, %c0_42, %c0_43] : memref<4x8x16xbf16, #tpu.memory_space<vmem>>, vector<1x8x16xbf16>
    %47 = vector.shape_cast %46 : vector<1x8x16xbf16> to vector<8x16xbf16>
    %cst_44 = arith.constant dense<0.000000e+00> : vector<8x512xf32>
    %48 = tpu.matmul %47, %38, %cst_44 {dimension_numbers = #tpu.dot_dimension_numbers<[1], [0], [0], [1], [0, 0, 1, 1], [], []>} : vector<8x16xbf16>, vector<16x512xbf16>, vector<8x512xf32> -> vector<8x512xf32>
    %49 = arith.truncf %48 : vector<8x512xf32> to vector<8x512xbf16>
    %c1_45 = arith.constant 1 : index
    %c0_46 = arith.constant 0 : index
    %c0_47 = arith.constant 0 : index
    %50 = vector.load %arg7[%c1_45, %c0_46, %c0_47] : memref<4x512x256xbf16, #tpu.memory_space<vmem>>, vector<1x512x256xbf16>
    %51 = vector.shape_cast %50 : vector<1x512x256xbf16> to vector<512x256xbf16>
    %cst_48 = arith.constant dense<0.000000e+00> : vector<8x256xf32>
    %52 = tpu.matmul %49, %51, %cst_48 {dimension_numbers = #tpu.dot_dimension_numbers<[1], [0], [0], [1], [0, 0, 1, 1], [], []>} : vector<8x512xbf16>, vector<512x256xbf16>, vector<8x256xf32> -> vector<8x256xf32>
    %53 = arith.addf %45, %52 : vector<8x256xf32>
    %c2_49 = arith.constant 2 : index
    %c0_50 = arith.constant 0 : index
    %c0_51 = arith.constant 0 : index
    %54 = vector.load %arg6[%c2_49, %c0_50, %c0_51] : memref<4x8x16xbf16, #tpu.memory_space<vmem>>, vector<1x8x16xbf16>
    %55 = vector.shape_cast %54 : vector<1x8x16xbf16> to vector<8x16xbf16>
    %cst_52 = arith.constant dense<0.000000e+00> : vector<8x512xf32>
    %56 = tpu.matmul %55, %38, %cst_52 {dimension_numbers = #tpu.dot_dimension_numbers<[1], [0], [0], [1], [0, 0, 1, 1], [], []>} : vector<8x16xbf16>, vector<16x512xbf16>, vector<8x512xf32> -> vector<8x512xf32>
    %57 = arith.truncf %56 : vector<8x512xf32> to vector<8x512xbf16>
    %c2_53 = arith.constant 2 : index
    %c0_54 = arith.constant 0 : index
    %c0_55 = arith.constant 0 : index
    %58 = vector.load %arg7[%c2_53, %c0_54, %c0_55] : memref<4x512x256xbf16, #tpu.memory_space<vmem>>, vector<1x512x256xbf16>
    %59 = vector.shape_cast %58 : vector<1x512x256xbf16> to vector<512x256xbf16>
    %cst_56 = arith.constant dense<0.000000e+00> : vector<8x256xf32>
    %60 = tpu.matmul %57, %59, %cst_56 {dimension_numbers = #tpu.dot_dimension_numbers<[1], [0], [0], [1], [0, 0, 1, 1], [], []>} : vector<8x512xbf16>, vector<512x256xbf16>, vector<8x256xf32> -> vector<8x256xf32>
    %61 = arith.addf %53, %60 : vector<8x256xf32>
    %c3_57 = arith.constant 3 : index
    %c0_58 = arith.constant 0 : index
    %c0_59 = arith.constant 0 : index
    %62 = vector.load %arg6[%c3_57, %c0_58, %c0_59] : memref<4x8x16xbf16, #tpu.memory_space<vmem>>, vector<1x8x16xbf16>
    %63 = vector.shape_cast %62 : vector<1x8x16xbf16> to vector<8x16xbf16>
    %cst_60 = arith.constant dense<0.000000e+00> : vector<8x512xf32>
    %64 = tpu.matmul %63, %38, %cst_60 {dimension_numbers = #tpu.dot_dimension_numbers<[1], [0], [0], [1], [0, 0, 1, 1], [], []>} : vector<8x16xbf16>, vector<16x512xbf16>, vector<8x512xf32> -> vector<8x512xf32>
    %65 = arith.truncf %64 : vector<8x512xf32> to vector<8x512xbf16>
    %c3_61 = arith.constant 3 : index
    %c0_62 = arith.constant 0 : index
    %c0_63 = arith.constant 0 : index
    %66 = vector.load %arg7[%c3_61, %c0_62, %c0_63] : memref<4x512x256xbf16, #tpu.memory_space<vmem>>, vector<1x512x256xbf16>
    %67 = vector.shape_cast %66 : vector<1x512x256xbf16> to vector<512x256xbf16>
    %cst_64 = arith.constant dense<0.000000e+00> : vector<8x256xf32>
    %68 = tpu.matmul %65, %67, %cst_64 {dimension_numbers = #tpu.dot_dimension_numbers<[1], [0], [0], [1], [0, 0, 1, 1], [], []>} : vector<8x512xbf16>, vector<512x256xbf16>, vector<8x256xf32> -> vector<8x256xf32>
    %69 = arith.addf %61, %68 : vector<8x256xf32>
    %c0_65 = arith.constant 0 : index
    %c0_66 = arith.constant 0 : index
    %70 = vector.load %arg8[%c0_65, %c0_66] : memref<1x256xf32, #tpu.memory_space<vmem>>, vector<1x256xf32>
    %71 = vector.broadcast %70 : vector<1x256xf32> to vector<8x256xf32>
    %72 = arith.addf %69, %71 : vector<8x256xf32>
    %cst_67 = arith.constant 0.000000e+00 : f32
    %73 = vector.broadcast %cst_67 : f32 to vector<8x256xf32>
    %74 = arith.maximumf %72, %73 : vector<8x256xf32>
    %75 = arith.truncf %74 : vector<8x256xf32> to vector<8x256xbf16>
    %c0_68 = arith.constant 0 : index
    %c0_69 = arith.constant 0 : index
    %c0_70 = arith.constant 0 : index
    %76 = vector.load %arg9[%c0_68, %c0_69, %c0_70] : memref<4x4x8xbf16, #tpu.memory_space<vmem>>, vector<1x4x8xbf16>
    %77 = vector.shape_cast %76 : vector<1x4x8xbf16> to vector<4x8xbf16>
    %cst_71 = arith.constant dense<0.000000e+00> : vector<4x256xf32>
    %78 = tpu.matmul %77, %75, %cst_71 {dimension_numbers = #tpu.dot_dimension_numbers<[1], [0], [0], [1], [0, 0, 1, 1], [], []>} : vector<4x8xbf16>, vector<8x256xbf16>, vector<4x256xf32> -> vector<4x256xf32>
    %79 = arith.truncf %78 : vector<4x256xf32> to vector<4x256xbf16>
    %c0_72 = arith.constant 0 : index
    %c0_73 = arith.constant 0 : index
    %c0_74 = arith.constant 0 : index
    %80 = vector.load %arg10[%c0_72, %c0_73, %c0_74] : memref<4x256x256xbf16, #tpu.memory_space<vmem>>, vector<1x256x256xbf16>
    %81 = vector.shape_cast %80 : vector<1x256x256xbf16> to vector<256x256xbf16>
    %cst_75 = arith.constant dense<0.000000e+00> : vector<4x256xf32>
    %82 = tpu.matmul %79, %81, %cst_75 {dimension_numbers = #tpu.dot_dimension_numbers<[1], [0], [0], [1], [0, 0, 1, 1], [], []>} : vector<4x256xbf16>, vector<256x256xbf16>, vector<4x256xf32> -> vector<4x256xf32>
    %c1_76 = arith.constant 1 : index
    %c0_77 = arith.constant 0 : index
    %c0_78 = arith.constant 0 : index
    %83 = vector.load %arg9[%c1_76, %c0_77, %c0_78] : memref<4x4x8xbf16, #tpu.memory_space<vmem>>, vector<1x4x8xbf16>
    %84 = vector.shape_cast %83 : vector<1x4x8xbf16> to vector<4x8xbf16>
    %cst_79 = arith.constant dense<0.000000e+00> : vector<4x256xf32>
    %85 = tpu.matmul %84, %75, %cst_79 {dimension_numbers = #tpu.dot_dimension_numbers<[1], [0], [0], [1], [0, 0, 1, 1], [], []>} : vector<4x8xbf16>, vector<8x256xbf16>, vector<4x256xf32> -> vector<4x256xf32>
    %86 = arith.truncf %85 : vector<4x256xf32> to vector<4x256xbf16>
    %c1_80 = arith.constant 1 : index
    %c0_81 = arith.constant 0 : index
    %c0_82 = arith.constant 0 : index
    %87 = vector.load %arg10[%c1_80, %c0_81, %c0_82] : memref<4x256x256xbf16, #tpu.memory_space<vmem>>, vector<1x256x256xbf16>
    %88 = vector.shape_cast %87 : vector<1x256x256xbf16> to vector<256x256xbf16>
    %cst_83 = arith.constant dense<0.000000e+00> : vector<4x256xf32>
    %89 = tpu.matmul %86, %88, %cst_83 {dimension_numbers = #tpu.dot_dimension_numbers<[1], [0], [0], [1], [0, 0, 1, 1], [], []>} : vector<4x256xbf16>, vector<256x256xbf16>, vector<4x256xf32> -> vector<4x256xf32>
    %90 = arith.addf %82, %89 : vector<4x256xf32>
    %c2_84 = arith.constant 2 : index
    %c0_85 = arith.constant 0 : index
    %c0_86 = arith.constant 0 : index
    %91 = vector.load %arg9[%c2_84, %c0_85, %c0_86] : memref<4x4x8xbf16, #tpu.memory_space<vmem>>, vector<1x4x8xbf16>
    %92 = vector.shape_cast %91 : vector<1x4x8xbf16> to vector<4x8xbf16>
    %cst_87 = arith.constant dense<0.000000e+00> : vector<4x256xf32>
    %93 = tpu.matmul %92, %75, %cst_87 {dimension_numbers = #tpu.dot_dimension_numbers<[1], [0], [0], [1], [0, 0, 1, 1], [], []>} : vector<4x8xbf16>, vector<8x256xbf16>, vector<4x256xf32> -> vector<4x256xf32>
    %94 = arith.truncf %93 : vector<4x256xf32> to vector<4x256xbf16>
    %c2_88 = arith.constant 2 : index
    %c0_89 = arith.constant 0 : index
    %c0_90 = arith.constant 0 : index
    %95 = vector.load %arg10[%c2_88, %c0_89, %c0_90] : memref<4x256x256xbf16, #tpu.memory_space<vmem>>, vector<1x256x256xbf16>
    %96 = vector.shape_cast %95 : vector<1x256x256xbf16> to vector<256x256xbf16>
    %cst_91 = arith.constant dense<0.000000e+00> : vector<4x256xf32>
    %97 = tpu.matmul %94, %96, %cst_91 {dimension_numbers = #tpu.dot_dimension_numbers<[1], [0], [0], [1], [0, 0, 1, 1], [], []>} : vector<4x256xbf16>, vector<256x256xbf16>, vector<4x256xf32> -> vector<4x256xf32>
    %98 = arith.addf %90, %97 : vector<4x256xf32>
    %c3_92 = arith.constant 3 : index
    %c0_93 = arith.constant 0 : index
    %c0_94 = arith.constant 0 : index
    %99 = vector.load %arg9[%c3_92, %c0_93, %c0_94] : memref<4x4x8xbf16, #tpu.memory_space<vmem>>, vector<1x4x8xbf16>
    %100 = vector.shape_cast %99 : vector<1x4x8xbf16> to vector<4x8xbf16>
    %cst_95 = arith.constant dense<0.000000e+00> : vector<4x256xf32>
    %101 = tpu.matmul %100, %75, %cst_95 {dimension_numbers = #tpu.dot_dimension_numbers<[1], [0], [0], [1], [0, 0, 1, 1], [], []>} : vector<4x8xbf16>, vector<8x256xbf16>, vector<4x256xf32> -> vector<4x256xf32>
    %102 = arith.truncf %101 : vector<4x256xf32> to vector<4x256xbf16>
    %c3_96 = arith.constant 3 : index
    %c0_97 = arith.constant 0 : index
    %c0_98 = arith.constant 0 : index
    %103 = vector.load %arg10[%c3_96, %c0_97, %c0_98] : memref<4x256x256xbf16, #tpu.memory_space<vmem>>, vector<1x256x256xbf16>
    %104 = vector.shape_cast %103 : vector<1x256x256xbf16> to vector<256x256xbf16>
    %cst_99 = arith.constant dense<0.000000e+00> : vector<4x256xf32>
    %105 = tpu.matmul %102, %104, %cst_99 {dimension_numbers = #tpu.dot_dimension_numbers<[1], [0], [0], [1], [0, 0, 1, 1], [], []>} : vector<4x256xbf16>, vector<256x256xbf16>, vector<4x256xf32> -> vector<4x256xf32>
    %106 = arith.addf %98, %105 : vector<4x256xf32>
    %c0_100 = arith.constant 0 : index
    %c0_101 = arith.constant 0 : index
    %107 = vector.load %arg11[%c0_100, %c0_101] : memref<1x256xf32, #tpu.memory_space<vmem>>, vector<1x256xf32>
    %108 = vector.broadcast %107 : vector<1x256xf32> to vector<4x256xf32>
    %109 = arith.addf %106, %108 : vector<4x256xf32>
    %cst_102 = arith.constant 0.000000e+00 : f32
    %110 = vector.broadcast %cst_102 : f32 to vector<4x256xf32>
    %111 = arith.maximumf %109, %110 : vector<4x256xf32>
    %112 = arith.truncf %111 : vector<4x256xf32> to vector<4x256xbf16>
    %c0_103 = arith.constant 0 : index
    %c0_104 = arith.constant 0 : index
    %113 = vector.load %arg13[%c0_103, %c0_104] : memref<1x20xf32, #tpu.memory_space<vmem>>, vector<1x20xf32>
    %114 = vector.extract_strided_slice %112 {offsets = [0, 0], sizes = [1, 256], strides = [1, 1]} : vector<4x256xbf16> to vector<1x256xbf16>
    %c0_105 = arith.constant 0 : index
    %c0_106 = arith.constant 0 : index
    %115 = vector.load %arg12[%c0_105, %c0_106] : memref<1024x20xbf16, #tpu.memory_space<vmem>>, vector<256x20xbf16>
    %cst_107 = arith.constant dense<0.000000e+00> : vector<1x20xf32>
    %116 = tpu.matmul %114, %115, %cst_107 {dimension_numbers = #tpu.dot_dimension_numbers<[1], [0], [0], [1], [0, 0, 1, 1], [], []>} : vector<1x256xbf16>, vector<256x20xbf16>, vector<1x20xf32> -> vector<1x20xf32>
    %117 = arith.addf %113, %116 : vector<1x20xf32>
    %118 = vector.extract_strided_slice %112 {offsets = [1, 0], sizes = [1, 256], strides = [1, 1]} : vector<4x256xbf16> to vector<1x256xbf16>
    %c256 = arith.constant 256 : index
    %c0_108 = arith.constant 0 : index
    %119 = vector.load %arg12[%c256, %c0_108] : memref<1024x20xbf16, #tpu.memory_space<vmem>>, vector<256x20xbf16>
    %cst_109 = arith.constant dense<0.000000e+00> : vector<1x20xf32>
    %120 = tpu.matmul %118, %119, %cst_109 {dimension_numbers = #tpu.dot_dimension_numbers<[1], [0], [0], [1], [0, 0, 1, 1], [], []>} : vector<1x256xbf16>, vector<256x20xbf16>, vector<1x20xf32> -> vector<1x20xf32>
    %121 = arith.addf %117, %120 : vector<1x20xf32>
    %122 = vector.extract_strided_slice %112 {offsets = [2, 0], sizes = [1, 256], strides = [1, 1]} : vector<4x256xbf16> to vector<1x256xbf16>
    %c512 = arith.constant 512 : index
    %c0_110 = arith.constant 0 : index
    %123 = vector.load %arg12[%c512, %c0_110] : memref<1024x20xbf16, #tpu.memory_space<vmem>>, vector<256x20xbf16>
    %cst_111 = arith.constant dense<0.000000e+00> : vector<1x20xf32>
    %124 = tpu.matmul %122, %123, %cst_111 {dimension_numbers = #tpu.dot_dimension_numbers<[1], [0], [0], [1], [0, 0, 1, 1], [], []>} : vector<1x256xbf16>, vector<256x20xbf16>, vector<1x20xf32> -> vector<1x20xf32>
    %125 = arith.addf %121, %124 : vector<1x20xf32>
    %126 = vector.extract_strided_slice %112 {offsets = [3, 0], sizes = [1, 256], strides = [1, 1]} : vector<4x256xbf16> to vector<1x256xbf16>
    %c768 = arith.constant 768 : index
    %c0_112 = arith.constant 0 : index
    %127 = vector.load %arg12[%c768, %c0_112] : memref<1024x20xbf16, #tpu.memory_space<vmem>>, vector<256x20xbf16>
    %cst_113 = arith.constant dense<0.000000e+00> : vector<1x20xf32>
    %128 = tpu.matmul %126, %127, %cst_113 {dimension_numbers = #tpu.dot_dimension_numbers<[1], [0], [0], [1], [0, 0, 1, 1], [], []>} : vector<1x256xbf16>, vector<256x20xbf16>, vector<1x20xf32> -> vector<1x20xf32>
    %129 = arith.addf %125, %128 : vector<1x20xf32>
    %130 = vector.extract_strided_slice %129 {offsets = [0, 0], sizes = [1, 10], strides = [1, 1]} : vector<1x20xf32> to vector<1x10xf32>
    %131 = vector.extract_strided_slice %129 {offsets = [0, 10], sizes = [1, 10], strides = [1, 1]} : vector<1x20xf32> to vector<1x10xf32>
    %cst_114 = arith.constant 5.000000e-01 : f32
    %132 = vector.broadcast %cst_114 : f32 to vector<1x10xf32>
    %133 = arith.mulf %132, %131 : vector<1x10xf32>
    %134 = math.exp %133 : vector<1x10xf32>
    %c0_115 = arith.constant 0 : index
    %c0_116 = arith.constant 0 : index
    %c0_117 = arith.constant 0 : index
    %135 = vector.load %arg2[%c0_115, %c0_116, %c0_117] : memref<1x1x10xf32, #tpu.memory_space<vmem>>, vector<1x1x10xf32>
    %136 = vector.shape_cast %135 : vector<1x1x10xf32> to vector<1x10xf32>
    %137 = arith.mulf %134, %136 : vector<1x10xf32>
    %138 = arith.addf %130, %137 : vector<1x10xf32>
    %c0_118 = arith.constant 0 : index
    %c0_119 = arith.constant 0 : index
    %c0_120 = arith.constant 0 : index
    %139 = vector.load %arg14[%c0_118, %c0_119, %c0_120] : memref<1x1x10xf32, #tpu.memory_space<vmem>>, vector<1x1x10xf32>
    %140 = vector.shape_cast %139 : vector<1x1x10xf32> to vector<1x10xf32>
    %141 = vector.shape_cast %138 : vector<1x10xf32> to vector<1x1x10xf32>
    tpu.vector_store %arg14[%c0_118, %c0_119, %c0_120], %141 {strides = array<i32>} : memref<1x1x10xf32, #tpu.memory_space<vmem>>, vector<1x1x10xf32>,
    return
  }
  func.func @transform_0(%arg0: i32) -> (i32, i32, i32) {
    %c0_i32 = arith.constant 0 : i32
    %c0_i32_0 = arith.constant 0 : i32
    %c0_i32_1 = arith.constant 0 : i32
    return %arg0, %c0_i32, %c0_i32_0 : i32, i32, i32
  }
  func.func @transform_1(%arg0: i32) -> (i32, i32, i32) {
    %c0_i32 = arith.constant 0 : i32
    %c0_i32_0 = arith.constant 0 : i32
    %c0_i32_1 = arith.constant 0 : i32
    return %arg0, %c0_i32, %c0_i32_0 : i32, i32, i32
  }
  func.func @transform_2(%arg0: i32) -> (i32, i32, i32) {
    %c0_i32 = arith.constant 0 : i32
    %c0_i32_0 = arith.constant 0 : i32
    %c0_i32_1 = arith.constant 0 : i32
    %c0_i32_2 = arith.constant 0 : i32
    return %c0_i32, %c0_i32_0, %c0_i32_1 : i32, i32, i32
  }
  func.func @transform_3(%arg0: i32) -> (i32, i32, i32) {
    %c0_i32 = arith.constant 0 : i32
    %c0_i32_0 = arith.constant 0 : i32
    %c0_i32_1 = arith.constant 0 : i32
    %c0_i32_2 = arith.constant 0 : i32
    return %c0_i32, %c0_i32_0, %c0_i32_1 : i32, i32, i32
  }
  func.func @transform_4(%arg0: i32) -> (i32, i32) {
    %c0_i32 = arith.constant 0 : i32
    %c0_i32_0 = arith.constant 0 : i32
    %c0_i32_1 = arith.constant 0 : i32
    return %c0_i32, %c0_i32_0 : i32, i32
  }
  func.func @transform_5(%arg0: i32) -> (i32, i32, i32) {
    %c0_i32 = arith.constant 0 : i32
    %c0_i32_0 = arith.constant 0 : i32
    %c0_i32_1 = arith.constant 0 : i32
    %c0_i32_2 = arith.constant 0 : i32
    return %c0_i32, %c0_i32_0, %c0_i32_1 : i32, i32, i32
  }
  func.func @transform_6(%arg0: i32) -> (i32, i32, i32) {
    %c0_i32 = arith.constant 0 : i32
    %c0_i32_0 = arith.constant 0 : i32
    %c0_i32_1 = arith.constant 0 : i32
    %c0_i32_2 = arith.constant 0 : i32
    return %c0_i32, %c0_i32_0, %c0_i32_1 : i32, i32, i32
  }
  func.func @transform_7(%arg0: i32) -> (i32, i32) {
    %c0_i32 = arith.constant 0 : i32
    %c0_i32_0 = arith.constant 0 : i32
    %c0_i32_1 = arith.constant 0 : i32
    return %c0_i32, %c0_i32_0 : i32, i32
  }
  func.func @transform_8(%arg0: i32) -> (i32, i32, i32) {
    %c0_i32 = arith.constant 0 : i32
    %c0_i32_0 = arith.constant 0 : i32
    %c0_i32_1 = arith.constant 0 : i32
    %c0_i32_2 = arith.constant 0 : i32
    return %c0_i32, %c0_i32_0, %c0_i32_1 : i32, i32, i32
  }
  func.func @transform_9(%arg0: i32) -> (i32, i32, i32) {
    %c0_i32 = arith.constant 0 : i32
    %c0_i32_0 = arith.constant 0 : i32
    %c0_i32_1 = arith.constant 0 : i32
    %c0_i32_2 = arith.constant 0 : i32
    return %c0_i32, %c0_i32_0, %c0_i32_1 : i32, i32, i32
  }
  func.func @transform_10(%arg0: i32) -> (i32, i32) {
    %c0_i32 = arith.constant 0 : i32
    %c0_i32_0 = arith.constant 0 : i32
    %c0_i32_1 = arith.constant 0 : i32
    return %c0_i32, %c0_i32_0 : i32, i32
  }
  func.func @transform_11(%arg0: i32) -> (i32, i32) {
    %c0_i32 = arith.constant 0 : i32
    %c0_i32_0 = arith.constant 0 : i32
    %c0_i32_1 = arith.constant 0 : i32
    return %c0_i32, %c0_i32_0 : i32, i32
  }
  func.func @transform_12(%arg0: i32) -> (i32, i32) {
    %c0_i32 = arith.constant 0 : i32
    %c0_i32_0 = arith.constant 0 : i32
    %c0_i32_1 = arith.constant 0 : i32
    return %c0_i32, %c0_i32_0 : i32, i32
  }
  func.func @transform_13(%arg0: i32) -> (i32, i32, i32) {
    %c0_i32 = arith.constant 0 : i32
    %c0_i32_0 = arith.constant 0 : i32
    %c0_i32_1 = arith.constant 0 : i32
    return %arg0, %c0_i32, %c0_i32_0 : i32, i32, i32
  }
}

</mosaic_0001>

<llo_original>
// kernel: encode_sample.1
$region0: #{encode_sample.1}
  #allocation0 [shape = 'u32[]', space=smem, size = 0x4, offset = 0x4, fixed_abs, tag = 'smem constant byte address 0x4 - core index']
  #allocation1 [shape = 'u32[144,128]{1,0:T(1,128)}', space=vmem, size = 0x12000, scoped, tag = 'internal scratch']
  %s0 = inlined_call_operand.vmem [shape: bf16[2,32,32], index: 0, kind: input, shape index: {}]
  %s1 = inlined_call_operand.vmem [shape: f32[2,1,10], index: 1, kind: input, shape index: {}]
  %s2 = inlined_call_operand.vmem [shape: bf16[4,16,32], index: 2, kind: input, shape index: {}]
  %s3 = inlined_call_operand.vmem [shape: bf16[4,32,512], index: 3, kind: input, shape index: {}]
  %s4 = inlined_call_operand.vmem [shape: f32[1,512], index: 4, kind: input, shape index: {}]
  %s5 = inlined_call_operand.vmem [shape: bf16[4,8,16], index: 5, kind: input, shape index: {}]
  %s6 = inlined_call_operand.hbm [shape: bf16[4,512,256], index: 6, kind: input, shape index: {}]
  %s7 = inlined_call_operand.vmem [shape: f32[1,256], index: 7, kind: input, shape index: {}]
  %s8 = inlined_call_operand.vmem [shape: bf16[4,4,8], index: 8, kind: input, shape index: {}]
  %s9 = inlined_call_operand.hbm [shape: bf16[4,256,256], index: 9, kind: input, shape index: {}]
  %s10 = inlined_call_operand.vmem [shape: f32[1,256], index: 10, kind: input, shape index: {}]
  %s11 = inlined_call_operand.vmem [shape: bf16[1024,20], index: 11, kind: input, shape index: {}]
  %s12 = inlined_call_operand.vmem [shape: f32[1,20], index: 12, kind: input, shape index: {}]
  %s13 = inlined_call_operand.hbm [shape: f32[2,1,10], index: 13, kind: output, shape index: {}]
  %s14 = sld [smem:[#allocation0]]
  $region93: #{encode_sample.1} parent=0
    _
  %s16 = ssub.s32 1, %s14
  %s17 = scalar_select 0, %s16, %s14
  $region1: #{encode_sample.1} parent=0
    #allocation2 [shape = 'u8[1048576]{0}', space=vmem, size = 0x100000, scoped, tag = 'input window, operand 6, single buffered']
    #allocation3 [shape = 's32[2]{0}', space=sflag, size = 0x8, scoped, tag = 'scoped memory for encode_sample.1']
    #allocation4 [shape = 's32[2]{0}', space=sflag, size = 0x8, scoped, tag = 'scoped memory for encode_sample.1']
    #allocation5 [shape = 'u8[524288]{0}', space=vmem, size = 0x80000, scoped, tag = 'input window, operand 9, single buffered']
    #allocation6 [shape = 's32[1]{0}', space=sflag, size = 0x4, scoped, tag = 'scoped memory for encode_sample.1']
    #allocation7 [shape = 'u8[1024]{0}', space=vmem, size = 0x400, scoped, tag = 'output window, operand 0']
    %18 = vsyncpa [#allocation3], 0
    %19 = vsyncpa [#allocation6], 0
    %20 = vsyncpa [#allocation4], 0
    %s21 = scalar_lea.sflag [#allocation4], 1
    %22 = vsyncpa %s21, 0
    loop: start=0, step=1, limit=4
    $region2: #{encode_sample.1} parent=1 // loop_pre_header
      _
    $region3: #{encode_sample.1} parent=1 // loop_header
      %s24 = sphi 0, %s28
      %p25 = scmp.ge.s32.totalorder %s24, 4
      %s34 = sphi 0, %s36
      %s37 = sphi 0, %s34
      %s38 = sphi 0, %s37
      %s54 = sphi 0, %s38
      %s60 = sphi 0, %s62
      %s63 = sphi 0, %s60
      %s64 = sphi 0, %s63
      %s80 = sphi 0, %s64
      %s84 = sphi 0, %s84
      %s86 = sphi 0, %s84
      %s87 = sphi 0, %s86
      %s101 = sphi 0, %s87
      %s105 = sphi 0, %s105
      %s107 = sphi 0, %s105
      %s108 = sphi 0, %s107
      %s122 = sphi 0, %s108
      %s126 = sphi 0, %s126
      %s128 = sphi 0, %s126
      %s129 = sphi 0, %s128
      %s143 = sphi 0, %s129
      %s147 = sphi 0, %s147
      %s149 = sphi 0, %s147
      %s150 = sphi 0, %s149
      %s164 = sphi 0, %s150
      %s168 = sphi 0, %s168
      %s170 = sphi 0, %s168
      %s171 = sphi 0, %s170
      %s185 = sphi 0, %s171
      %s189 = sphi 0, %s189
      %s191 = sphi 0, %s189
      %s192 = sphi 0, %s191
      %s206 = sphi 0, %s192
      %s210 = sphi 0, %s210
      %s212 = sphi 0, %s210
      %s213 = sphi 0, %s212
      %s227 = sphi 0, %s213
      %s231 = sphi 0, %s231
      %s233 = sphi 0, %s231
      %s234 = sphi 0, %s233
      %s248 = sphi 0, %s234
      %s252 = sphi 0, %s252
      %s254 = sphi 0, %s252
      %s255 = sphi 0, %s254
      %s269 = sphi 0, %s255
      %s273 = sphi 0, %s273
      %s275 = sphi 0, %s273
      %s276 = sphi 0, %s275
      %s290 = sphi 0, %s276
      %s294 = sphi 0, %s294
      %s296 = sphi 0, %s294
      %s297 = sphi 0, %s296
      %s311 = sphi 0, %s297
      %s317 = sphi 0, %s319
      %s320 = sphi 0, %s317
      %s321 = sphi 0, %s320
      %s337 = sphi 0, %s321
    $region4: #{encode_sample.1} parent=1 // loop_header_branch
      %27 = sbr.rel (%p25) target = $region8
    $region5: #{encode_sample.1} parent=1 // loop_body
      %s29 = ssub.s32 %s24, 1
      %s30 = ssub.s32 %s24, 2
      %s31 = sadd.s32 %s24, 1
      %s32 = ssub.s32 %s24, %s31
      %p33 = scmp.eq.s32.totalorder %s32, 0
      %s35 = sadd.s32 %s34, 1
      %s36 = scalar_select %p33, %s34, %s35
      %p39 = pneg %p33
      %p40 = scmp.eq.s32.totalorder %s24, 1
      %p41 = por %p39, %p40
      %p42 = scmp.ne.s32.totalorder %s34, %s37
      %p43 = scmp.eq.s32.totalorder %s24, 0
      %p44 = por %p42, %p43
      %p45 = scmp.ne.s32.totalorder %s34, %s37
      %p46 = scmp.eq.s32.totalorder %s29, 1
      %p47 = por %p45, %p46
      %p48 = scmp.ne.s32.totalorder %s37, %s38
      %p49 = scmp.eq.s32.totalorder %s29, 0
      %p50 = por %p48, %p49
      %p51 = scmp.ne.s32.totalorder %s37, %s38
      %p52 = scmp.eq.s32.totalorder %s30, 1
      %p53 = por %p51, %p52
      %p55 = scmp.ne.s32.totalorder %s38, %s54
      %p56 = scmp.eq.s32.totalorder %s30, 0
      %p57 = por %p55, %p56
      %s58 = ssub.s32 %s24, %s31
      %p59 = scmp.eq.s32.totalorder %s58, 0
      %s61 = sadd.s32 %s60, 1
      %s62 = scalar_select %p59, %s60, %s61
      %p65 = pneg %p59
      %p66 = scmp.eq.s32.totalorder %s24, 1
      %p67 = por %p65, %p66
      %p68 = scmp.ne.s32.totalorder %s60, %s63
      %p69 = scmp.eq.s32.totalorder %s24, 0
      %p70 = por %p68, %p69
      %p71 = scmp.ne.s32.totalorder %s60, %s63
      %p72 = scmp.eq.s32.totalorder %s29, 1
      %p73 = por %p71, %p72
      %p74 = scmp.ne.s32.totalorder %s63, %s64
      %p75 = scmp.eq.s32.totalorder %s29, 0
      %p76 = por %p74, %p75
      %p77 = scmp.ne.s32.totalorder %s63, %s64
      %p78 = scmp.eq.s32.totalorder %s30, 1
      %p79 = por %p77, %p78
      %p81 = scmp.ne.s32.totalorder %s64, %s80
      %p82 = scmp.eq.s32.totalorder %s30, 0
      %p83 = por %p81, %p82
      %s85 = sadd.s32 %s84, 1
      %p88 = scmp.eq.s32.totalorder %s24, 1
      %p89 = scmp.ne.s32.totalorder %s84, %s86
      %p90 = scmp.eq.s32.totalorder %s24, 0
      %p91 = por %p89, %p90
      %p92 = scmp.ne.s32.totalorder %s84, %s86
      %p93 = scmp.eq.s32.totalorder %s29, 1
      %p94 = por %p92, %p93
      %p95 = scmp.ne.s32.totalorder %s86, %s87
      %p96 = scmp.eq.s32.totalorder %s29, 0
      %p97 = por %p95, %p96
      %p98 = scmp.ne.s32.totalorder %s86, %s87
      %p99 = scmp.eq.s32.totalorder %s30, 1
      %p100 = por %p98, %p99
      %p102 = scmp.ne.s32.totalorder %s87, %s101
      %p103 = scmp.eq.s32.totalorder %s30, 0
      %p104 = por %p102, %p103
      %s106 = sadd.s32 %s105, 1
      %p109 = scmp.eq.s32.totalorder %s24, 1
      %p110 = scmp.ne.s32.totalorder %s105, %s107
      %p111 = scmp.eq.s32.totalorder %s24, 0
      %p112 = por %p110, %p111
      %p113 = scmp.ne.s32.totalorder %s105, %s107
      %p114 = scmp.eq.s32.totalorder %s29, 1
      %p115 = por %p113, %p114
      %p116 = scmp.ne.s32.totalorder %s107, %s108
      %p117 = scmp.eq.s32.totalorder %s29, 0
      %p118 = por %p116, %p117
      %p119 = scmp.ne.s32.totalorder %s107, %s108
      %p120 = scmp.eq.s32.totalorder %s30, 1
      %p121 = por %p119, %p120
      %p123 = scmp.ne.s32.totalorder %s108, %s122
      %p124 = scmp.eq.s32.totalorder %s30, 0
      %p125 = por %p123, %p124
      %s127 = sadd.s32 %s126, 1
      %p130 = scmp.eq.s32.totalorder %s24, 1
      %p131 = scmp.ne.s32.totalorder %s126, %s128
      %p132 = scmp.eq.s32.totalorder %s24, 0
      %p133 = por %p131, %p132
      %p134 = scmp.ne.s32.totalorder %s126, %s128
      %p135 = scmp.eq.s32.totalorder %s29, 1
      %p136 = por %p134, %p135
      %p137 = scmp.ne.s32.totalorder %s128, %s129
      %p138 = scmp.eq.s32.totalorder %s29, 0
      %p139 = por %p137, %p138
      %p140 = scmp.ne.s32.totalorder %s128, %s129
      %p141 = scmp.eq.s32.totalorder %s30, 1
      %p142 = por %p140, %p141
      %p144 = scmp.ne.s32.totalorder %s129, %s143
      %p145 = scmp.eq.s32.totalorder %s30, 0
      %p146 = por %p144, %p145
      %s148 = sadd.s32 %s147, 1
      %p151 = scmp.eq.s32.totalorder %s24, 1
      %p152 = scmp.ne.s32.totalorder %s147, %s149
      %p153 = scmp.eq.s32.totalorder %s24, 0
      %p154 = por %p152, %p153
      %p155 = scmp.ne.s32.totalorder %s147, %s149
      %p156 = scmp.eq.s32.totalorder %s29, 1
      %p157 = por %p155, %p156
      %p158 = scmp.ne.s32.totalorder %s149, %s150
      %p159 = scmp.eq.s32.totalorder %s29, 0
      %p160 = por %p158, %p159
      %p161 = scmp.ne.s32.totalorder %s149, %s150
      %p162 = scmp.eq.s32.totalorder %s30, 1
      %p163 = por %p161, %p162
      %p165 = scmp.ne.s32.totalorder %s150, %s164
      %p166 = scmp.eq.s32.totalorder %s30, 0
      %p167 = por %p165, %p166
      %s169 = sadd.s32 %s168, 1
      %p172 = scmp.eq.s32.totalorder %s24, 1
      %p173 = scmp.ne.s32.totalorder %s168, %s170
      %p174 = scmp.eq.s32.totalorder %s24, 0
      %p175 = por %p173, %p174
      %p176 = scmp.ne.s32.totalorder %s168, %s170
      %p177 = scmp.eq.s32.totalorder %s29, 1
      %p178 = por %p176, %p177
      %p179 = scmp.ne.s32.totalorder %s170, %s171
      %p180 = scmp.eq.s32.totalorder %s29, 0
      %p181 = por %p179, %p180
      %p182 = scmp.ne.s32.totalorder %s170, %s171
      %p183 = scmp.eq.s32.totalorder %s30, 1
      %p184 = por %p182, %p183
      %p186 = scmp.ne.s32.totalorder %s171, %s185
      %p187 = scmp.eq.s32.totalorder %s30, 0
      %p188 = por %p186, %p187
      %s190 = sadd.s32 %s189, 1
      %p193 = scmp.eq.s32.totalorder %s24, 1
      %p194 = scmp.ne.s32.totalorder %s189, %s191
      %p195 = scmp.eq.s32.totalorder %s24, 0
      %p196 = por %p194, %p195
      %p197 = scmp.ne.s32.totalorder %s189, %s191
      %p198 = scmp.eq.s32.totalorder %s29, 1
      %p199 = por %p197, %p198
      %p200 = scmp.ne.s32.totalorder %s191, %s192
      %p201 = scmp.eq.s32.totalorder %s29, 0
      %p202 = por %p200, %p201
      %p203 = scmp.ne.s32.totalorder %s191, %s192
      %p204 = scmp.eq.s32.totalorder %s30, 1
      %p205 = por %p203, %p204
      %p207 = scmp.ne.s32.totalorder %s192, %s206
      %p208 = scmp.eq.s32.totalorder %s30, 0
      %p209 = por %p207, %p208
      %s211 = sadd.s32 %s210, 1
      %p214 = scmp.eq.s32.totalorder %s24, 1
      %p215 = scmp.ne.s32.totalorder %s210, %s212
      %p216 = scmp.eq.s32.totalorder %s24, 0
      %p217 = por %p215, %p216
      %p218 = scmp.ne.s32.totalorder %s210, %s212
      %p219 = scmp.eq.s32.totalorder %s29, 1
      %p220 = por %p218, %p219
      %p221 = scmp.ne.s32.totalorder %s212, %s213
      %p222 = scmp.eq.s32.totalorder %s29, 0
      %p223 = por %p221, %p222
      %p224 = scmp.ne.s32.totalorder %s212, %s213
      %p225 = scmp.eq.s32.totalorder %s30, 1
      %p226 = por %p224, %p225
      %p228 = scmp.ne.s32.totalorder %s213, %s227
      %p229 = scmp.eq.s32.totalorder %s30, 0
      %p230 = por %p228, %p229
      %s232 = sadd.s32 %s231, 1
      %p235 = scmp.eq.s32.totalorder %s24, 1
      %p236 = scmp.ne.s32.totalorder %s231, %s233
      %p237 = scmp.eq.s32.totalorder %s24, 0
      %p238 = por %p236, %p237
      %p239 = scmp.ne.s32.totalorder %s231, %s233
      %p240 = scmp.eq.s32.totalorder %s29, 1
      %p241 = por %p239, %p240
      %p242 = scmp.ne.s32.totalorder %s233, %s234
      %p243 = scmp.eq.s32.totalorder %s29, 0
      %p244 = por %p242, %p243
      %p245 = scmp.ne.s32.totalorder %s233, %s234
      %p246 = scmp.eq.s32.totalorder %s30, 1
      %p247 = por %p245, %p246
      %p249 = scmp.ne.s32.totalorder %s234, %s248
      %p250 = scmp.eq.s32.totalorder %s30, 0
      %p251 = por %p249, %p250
      %s253 = sadd.s32 %s252, 1
      %p256 = scmp.eq.s32.totalorder %s24, 1
      %p257 = scmp.ne.s32.totalorder %s252, %s254
      %p258 = scmp.eq.s32.totalorder %s24, 0
      %p259 = por %p257, %p258
      %p260 = scmp.ne.s32.totalorder %s252, %s254
      %p261 = scmp.eq.s32.totalorder %s29, 1
      %p262 = por %p260, %p261
      %p263 = scmp.ne.s32.totalorder %s254, %s255
      %p264 = scmp.eq.s32.totalorder %s29, 0
      %p265 = por %p263, %p264
      %p266 = scmp.ne.s32.totalorder %s254, %s255
      %p267 = scmp.eq.s32.totalorder %s30, 1
      %p268 = por %p266, %p267
      %p270 = scmp.ne.s32.totalorder %s255, %s269
      %p271 = scmp.eq.s32.totalorder %s30, 0
      %p272 = por %p270, %p271
      %s274 = sadd.s32 %s273, 1
      %p277 = scmp.eq.s32.totalorder %s24, 1
      %p278 = scmp.ne.s32.totalorder %s273, %s275
      %p279 = scmp.eq.s32.totalorder %s24, 0
      %p280 = por %p278, %p279
      %p281 = scmp.ne.s32.totalorder %s273, %s275
      %p282 = scmp.eq.s32.totalorder %s29, 1
      %p283 = por %p281, %p282
      %p284 = scmp.ne.s32.totalorder %s275, %s276
      %p285 = scmp.eq.s32.totalorder %s29, 0
      %p286 = por %p284, %p285
      %p287 = scmp.ne.s32.totalorder %s275, %s276
      %p288 = scmp.eq.s32.totalorder %s30, 1
      %p289 = por %p287, %p288
      %p291 = scmp.ne.s32.totalorder %s276, %s290
      %p292 = scmp.eq.s32.totalorder %s30, 0
      %p293 = por %p291, %p292
      %s295 = sadd.s32 %s294, 1
      %p298 = scmp.eq.s32.totalorder %s24, 1
      %p299 = scmp.ne.s32.totalorder %s294, %s296
      %p300 = scmp.eq.s32.totalorder %s24, 0
      %p301 = por %p299, %p300
      %p302 = scmp.ne.s32.totalorder %s294, %s296
      %p303 = scmp.eq.s32.totalorder %s29, 1
      %p304 = por %p302, %p303
      %p305 = scmp.ne.s32.totalorder %s296, %s297
      %p306 = scmp.eq.s32.totalorder %s29, 0
      %p307 = por %p305, %p306
      %p308 = scmp.ne.s32.totalorder %s296, %s297
      %p309 = scmp.eq.s32.totalorder %s30, 1
      %p310 = por %p308, %p309
      %p312 = scmp.ne.s32.totalorder %s297, %s311
      %p313 = scmp.eq.s32.totalorder %s30, 0
      %p314 = por %p312, %p313
      %s315 = ssub.s32 %s24, %s31
      %p316 = scmp.eq.s32.totalorder %s315, 0
      %s318 = sadd.s32 %s317, 1
      %s319 = scalar_select %p316, %s317, %s318
      %p322 = pneg %p316
      %p323 = scmp.eq.s32.totalorder %s24, 1
      %p324 = por %p322, %p323
      %p325 = scmp.ne.s32.totalorder %s317, %s320
      %p326 = scmp.eq.s32.totalorder %s24, 0
      %p327 = por %p325, %p326
      %p328 = scmp.ne.s32.totalorder %s317, %s320
      %p329 = scmp.eq.s32.totalorder %s29, 1
      %p330 = por %p328, %p329
      %p331 = scmp.ne.s32.totalorder %s320, %s321
      %p332 = scmp.eq.s32.totalorder %s29, 0
      %p333 = por %p331, %p332
      %p334 = scmp.ne.s32.totalorder %s320, %s321
      %p335 = scmp.eq.s32.totalorder %s30, 1
      %p336 = por %p334, %p335
      %p338 = scmp.ne.s32.totalorder %s321, %s337
      %p339 = scmp.eq.s32.totalorder %s30, 0
      %p340 = por %p338, %p339
      %p341 = scmp.le.s32.totalorder 1, %s24
      %p342 = scmp.lt.s32.totalorder %s24, 3
      %p343 = pnand %p341, %p342
      %p344 = pneg %p343
      // Predicated region
      $region9: #{encode_sample.1} parent=5 // pred_check
        _
      $region10: #{encode_sample.1} parent=5 // pred_check_branch
        %346 = sbr.rel (%p343) target = $region12
      $region11: #{encode_sample.1} parent=5 // pred_region
        %s347 = ssub.s32 %s24, 1
        // Predicated region
        $region13: #{encode_sample.1} parent=11 // pred_check
          %p348 = pneg %p97
        $region14: #{encode_sample.1} parent=11 // pred_check_branch
          %350 = sbr.rel (%p348) target = $region16
        $region15: #{encode_sample.1} parent=11 // pred_region
          _
        $region16: #{encode_sample.1} parent=11 // pred_fallthru
          _
        // Predicated region
        $region17: #{encode_sample.1} parent=11 // pred_check
          %p351 = pneg %p118
        $region18: #{encode_sample.1} parent=11 // pred_check_branch
          %353 = sbr.rel (%p351) target = $region20
        $region19: #{encode_sample.1} parent=11 // pred_region
          _
        $region20: #{encode_sample.1} parent=11 // pred_fallthru
          _
        // Predicated region
        $region21: #{encode_sample.1} parent=11 // pred_check
          %p354 = pneg %p139
        $region22: #{encode_sample.1} parent=11 // pred_check_branch
          %356 = sbr.rel (%p354) target = $region24
        $region23: #{encode_sample.1} parent=11 // pred_region
          _
        $region24: #{encode_sample.1} parent=11 // pred_fallthru
          _
        // Predicated region
        $region25: #{encode_sample.1} parent=11 // pred_check
          %p357 = pneg %p160
        $region26: #{encode_sample.1} parent=11 // pred_check_branch
          %359 = sbr.rel (%p357) target = $region28
        $region27: #{encode_sample.1} parent=11 // pred_region
          _
        $region28: #{encode_sample.1} parent=11 // pred_fallthru
          _
        // Predicated region
        $region29: #{encode_sample.1} parent=11 // pred_check
          %p360 = pneg %p181
        $region30: #{encode_sample.1} parent=11 // pred_check_branch
          %362 = sbr.rel (%p360) target = $region32
        $region31: #{encode_sample.1} parent=11 // pred_region
          %s364 = ssub.s32 32768, 32768
          %365 = vsyncadd [#allocation3], %s364
          %s366 = sshll.u32 [#allocation2], 4
          %s367 = int_to_ptr.vmem [resolvable:$true] %s366
          %372 = dma.hbm_to_vmem [thread:$0]  %s6, 32768, %s367, [#allocation3], 128, 128, 8
        $region32: #{encode_sample.1} parent=11 // pred_fallthru
          _
        // Predicated region
        $region33: #{encode_sample.1} parent=11 // pred_check
          %p373 = pneg %p202
        $region34: #{encode_sample.1} parent=11 // pred_check_branch
          %375 = sbr.rel (%p373) target = $region36
        $region35: #{encode_sample.1} parent=11 // pred_region
          _
        $region36: #{encode_sample.1} parent=11 // pred_fallthru
          _
        // Predicated region
        $region37: #{encode_sample.1} parent=11 // pred_check
          %p376 = pneg %p223
        $region38: #{encode_sample.1} parent=11 // pred_check_branch
          %378 = sbr.rel (%p376) target = $region40
        $region39: #{encode_sample.1} parent=11 // pred_region
          _
        $region40: #{encode_sample.1} parent=11 // pred_fallthru
          _
        // Predicated region
        $region41: #{encode_sample.1} parent=11 // pred_check
          %p379 = pneg %p244
        $region42: #{encode_sample.1} parent=11 // pred_check_branch
          %381 = sbr.rel (%p379) target = $region44
        $region43: #{encode_sample.1} parent=11 // pred_region
          %s383 = ssub.s32 16384, 16384
          %384 = vsyncadd [#allocation6], %s383
          %s385 = sshll.u32 [#allocation5], 4
          %s386 = int_to_ptr.vmem [resolvable:$true] %s385
          %391 = dma.hbm_to_vmem [thread:$0]  %s9, 16384, %s386, [#allocation6], 128, 128, 8
        $region44: #{encode_sample.1} parent=11 // pred_fallthru
          _
        // Predicated region
        $region45: #{encode_sample.1} parent=11 // pred_check
          %p392 = pneg %p265
        $region46: #{encode_sample.1} parent=11 // pred_check_branch
          %394 = sbr.rel (%p392) target = $region48
        $region47: #{encode_sample.1} parent=11 // pred_region
          _
        $region48: #{encode_sample.1} parent=11 // pred_fallthru
          _
        // Predicated region
        $region49: #{encode_sample.1} parent=11 // pred_check
          %p395 = pneg %p286
        $region50: #{encode_sample.1} parent=11 // pred_check_branch
          %397 = sbr.rel (%p395) target = $region52
        $region51: #{encode_sample.1} parent=11 // pred_region
          _
        $region52: #{encode_sample.1} parent=11 // pred_fallthru
          _
        // Predicated region
        $region53: #{encode_sample.1} parent=11 // pred_check
          %p398 = pneg %p307
        $region54: #{encode_sample.1} parent=11 // pred_check_branch
          %400 = sbr.rel (%p398) target = $region56
        $region55: #{encode_sample.1} parent=11 // pred_region
          _
        $region56: #{encode_sample.1} parent=11 // pred_fallthru
          _
      $region12: #{encode_sample.1} parent=5 // pred_fallthru
        _
      %p401 = scmp.lt.s32.totalorder %s24, 2
      // Predicated region
      $region57: #{encode_sample.1} parent=5 // pred_check
        %p402 = pneg %p401
      $region58: #{encode_sample.1} parent=5 // pred_check_branch
        %404 = sbr.rel (%p402) target = $region60
      $region59: #{encode_sample.1} parent=5 // pred_region
        // Predicated region
        $region61: #{encode_sample.1} parent=59 // pred_check
          %p405 = pneg %p44
        $region62: #{encode_sample.1} parent=59 // pred_check_branch
          %407 = sbr.rel (%p405) target = $region64
        $region63: #{encode_sample.1} parent=59 // pred_region
          %p408 = scmp.lt.s32.totalorder %s24, 1
          %s409 = scalar_select %p408, %s24, 1
          %s410 = smul.addr %s409, 4
          %s411 = smul.addr %s410, 4
          %s412 = scalar_lea.vmem %s0, %s411
        $region64: #{encode_sample.1} parent=59 // pred_fallthru
          _
        // Predicated region
        $region65: #{encode_sample.1} parent=59 // pred_check
          %p413 = pneg %p70
        $region66: #{encode_sample.1} parent=59 // pred_check_branch
          %415 = sbr.rel (%p413) target = $region68
        $region67: #{encode_sample.1} parent=59 // pred_region
          %p416 = scmp.lt.s32.totalorder %s24, 1
          %s417 = scalar_select %p416, %s24, 1
          %s418 = scalar_lea.vmem %s1, %s417
        $region68: #{encode_sample.1} parent=59 // pred_fallthru
          _
      $region60: #{encode_sample.1} parent=5 // pred_fallthru
        _
      %p419 = scmp.le.s32.totalorder 1, %s24
      %p420 = scmp.lt.s32.totalorder %s24, 3
      %p421 = pnand %p419, %p420
      %p422 = pneg %p421
      // Predicated region
      $region69: #{encode_sample.1} parent=5 // pred_check
        _
      $region70: #{encode_sample.1} parent=5 // pred_check_branch
        %424 = sbr.rel (%p421) target = $region72
      $region71: #{encode_sample.1} parent=5 // pred_region
        %s425 = ssub.s32 %s24, 1
        // Predicated region
        $region73: #{encode_sample.1} parent=71 // pred_check
          %p426 = pneg %p181
        $region74: #{encode_sample.1} parent=71 // pred_check_branch
          %428 = sbr.rel (%p426) target = $region76
        $region75: #{encode_sample.1} parent=71 // pred_region
          %429 = dma.done [#allocation3], 32768
        $region76: #{encode_sample.1} parent=71 // pred_fallthru
          _
        // Predicated region
        $region77: #{encode_sample.1} parent=71 // pred_check
          %p430 = pneg %p244
        $region78: #{encode_sample.1} parent=71 // pred_check_branch
          %432 = sbr.rel (%p430) target = $region80
        $region79: #{encode_sample.1} parent=71 // pred_region
          %433 = dma.done [#allocation6], 16384
        $region80: #{encode_sample.1} parent=71 // pred_fallthru
          _
        %p434 = scmp.lt.s32.totalorder %s29, 1
        %s435 = scalar_select %p434, %s29, 1
        %s436 = smul.addr %s435, 4
        %s437 = smul.addr %s436, 4
        %s438 = scalar_lea.vmem %s0, %s437
        %p439 = pneg %p50
        %p440 = pneg %p47
        %p441 = scmp.lt.s32.totalorder %s29, 1
        %s442 = scalar_select %p441, %s29, 1
        %s443 = scalar_lea.vmem %s1, %s442
        %p444 = pneg %p76
        %p445 = pneg %p73
        %p446 = pneg %p97
        %p447 = pneg %p94
        %p448 = pneg %p118
        %p449 = pneg %p115
        %p450 = pneg %p139
        %p451 = pneg %p136
        %p452 = pneg %p160
        %p453 = pneg %p157
        %p454 = pneg %p181
        %p455 = pneg %p178
        %p456 = pneg %p202
        %p457 = pneg %p199
        %p458 = pneg %p223
        %p459 = pneg %p220
        %p460 = pneg %p244
        %p461 = pneg %p241
        %p462 = pneg %p265
        %p463 = pneg %p262
        %p464 = pneg %p286
        %p465 = pneg %p283
        %p466 = pneg %p307
        %p467 = pneg %p304
        %p468 = pneg %p333
        %p469 = pneg %p330
        %s470 = sand.u32 %s320, 1
        %s471 = scalar_lea.sflag [#allocation4], %s470
        %s472 = sand.u32 %s320, 1
        %s473 = scalar_lea.vmem [#allocation7], %s472
        %p474 = scmp.lt.s32.totalorder %s29, 1
        %s475 = scalar_select %p474, %s29, 1
        %s476 = smul.addr %s475, 4
        %s477 = smul.addr %s476, 4
        %s478 = scalar_lea.vmem %s0, %s477
        %p479 = scmp.lt.s32.totalorder %s29, 1
        %s480 = scalar_select %p479, %s29, 1
        %s481 = scalar_lea.vmem %s1, %s480
        %v483 = vld [vmem:[%s478] sm:$0xf]
        %v484 = vld [vmem:[%s478 + $0x4] sm:$0xf]
        %v485 = vld [vmem:[%s478 + $0x8] sm:$0xf]
        %v486 = vld [vmem:[%s478 + $0xc] sm:$0xf]
        %v487 = vld [vmem:[%s2] sm:$0xf]
        %v488 = vld [vmem:[%s2 + $0x4] sm:$0xf]
        %v491 = vunpack.c.l.b16 %v487
        %v492 = vunpack.c.l.b16 %v488
        %v493 = vpack.c.b16 %v492, %v491
        %v498 = vunpack.c.l.b16 %v483
        %v499 = vunpack.c.l.b16 %v484
        %v500 = vunpack.c.l.b16 %v485
        %v501 = vunpack.c.l.b16 %v486
        %v502 = vpack.c.b16 %v499, %v498
        %v503 = vpack.c.b16 %v501, %v500
        %vm506 = vcmask 261120
        %v508 = vsel %vm506, %v493, 0
        %510 = vmatprep.subr.bf16.mxu0 0
        %511 = vmatpush1.bf16.msra.mxu0 %v502
        %512 = vmatprep.subr.bf16.mxu0 0
        %513 = vmatpush1.bf16.msra.mxu0 %v503
        %514 = vmatprep.subr.bf16.mxu0 0
        %515 = vmatpush1.bf16.msra.mxu0 0
        %516 = vmatprep.subr.bf16.mxu0 0
        %517 = vmatpush1.bf16.msra.mxu0 0
        %518 = vmatprep.subr.bf16.mxu0 0
        %519 = vmatpush1.bf16.msra.mxu0 0
        %520 = vmatprep.subr.bf16.mxu0 0
        %521 = vmatpush1.bf16.msra.mxu0 0
        %522 = vmatprep.subr.bf16.mxu0 0
        %523 = vmatpush1.bf16.msra.mxu0 0
        %524 = vmatprep.subr.bf16.mxu0 0
        %525 = vmatpush1.bf16.msra.mxu0 0
        %526 = vmatprep.subr.bf16.mxu0 0
        %527 = vmatpush1.bf16.msra.mxu0 0
        %528 = vmatprep.subr.bf16.mxu0 0
        %529 = vmatpush1.bf16.msra.mxu0 0
        %530 = vmatprep.subr.bf16.mxu0 0
        %531 = vmatpush1.bf16.msra.mxu0 0
        %532 = vmatprep.subr.bf16.mxu0 0
        %533 = vmatpush1.bf16.msra.mxu0 0
        %534 = vmatprep.subr.bf16.mxu0 0
        %535 = vmatpush1.bf16.msra.mxu0 0
        %536 = vmatprep.subr.bf16.mxu0 0
        %537 = vmatpush1.bf16.msra.mxu0 0
        %538 = vmatprep.subr.bf16.mxu0 0
        %539 = vmatpush1.bf16.msra.mxu0 0
        %540 = vmatprep.subr.bf16.mxu0 0
        %541 = vmatpush1.bf16.msra.mxu0 0
        %542 = vmatprep.mubr.bf16.mxu0 0
        %543 = vmatmul.mubr.bf16.gmra.mrb[0].mxu0 %v508
        %v544 = vpop.f32.mrb[0].mxu0
        %v545 = vadd.f32 0.0, %v544
        %v546 = vpop.f32.mrb[0].mxu0
        %v547 = vpop.f32.mrb[0].mxu0
        %v548 = vadd.f32 0.0, %v547
        %v549 = vpop.f32.mrb[0].mxu0
        %550 = vdwg.mxu0
        %v551 = vpack.c.bf16 %v548, %v545
        %v552 = vld [vmem:[%s3] sm:$0xff]
        %v553 = vld [vmem:[%s3 + $0x8] sm:$0xff]
        %v554 = vld [vmem:[%s3 + $0x10] sm:$0xff]
        %v555 = vld [vmem:[%s3 + $0x18] sm:$0xff]
        %v556 = vld [vmem:[%s3 + $0x20] sm:$0xff]
        %v557 = vld [vmem:[%s3 + $0x28] sm:$0xff]
        %v558 = vld [vmem:[%s3 + $0x30] sm:$0xff]
        %v559 = vld [vmem:[%s3 + $0x38] sm:$0xff]
        %s560 = scalar_lea.vmem %s2, 8
        %v561 = vld [vmem:[%s560] sm:$0xf]
        %v562 = vld [vmem:[%s560 + $0x4] sm:$0xf]
        %v565 = vunpack.c.l.b16 %v561
        %v566 = vunpack.c.l.b16 %v562
        %v567 = vpack.c.b16 %v566, %v565
        %v569 = vsel %vm506, %v567, 0
        %571 = vmatprep.subr.bf16.mxu0 0
        %572 = vmatpush1.bf16.msra.mxu0 %v502
        %573 = vmatprep.subr.bf16.mxu0 0
        %574 = vmatpush1.bf16.msra.mxu0 %v503
        %575 = vmatprep.subr.bf16.mxu0 0
        %576 = vmatpush1.bf16.msra.mxu0 0
        %577 = vmatprep.subr.bf16.mxu0 0
        %578 = vmatpush1.bf16.msra.mxu0 0
        %579 = vmatprep.subr.bf16.mxu0 0
        %580 = vmatpush1.bf16.msra.mxu0 0
        %581 = vmatprep.subr.bf16.mxu0 0
        %582 = vmatpush1.bf16.msra.mxu0 0
        %583 = vmatprep.subr.bf16.mxu0 0
        %584 = vmatpush1.bf16.msra.mxu0 0
        %585 = vmatprep.subr.bf16.mxu0 0
        %586 = vmatpush1.bf16.msra.mxu0 0
        %587 = vmatprep.subr.bf16.mxu0 0
        %588 = vmatpush1.bf16.msra.mxu0 0
        %589 = vmatprep.subr.bf16.mxu0 0
        %590 = vmatpush1.bf16.msra.mxu0 0
        %591 = vmatprep.subr.bf16.mxu0 0
        %592 = vmatpush1.bf16.msra.mxu0 0
        %593 = vmatprep.subr.bf16.mxu0 0
        %594 = vmatpush1.bf16.msra.mxu0 0
        %595 = vmatprep.subr.bf16.mxu0 0
        %596 = vmatpush1.bf16.msra.mxu0 0
        %597 = vmatprep.subr.bf16.mxu0 0
        %598 = vmatpush1.bf16.msra.mxu0 0
        %599 = vmatprep.subr.bf16.mxu0 0
        %600 = vmatpush1.bf16.msra.mxu0 0
        %601 = vmatprep.subr.bf16.mxu0 0
        %602 = vmatpush1.bf16.msra.mxu0 0
        %603 = vmatprep.mubr.bf16.mxu0 0
        %604 = vmatmul.mubr.bf16.gmra.mrb[0].mxu0 %v569
        %v605 = vpop.f32.mrb[0].mxu0
        %v606 = vadd.f32 0.0, %v605
        %v607 = vpop.f32.mrb[0].mxu0
        %v608 = vpop.f32.mrb[0].mxu0
        %v609 = vadd.f32 0.0, %v608
        %v610 = vpop.f32.mrb[0].mxu0
        %611 = vdwg.mxu0
        %v612 = vpack.c.bf16 %v609, %v606
        %s613 = scalar_lea.vmem %s3, 64
        %v614 = vld [vmem:[%s613] sm:$0xff]
        %v615 = vld [vmem:[%s613 + $0x8] sm:$0xff]
        %v616 = vld [vmem:[%s613 + $0x10] sm:$0xff]
        %v617 = vld [vmem:[%s613 + $0x18] sm:$0xff]
        %v618 = vld [vmem:[%s613 + $0x20] sm:$0xff]
        %v619 = vld [vmem:[%s613 + $0x28] sm:$0xff]
        %v620 = vld [vmem:[%s613 + $0x30] sm:$0xff]
        %v621 = vld [vmem:[%s613 + $0x38] sm:$0xff]
        %v630 = vunpack.c.l.b16 %v614
        %v631 = vunpack.c.h.b16 %v614
        %v632 = vunpack.c.l.b16 %v615
        %v633 = vunpack.c.h.b16 %v615
        %v634 = vunpack.c.l.b16 %v616
        %v635 = vunpack.c.h.b16 %v616
        %v636 = vunpack.c.l.b16 %v617
        %v637 = vunpack.c.h.b16 %v617
        %v638 = vunpack.c.l.b16 %v618
        %v639 = vunpack.c.h.b16 %v618
        %v640 = vunpack.c.l.b16 %v619
        %v641 = vunpack.c.h.b16 %v619
        %v642 = vunpack.c.l.b16 %v620
        %v643 = vunpack.c.h.b16 %v620
        %v644 = vunpack.c.l.b16 %v621
        %v645 = vunpack.c.h.b16 %v621
        %v646 = vpack.c.b16 %v634, %v630
        %v647 = vpack.c.b16 %v635, %v631
        %v648 = vpack.c.b16 %v636, %v632
        %v649 = vpack.c.b16 %v637, %v633
        %v650 = vpack.c.b16 %v642, %v638
        %v651 = vpack.c.b16 %v643, %v639
        %v652 = vpack.c.b16 %v644, %v640
        %v653 = vpack.c.b16 %v645, %v641
        %v663 = vsel %vm506, %v612, 0
        %665 = vmatprep.subr.bf16.mxu0 %v647
        %666 = vmatpush1.bf16.msra.mxu0 %v646
        %667 = vmatprep.subr.bf16.mxu0 %v651
        %668 = vmatpush1.bf16.msra.mxu0 %v650
        %669 = vmatprep.subr.bf16.mxu0 0
        %670 = vmatpush1.bf16.msra.mxu0 0
        %671 = vmatprep.subr.bf16.mxu0 0
        %672 = vmatpush1.bf16.msra.mxu0 0
        %673 = vmatprep.subr.bf16.mxu0 0
        %674 = vmatpush1.bf16.msra.mxu0 0
        %675 = vmatprep.subr.bf16.mxu0 0
        %676 = vmatpush1.bf16.msra.mxu0 0
        %677 = vmatprep.subr.bf16.mxu0 0
        %678 = vmatpush1.bf16.msra.mxu0 0
        %679 = vmatprep.subr.bf16.mxu0 0
        %680 = vmatpush1.bf16.msra.mxu0 0
        %681 = vmatprep.subr.bf16.mxu0 0
        %682 = vmatpush1.bf16.msra.mxu0 0
        %683 = vmatprep.subr.bf16.mxu0 0
        %684 = vmatpush1.bf16.msra.mxu0 0
        %685 = vmatprep.subr.bf16.mxu0 0
        %686 = vmatpush1.bf16.msra.mxu0 0
        %687 = vmatprep.subr.bf16.mxu0 0
        %688 = vmatpush1.bf16.msra.mxu0 0
        %689 = vmatprep.subr.bf16.mxu0 0
        %690 = vmatpush1.bf16.msra.mxu0 0
        %691 = vmatprep.subr.bf16.mxu0 0
        %692 = vmatpush1.bf16.msra.mxu0 0
        %693 = vmatprep.subr.bf16.mxu0 0
        %694 = vmatpush1.bf16.msra.mxu0 0
        %695 = vmatprep.subr.bf16.mxu0 0
        %696 = vmatpush1.bf16.msra.mxu0 0
        %697 = vmatprep.mubr.bf16.mxu0 0
        %698 = vmatmul.mubr.bf16.gmra.mrb[0].mxu0 %v663
        %v699 = vpop.f32.mrb[0].mxu0
        %v700 = vadd.f32 0.0, %v699
        %v701 = vpop.f32.mrb[0].mxu0
        %v702 = vadd.f32 0.0, %v701
        %v703 = vpop.f32.mrb[0].mxu0
        %v704 = vadd.f32 0.0, %v703
        %v705 = vpop.f32.mrb[0].mxu0
        %v706 = vadd.f32 0.0, %v705
        %707 = vdwg.mxu0
        %708 = vmatprep.subr.bf16.mxu0 %v649
        %709 = vmatpush1.bf16.msra.mxu0 %v648
        %710 = vmatprep.subr.bf16.mxu0 %v653
        %711 = vmatpush1.bf16.msra.mxu0 %v652
        %712 = vmatprep.subr.bf16.mxu0 0
        %713 = vmatpush1.bf16.msra.mxu0 0
        %714 = vmatprep.subr.bf16.mxu0 0
        %715 = vmatpush1.bf16.msra.mxu0 0
        %716 = vmatprep.subr.bf16.mxu0 0
        %717 = vmatpush1.bf16.msra.mxu0 0
        %718 = vmatprep.subr.bf16.mxu0 0
        %719 = vmatpush1.bf16.msra.mxu0 0
        %720 = vmatprep.subr.bf16.mxu0 0
        %721 = vmatpush1.bf16.msra.mxu0 0
        %722 = vmatprep.subr.bf16.mxu0 0
        %723 = vmatpush1.bf16.msra.mxu0 0
        %724 = vmatprep.subr.bf16.mxu0 0
        %725 = vmatpush1.bf16.msra.mxu0 0
        %726 = vmatprep.subr.bf16.mxu0 0
        %727 = vmatpush1.bf16.msra.mxu0 0
        %728 = vmatprep.subr.bf16.mxu0 0
        %729 = vmatpush1.bf16.msra.mxu0 0
        %730 = vmatprep.subr.bf16.mxu0 0
        %731 = vmatpush1.bf16.msra.mxu0 0
        %732 = vmatprep.subr.bf16.mxu0 0
        %733 = vmatpush1.bf16.msra.mxu0 0
        %734 = vmatprep.subr.bf16.mxu0 0
        %735 = vmatpush1.bf16.msra.mxu0 0
        %736 = vmatprep.subr.bf16.mxu0 0
        %737 = vmatpush1.bf16.msra.mxu0 0
        %738 = vmatprep.subr.bf16.mxu0 0
        %739 = vmatpush1.bf16.msra.mxu0 0
        %740 = vmatprep.mubr.bf16.mxu0 0
        %741 = vmatmul.mubr.bf16.gmra.mrb[0].mxu0 %v663
        %v742 = vpop.f32.mrb[0].mxu0
        %v743 = vadd.f32 0.0, %v742
        %v744 = vpop.f32.mrb[0].mxu0
        %v745 = vadd.f32 0.0, %v744
        %v746 = vpop.f32.mrb[0].mxu0
        %v747 = vadd.f32 0.0, %v746
        %v748 = vpop.f32.mrb[0].mxu0
        %v749 = vadd.f32 0.0, %v748
        %750 = vdwg.mxu0
        %v759 = vunpack.c.l.b16 %v552
        %v760 = vunpack.c.h.b16 %v552
        %v761 = vunpack.c.l.b16 %v553
        %v762 = vunpack.c.h.b16 %v553
        %v763 = vunpack.c.l.b16 %v554
        %v764 = vunpack.c.h.b16 %v554
        %v765 = vunpack.c.l.b16 %v555
        %v766 = vunpack.c.h.b16 %v555
        %v767 = vunpack.c.l.b16 %v556
        %v768 = vunpack.c.h.b16 %v556
        %v769 = vunpack.c.l.b16 %v557
        %v770 = vunpack.c.h.b16 %v557
        %v771 = vunpack.c.l.b16 %v558
        %v772 = vunpack.c.h.b16 %v558
        %v773 = vunpack.c.l.b16 %v559
        %v774 = vunpack.c.h.b16 %v559
        %v775 = vpack.c.b16 %v763, %v759
        %v776 = vpack.c.b16 %v764, %v760
        %v777 = vpack.c.b16 %v765, %v761
        %v778 = vpack.c.b16 %v766, %v762
        %v779 = vpack.c.b16 %v771, %v767
        %v780 = vpack.c.b16 %v772, %v768
        %v781 = vpack.c.b16 %v773, %v769
        %v782 = vpack.c.b16 %v774, %v770
        %v792 = vsel %vm506, %v551, 0
        %794 = vmatprep.subr.bf16.mxu0 %v776
        %795 = vmatpush1.bf16.msra.mxu0 %v775
        %796 = vmatprep.subr.bf16.mxu0 %v780
        %797 = vmatpush1.bf16.msra.mxu0 %v779
        %798 = vmatprep.subr.bf16.mxu0 0
        %799 = vmatpush1.bf16.msra.mxu0 0
        %800 = vmatprep.subr.bf16.mxu0 0
        %801 = vmatpush1.bf16.msra.mxu0 0
        %802 = vmatprep.subr.bf16.mxu0 0
        %803 = vmatpush1.bf16.msra.mxu0 0
        %804 = vmatprep.subr.bf16.mxu0 0
        %805 = vmatpush1.bf16.msra.mxu0 0
        %806 = vmatprep.subr.bf16.mxu0 0
        %807 = vmatpush1.bf16.msra.mxu0 0
        %808 = vmatprep.subr.bf16.mxu0 0
        %809 = vmatpush1.bf16.msra.mxu0 0
        %810 = vmatprep.subr.bf16.mxu0 0
        %811 = vmatpush1.bf16.msra.mxu0 0
        %812 = vmatprep.subr.bf16.mxu0 0
        %813 = vmatpush1.bf16.msra.mxu0 0
        %814 = vmatprep.subr.bf16.mxu0 0
        %815 = vmatpush1.bf16.msra.mxu0 0
        %816 = vmatprep.subr.bf16.mxu0 0
        %817 = vmatpush1.bf16.msra.mxu0 0
        %818 = vmatprep.subr.bf16.mxu0 0
        %819 = vmatpush1.bf16.msra.mxu0 0
        %820 = vmatprep.subr.bf16.mxu0 0
        %821 = vmatpush1.bf16.msra.mxu0 0
        %822 = vmatprep.subr.bf16.mxu0 0
        %823 = vmatpush1.bf16.msra.mxu0 0
        %824 = vmatprep.subr.bf16.mxu0 0
        %825 = vmatpush1.bf16.msra.mxu0 0
        %826 = vmatprep.mubr.bf16.mxu0 0
        %827 = vmatmul.mubr.bf16.gmra.mrb[0].mxu0 %v792
        %v828 = vpop.f32.mrb[0].mxu0
        %v829 = vadd.f32 %v700, %v828
        %v830 = vpop.f32.mrb[0].mxu0
        %v831 = vadd.f32 %v702, %v830
        %v832 = vpop.f32.mrb[0].mxu0
        %v833 = vadd.f32 %v704, %v832
        %v834 = vpop.f32.mrb[0].mxu0
        %v835 = vadd.f32 %v706, %v834
        %836 = vdwg.mxu0
        %837 = vmatprep.subr.bf16.mxu0 %v778
        %838 = vmatpush1.bf16.msra.mxu0 %v777
        %839 = vmatprep.subr.bf16.mxu0 %v782
        %840 = vmatpush1.bf16.msra.mxu0 %v781
        %841 = vmatprep.subr.bf16.mxu0 0
        %842 = vmatpush1.bf16.msra.mxu0 0
        %843 = vmatprep.subr.bf16.mxu0 0
        %844 = vmatpush1.bf16.msra.mxu0 0
        %845 = vmatprep.subr.bf16.mxu0 0
        %846 = vmatpush1.bf16.msra.mxu0 0
        %847 = vmatprep.subr.bf16.mxu0 0
        %848 = vmatpush1.bf16.msra.mxu0 0
        %849 = vmatprep.subr.bf16.mxu0 0
        %850 = vmatpush1.bf16.msra.mxu0 0
        %851 = vmatprep.subr.bf16.mxu0 0
        %852 = vmatpush1.bf16.msra.mxu0 0
        %853 = vmatprep.subr.bf16.mxu0 0
        %854 = vmatpush1.bf16.msra.mxu0 0
        %855 = vmatprep.subr.bf16.mxu0 0
        %856 = vmatpush1.bf16.msra.mxu0 0
        %857 = vmatprep.subr.bf16.mxu0 0
        %858 = vmatpush1.bf16.msra.mxu0 0
        %859 = vmatprep.subr.bf16.mxu0 0
        %860 = vmatpush1.bf16.msra.mxu0 0
        %861 = vmatprep.subr.bf16.mxu0 0
        %862 = vmatpush1.bf16.msra.mxu0 0
        %863 = vmatprep.subr.bf16.mxu0 0
        %864 = vmatpush1.bf16.msra.mxu0 0
        %865 = vmatprep.subr.bf16.mxu0 0
        %866 = vmatpush1.bf16.msra.mxu0 0
        %867 = vmatprep.subr.bf16.mxu0 0
        %868 = vmatpush1.bf16.msra.mxu0 0
        %869 = vmatprep.mubr.bf16.mxu0 0
        %870 = vmatmul.mubr.bf16.gmra.mrb[0].mxu0 %v792
        %v871 = vpop.f32.mrb[0].mxu0
        %v872 = vadd.f32 %v743, %v871
        %v873 = vpop.f32.mrb[0].mxu0
        %v874 = vadd.f32 %v745, %v873
        %v875 = vpop.f32.mrb[0].mxu0
        %v876 = vadd.f32 %v747, %v875
        %v877 = vpop.f32.mrb[0].mxu0
        %v878 = vadd.f32 %v749, %v877
        %879 = vdwg.mxu0
        %s880 = scalar_lea.vmem %s2, 16
        %v881 = vld [vmem:[%s880] sm:$0xf]
        %v882 = vld [vmem:[%s880 + $0x4] sm:$0xf]
        %v885 = vunpack.c.l.b16 %v881
        %v886 = vunpack.c.l.b16 %v882
        %v887 = vpack.c.b16 %v886, %v885
        %v889 = vsel %vm506, %v887, 0
        %891 = vmatprep.subr.bf16.mxu0 0
        %892 = vmatpush1.bf16.msra.mxu0 %v502
        %893 = vmatprep.subr.bf16.mxu0 0
        %894 = vmatpush1.bf16.msra.mxu0 %v503
        %895 = vmatprep.subr.bf16.mxu0 0
        %896 = vmatpush1.bf16.msra.mxu0 0
        %897 = vmatprep.subr.bf16.mxu0 0
        %898 = vmatpush1.bf16.msra.mxu0 0
        %899 = vmatprep.subr.bf16.mxu0 0
        %900 = vmatpush1.bf16.msra.mxu0 0
        %901 = vmatprep.subr.bf16.mxu0 0
        %902 = vmatpush1.bf16.msra.mxu0 0
        %903 = vmatprep.subr.bf16.mxu0 0
        %904 = vmatpush1.bf16.msra.mxu0 0
        %905 = vmatprep.subr.bf16.mxu0 0
        %906 = vmatpush1.bf16.msra.mxu0 0
        %907 = vmatprep.subr.bf16.mxu0 0
        %908 = vmatpush1.bf16.msra.mxu0 0
        %909 = vmatprep.subr.bf16.mxu0 0
        %910 = vmatpush1.bf16.msra.mxu0 0
        %911 = vmatprep.subr.bf16.mxu0 0
        %912 = vmatpush1.bf16.msra.mxu0 0
        %913 = vmatprep.subr.bf16.mxu0 0
        %914 = vmatpush1.bf16.msra.mxu0 0
        %915 = vmatprep.subr.bf16.mxu0 0
        %916 = vmatpush1.bf16.msra.mxu0 0
        %917 = vmatprep.subr.bf16.mxu0 0
        %918 = vmatpush1.bf16.msra.mxu0 0
        %919 = vmatprep.subr.bf16.mxu0 0
        %920 = vmatpush1.bf16.msra.mxu0 0
        %921 = vmatprep.subr.bf16.mxu0 0
        %922 = vmatpush1.bf16.msra.mxu0 0
        %923 = vmatprep.mubr.bf16.mxu0 0
        %924 = vmatmul.mubr.bf16.gmra.mrb[0].mxu0 %v889
        %v925 = vpop.f32.mrb[0].mxu0
        %v926 = vadd.f32 0.0, %v925
        %v927 = vpop.f32.mrb[0].mxu0
        %v928 = vpop.f32.mrb[0].mxu0
        %v929 = vadd.f32 0.0, %v928
        %v930 = vpop.f32.mrb[0].mxu0
        %931 = vdwg.mxu0
        %v932 = vpack.c.bf16 %v929, %v926
        %s933 = scalar_lea.vmem %s3, 128
        %v934 = vld [vmem:[%s933] sm:$0xff]
        %v935 = vld [vmem:[%s933 + $0x8] sm:$0xff]
        %v936 = vld [vmem:[%s933 + $0x10] sm:$0xff]
        %v937 = vld [vmem:[%s933 + $0x18] sm:$0xff]
        %v938 = vld [vmem:[%s933 + $0x20] sm:$0xff]
        %v939 = vld [vmem:[%s933 + $0x28] sm:$0xff]
        %v940 = vld [vmem:[%s933 + $0x30] sm:$0xff]
        %v941 = vld [vmem:[%s933 + $0x38] sm:$0xff]
        %v950 = vunpack.c.l.b16 %v934
        %v951 = vunpack.c.h.b16 %v934
        %v952 = vunpack.c.l.b16 %v935
        %v953 = vunpack.c.h.b16 %v935
        %v954 = vunpack.c.l.b16 %v936
        %v955 = vunpack.c.h.b16 %v936
        %v956 = vunpack.c.l.b16 %v937
        %v957 = vunpack.c.h.b16 %v937
        %v958 = vunpack.c.l.b16 %v938
        %v959 = vunpack.c.h.b16 %v938
        %v960 = vunpack.c.l.b16 %v939
        %v961 = vunpack.c.h.b16 %v939
        %v962 = vunpack.c.l.b16 %v940
        %v963 = vunpack.c.h.b16 %v940
        %v964 = vunpack.c.l.b16 %v941
        %v965 = vunpack.c.h.b16 %v941
        %v966 = vpack.c.b16 %v954, %v950
        %v967 = vpack.c.b16 %v955, %v951
        %v968 = vpack.c.b16 %v956, %v952
        %v969 = vpack.c.b16 %v957, %v953
        %v970 = vpack.c.b16 %v962, %v958
        %v971 = vpack.c.b16 %v963, %v959
        %v972 = vpack.c.b16 %v964, %v960
        %v973 = vpack.c.b16 %v965, %v961
        %v983 = vsel %vm506, %v932, 0
        %985 = vmatprep.subr.bf16.mxu0 %v967
        %986 = vmatpush1.bf16.msra.mxu0 %v966
        %987 = vmatprep.subr.bf16.mxu0 %v971
        %988 = vmatpush1.bf16.msra.mxu0 %v970
        %989 = vmatprep.subr.bf16.mxu0 0
        %990 = vmatpush1.bf16.msra.mxu0 0
        %991 = vmatprep.subr.bf16.mxu0 0
        %992 = vmatpush1.bf16.msra.mxu0 0
        %993 = vmatprep.subr.bf16.mxu0 0
        %994 = vmatpush1.bf16.msra.mxu0 0
        %995 = vmatprep.subr.bf16.mxu0 0
        %996 = vmatpush1.bf16.msra.mxu0 0
        %997 = vmatprep.subr.bf16.mxu0 0
        %998 = vmatpush1.bf16.msra.mxu0 0
        %999 = vmatprep.subr.bf16.mxu0 0
        %1000 = vmatpush1.bf16.msra.mxu0 0
        %1001 = vmatprep.subr.bf16.mxu0 0
        %1002 = vmatpush1.bf16.msra.mxu0 0
        %1003 = vmatprep.subr.bf16.mxu0 0
        %1004 = vmatpush1.bf16.msra.mxu0 0
        %1005 = vmatprep.subr.bf16.mxu0 0
        %1006 = vmatpush1.bf16.msra.mxu0 0
        %1007 = vmatprep.subr.bf16.mxu0 0
        %1008 = vmatpush1.bf16.msra.mxu0 0
        %1009 = vmatprep.subr.bf16.mxu0 0
        %1010 = vmatpush1.bf16.msra.mxu0 0
        %1011 = vmatprep.subr.bf16.mxu0 0
        %1012 = vmatpush1.bf16.msra.mxu0 0
        %1013 = vmatprep.subr.bf16.mxu0 0
        %1014 = vmatpush1.bf16.msra.mxu0 0
        %1015 = vmatprep.subr.bf16.mxu0 0
        %1016 = vmatpush1.bf16.msra.mxu0 0
        %1017 = vmatprep.mubr.bf16.mxu0 0
        %1018 = vmatmul.mubr.bf16.gmra.mrb[0].mxu0 %v983
        %v1019 = vpop.f32.mrb[0].mxu0
        %v1020 = vadd.f32 0.0, %v1019
        %v1021 = vpop.f32.mrb[0].mxu0
        %v1022 = vadd.f32 0.0, %v1021
        %v1023 = vpop.f32.mrb[0].mxu0
        %v1024 = vadd.f32 0.0, %v1023
        %v1025 = vpop.f32.mrb[0].mxu0
        %v1026 = vadd.f32 0.0, %v1025
        %1027 = vdwg.mxu0
        %1028 = vmatprep.subr.bf16.mxu0 %v969
        %1029 = vmatpush1.bf16.msra.mxu0 %v968
        %1030 = vmatprep.subr.bf16.mxu0 %v973
        %1031 = vmatpush1.bf16.msra.mxu0 %v972
        %1032 = vmatprep.subr.bf16.mxu0 0
        %1033 = vmatpush1.bf16.msra.mxu0 0
        %1034 = vmatprep.subr.bf16.mxu0 0
        %1035 = vmatpush1.bf16.msra.mxu0 0
        %1036 = vmatprep.subr.bf16.mxu0 0
        %1037 = vmatpush1.bf16.msra.mxu0 0
        %1038 = vmatprep.subr.bf16.mxu0 0
        %1039 = vmatpush1.bf16.msra.mxu0 0
        %1040 = vmatprep.subr.bf16.mxu0 0
        %1041 = vmatpush1.bf16.msra.mxu0 0
        %1042 = vmatprep.subr.bf16.mxu0 0
        %1043 = vmatpush1.bf16.msra.mxu0 0
        %1044 = vmatprep.subr.bf16.mxu0 0
        %1045 = vmatpush1.bf16.msra.mxu0 0
        %1046 = vmatprep.subr.bf16.mxu0 0
        %1047 = vmatpush1.bf16.msra.mxu0 0
        %1048 = vmatprep.subr.bf16.mxu0 0
        %1049 = vmatpush1.bf16.msra.mxu0 0
        %1050 = vmatprep.subr.bf16.mxu0 0
        %1051 = vmatpush1.bf16.msra.mxu0 0
        %1052 = vmatprep.subr.bf16.mxu0 0
        %1053 = vmatpush1.bf16.msra.mxu0 0
        %1054 = vmatprep.subr.bf16.mxu0 0
        %1055 = vmatpush1.bf16.msra.mxu0 0
        %1056 = vmatprep.subr.bf16.mxu0 0
        %1057 = vmatpush1.bf16.msra.mxu0 0
        %1058 = vmatprep.subr.bf16.mxu0 0
        %1059 = vmatpush1.bf16.msra.mxu0 0
        %1060 = vmatprep.mubr.bf16.mxu0 0
        %1061 = vmatmul.mubr.bf16.gmra.mrb[0].mxu0 %v983
        %v1062 = vpop.f32.mrb[0].mxu0
        %v1063 = vadd.f32 0.0, %v1062
        %v1064 = vpop.f32.mrb[0].mxu0
        %v1065 = vadd.f32 0.0, %v1064
        %v1066 = vpop.f32.mrb[0].mxu0
        %v1067 = vadd.f32 0.0, %v1066
        %v1068 = vpop.f32.mrb[0].mxu0
        %v1069 = vadd.f32 0.0, %v1068
        %1070 = vdwg.mxu0
        %v1071 = vadd.f32 %v829, %v1020
        %v1072 = vadd.f32 %v831, %v1022
        %v1073 = vadd.f32 %v872, %v1063
        %v1074 = vadd.f32 %v874, %v1065
        %v1075 = vadd.f32 %v833, %v1024
        %v1076 = vadd.f32 %v835, %v1026
        %v1077 = vadd.f32 %v876, %v1067
        %v1078 = vadd.f32 %v878, %v1069
        %s1079 = scalar_lea.vmem %s2, 24
        %v1080 = vld [vmem:[%s1079] sm:$0xf]
        %v1081 = vld [vmem:[%s1079 + $0x4] sm:$0xf]
        %v1084 = vunpack.c.l.b16 %v1080
        %v1085 = vunpack.c.l.b16 %v1081
        %v1086 = vpack.c.b16 %v1085, %v1084
        %v1088 = vsel %vm506, %v1086, 0
        %1090 = vmatprep.subr.bf16.mxu0 0
        %1091 = vmatpush1.bf16.msra.mxu0 %v502
        %1092 = vmatprep.subr.bf16.mxu0 0
        %1093 = vmatpush1.bf16.msra.mxu0 %v503
        %1094 = vmatprep.subr.bf16.mxu0 0
        %1095 = vmatpush1.bf16.msra.mxu0 0
        %1096 = vmatprep.subr.bf16.mxu0 0
        %1097 = vmatpush1.bf16.msra.mxu0 0
        %1098 = vmatprep.subr.bf16.mxu0 0
        %1099 = vmatpush1.bf16.msra.mxu0 0
        %1100 = vmatprep.subr.bf16.mxu0 0
        %1101 = vmatpush1.bf16.msra.mxu0 0
        %1102 = vmatprep.subr.bf16.mxu0 0
        %1103 = vmatpush1.bf16.msra.mxu0 0
        %1104 = vmatprep.subr.bf16.mxu0 0
        %1105 = vmatpush1.bf16.msra.mxu0 0
        %1106 = vmatprep.subr.bf16.mxu0 0
        %1107 = vmatpush1.bf16.msra.mxu0 0
        %1108 = vmatprep.subr.bf16.mxu0 0
        %1109 = vmatpush1.bf16.msra.mxu0 0
        %1110 = vmatprep.subr.bf16.mxu0 0
        %1111 = vmatpush1.bf16.msra.mxu0 0
        %1112 = vmatprep.subr.bf16.mxu0 0
        %1113 = vmatpush1.bf16.msra.mxu0 0
        %1114 = vmatprep.subr.bf16.mxu0 0
        %1115 = vmatpush1.bf16.msra.mxu0 0
        %1116 = vmatprep.subr.bf16.mxu0 0
        %1117 = vmatpush1.bf16.msra.mxu0 0
        %1118 = vmatprep.subr.bf16.mxu0 0
        %1119 = vmatpush1.bf16.msra.mxu0 0
        %1120 = vmatprep.subr.bf16.mxu0 0
        %1121 = vmatpush1.bf16.msra.mxu0 0
        %1122 = vmatprep.mubr.bf16.mxu0 0
        %1123 = vmatmul.mubr.bf16.gmra.mrb[0].mxu0 %v1088
        %v1124 = vpop.f32.mrb[0].mxu0
        %v1125 = vadd.f32 0.0, %v1124
        %v1126 = vpop.f32.mrb[0].mxu0
        %v1127 = vpop.f32.mrb[0].mxu0
        %v1128 = vadd.f32 0.0, %v1127
        %v1129 = vpop.f32.mrb[0].mxu0
        %1130 = vdwg.mxu0
        %v1131 = vpack.c.bf16 %v1128, %v1125
        %s1132 = scalar_lea.vmem %s3, 192
        %v1133 = vld [vmem:[%s1132] sm:$0xff]
        %v1134 = vld [vmem:[%s1132 + $0x8] sm:$0xff]
        %v1135 = vld [vmem:[%s1132 + $0x10] sm:$0xff]
        %v1136 = vld [vmem:[%s1132 + $0x18] sm:$0xff]
        %v1137 = vld [vmem:[%s1132 + $0x20] sm:$0xff]
        %v1138 = vld [vmem:[%s1132 + $0x28] sm:$0xff]
        %v1139 = vld [vmem:[%s1132 + $0x30] sm:$0xff]
        %v1140 = vld [vmem:[%s1132 + $0x38] sm:$0xff]
        %v1149 = vunpack.c.l.b16 %v1133
        %v1150 = vunpack.c.h.b16 %v1133
        %v1151 = vunpack.c.l.b16 %v1134
        %v1152 = vunpack.c.h.b16 %v1134
        %v1153 = vunpack.c.l.b16 %v1135
        %v1154 = vunpack.c.h.b16 %v1135
        %v1155 = vunpack.c.l.b16 %v1136
        %v1156 = vunpack.c.h.b16 %v1136
        %v1157 = vunpack.c.l.b16 %v1137
        %v1158 = vunpack.c.h.b16 %v1137
        %v1159 = vunpack.c.l.b16 %v1138
        %v1160 = vunpack.c.h.b16 %v1138
        %v1161 = vunpack.c.l.b16 %v1139
        %v1162 = vunpack.c.h.b16 %v1139
        %v1163 = vunpack.c.l.b16 %v1140
        %v1164 = vunpack.c.h.b16 %v1140
        %v1165 = vpack.c.b16 %v1153, %v1149
        %v1166 = vpack.c.b16 %v1154, %v1150
        %v1167 = vpack.c.b16 %v1155, %v1151
        %v1168 = vpack.c.b16 %v1156, %v1152
        %v1169 = vpack.c.b16 %v1161, %v1157
        %v1170 = vpack.c.b16 %v1162, %v1158
        %v1171 = vpack.c.b16 %v1163, %v1159
        %v1172 = vpack.c.b16 %v1164, %v1160
        %v1182 = vsel %vm506, %v1131, 0
        %1184 = vmatprep.subr.bf16.mxu0 %v1166
        %1185 = vmatpush1.bf16.msra.mxu0 %v1165
        %1186 = vmatprep.subr.bf16.mxu0 %v1170
        %1187 = vmatpush1.bf16.msra.mxu0 %v1169
        %1188 = vmatprep.subr.bf16.mxu0 0
        %1189 = vmatpush1.bf16.msra.mxu0 0
        %1190 = vmatprep.subr.bf16.mxu0 0
        %1191 = vmatpush1.bf16.msra.mxu0 0
        %1192 = vmatprep.subr.bf16.mxu0 0
        %1193 = vmatpush1.bf16.msra.mxu0 0
        %1194 = vmatprep.subr.bf16.mxu0 0
        %1195 = vmatpush1.bf16.msra.mxu0 0
        %1196 = vmatprep.subr.bf16.mxu0 0
        %1197 = vmatpush1.bf16.msra.mxu0 0
        %1198 = vmatprep.subr.bf16.mxu0 0
        %1199 = vmatpush1.bf16.msra.mxu0 0
        %1200 = vmatprep.subr.bf16.mxu0 0
        %1201 = vmatpush1.bf16.msra.mxu0 0
        %1202 = vmatprep.subr.bf16.mxu0 0
        %1203 = vmatpush1.bf16.msra.mxu0 0
        %1204 = vmatprep.subr.bf16.mxu0 0
        %1205 = vmatpush1.bf16.msra.mxu0 0
        %1206 = vmatprep.subr.bf16.mxu0 0
        %1207 = vmatpush1.bf16.msra.mxu0 0
        %1208 = vmatprep.subr.bf16.mxu0 0
        %1209 = vmatpush1.bf16.msra.mxu0 0
        %1210 = vmatprep.subr.bf16.mxu0 0
        %1211 = vmatpush1.bf16.msra.mxu0 0
        %1212 = vmatprep.subr.bf16.mxu0 0
        %1213 = vmatpush1.bf16.msra.mxu0 0
        %1214 = vmatprep.subr.bf16.mxu0 0
        %1215 = vmatpush1.bf16.msra.mxu0 0
        %1216 = vmatprep.mubr.bf16.mxu0 0
        %1217 = vmatmul.mubr.bf16.gmra.mrb[0].mxu0 %v1182
        %v1218 = vpop.f32.mrb[0].mxu0
        %v1219 = vadd.f32 0.0, %v1218
        %v1220 = vpop.f32.mrb[0].mxu0
        %v1221 = vadd.f32 0.0, %v1220
        %v1222 = vpop.f32.mrb[0].mxu0
        %v1223 = vadd.f32 0.0, %v1222
        %v1224 = vpop.f32.mrb[0].mxu0
        %v1225 = vadd.f32 0.0, %v1224
        %1226 = vdwg.mxu0
        %1227 = vmatprep.subr.bf16.mxu0 %v1168
        %1228 = vmatpush1.bf16.msra.mxu0 %v1167
        %1229 = vmatprep.subr.bf16.mxu0 %v1172
        %1230 = vmatpush1.bf16.msra.mxu0 %v1171
        %1231 = vmatprep.subr.bf16.mxu0 0
        %1232 = vmatpush1.bf16.msra.mxu0 0
        %1233 = vmatprep.subr.bf16.mxu0 0
        %1234 = vmatpush1.bf16.msra.mxu0 0
        %1235 = vmatprep.subr.bf16.mxu0 0
        %1236 = vmatpush1.bf16.msra.mxu0 0
        %1237 = vmatprep.subr.bf16.mxu0 0
        %1238 = vmatpush1.bf16.msra.mxu0 0
        %1239 = vmatprep.subr.bf16.mxu0 0
        %1240 = vmatpush1.bf16.msra.mxu0 0
        %1241 = vmatprep.subr.bf16.mxu0 0
        %1242 = vmatpush1.bf16.msra.mxu0 0
        %1243 = vmatprep.subr.bf16.mxu0 0
        %1244 = vmatpush1.bf16.msra.mxu0 0
        %1245 = vmatprep.subr.bf16.mxu0 0
        %1246 = vmatpush1.bf16.msra.mxu0 0
        %1247 = vmatprep.subr.bf16.mxu0 0
        %1248 = vmatpush1.bf16.msra.mxu0 0
        %1249 = vmatprep.subr.bf16.mxu0 0
        %1250 = vmatpush1.bf16.msra.mxu0 0
        %1251 = vmatprep.subr.bf16.mxu0 0
        %1252 = vmatpush1.bf16.msra.mxu0 0
        %1253 = vmatprep.subr.bf16.mxu0 0
        %1254 = vmatpush1.bf16.msra.mxu0 0
        %1255 = vmatprep.subr.bf16.mxu0 0
        %1256 = vmatpush1.bf16.msra.mxu0 0
        %1257 = vmatprep.subr.bf16.mxu0 0
        %1258 = vmatpush1.bf16.msra.mxu0 0
        %1259 = vmatprep.mubr.bf16.mxu0 0
        %1260 = vmatmul.mubr.bf16.gmra.mrb[0].mxu0 %v1182
        %v1261 = vpop.f32.mrb[0].mxu0
        %v1262 = vadd.f32 0.0, %v1261
        %v1263 = vpop.f32.mrb[0].mxu0
        %v1264 = vadd.f32 0.0, %v1263
        %v1265 = vpop.f32.mrb[0].mxu0
        %v1266 = vadd.f32 0.0, %v1265
        %v1267 = vpop.f32.mrb[0].mxu0
        %v1268 = vadd.f32 0.0, %v1267
        %1269 = vdwg.mxu0
        %v1270 = vadd.f32 %v1071, %v1219
        %v1271 = vadd.f32 %v1072, %v1221
        %v1272 = vadd.f32 %v1073, %v1262
        %v1273 = vadd.f32 %v1074, %v1264
        %v1274 = vadd.f32 %v1075, %v1223
        %v1275 = vadd.f32 %v1076, %v1225
        %v1276 = vadd.f32 %v1077, %v1266
        %v1277 = vadd.f32 %v1078, %v1268
        %v1278 = vld [vmem:[%s4] sm:$0xf]
        %v1280 = vlaneseq
        %v1281 = vshrl.u32 %v1280, 7
        %v1282 = vsub.s32 0, %v1281
        %v1283 = vrot.slane %v1278, %v1282
        %v1284 = vlaneseq
        %v1285 = vshrl.u32 %v1284, 7
        %v1286 = vsub.s32 1, %v1285
        %v1287 = vrot.slane %v1278, %v1286
        %v1288 = vlaneseq
        %v1289 = vshrl.u32 %v1288, 7
        %v1290 = vsub.s32 2, %v1289
        %v1291 = vrot.slane %v1278, %v1290
        %v1292 = vlaneseq
        %v1293 = vshrl.u32 %v1292, 7
        %v1294 = vsub.s32 3, %v1293
        %v1295 = vrot.slane %v1278, %v1294
        %v1300 = vadd.f32 %v1270, %v1283
        %v1301 = vadd.f32 %v1271, %v1287
        %v1302 = vadd.f32 %v1272, %v1291
        %v1303 = vadd.f32 %v1273, %v1295
        %v1304 = vadd.f32 %v1274, %v1283
        %v1305 = vadd.f32 %v1275, %v1287
        %v1306 = vadd.f32 %v1276, %v1291
        %v1307 = vadd.f32 %v1277, %v1295
        %v1308 = vmax.f32 %v1300, 0.0
        %v1309 = vmax.f32 %v1301, 0.0
        %v1310 = vmax.f32 %v1302, 0.0
        %v1311 = vmax.f32 %v1303, 0.0
        %v1312 = vmax.f32 %v1304, 0.0
        %v1313 = vmax.f32 %v1305, 0.0
        %v1314 = vmax.f32 %v1306, 0.0
        %v1315 = vmax.f32 %v1307, 0.0
        %v1316 = vpack.c.bf16 %v1312, %v1308
        %v1317 = vpack.c.bf16 %v1313, %v1309
        %v1318 = vpack.c.bf16 %v1314, %v1310
        %v1319 = vpack.c.bf16 %v1315, %v1311
        %v1320 = vld [vmem:[%s5] sm:$0xf]
        %vm1321 = vcmask 130048
        %v1323 = vsel %vm1321, %v1320, 0
        %1325 = vmatprep.subr.bf16.mxu0 %v1317
        %1326 = vmatpush1.bf16.msra.mxu0 %v1316
        %1327 = vmatprep.subr.bf16.mxu0 0
        %1328 = vmatpush1.bf16.msra.mxu0 0
        %1329 = vmatprep.subr.bf16.mxu0 0
        %1330 = vmatpush1.bf16.msra.mxu0 0
        %1331 = vmatprep.subr.bf16.mxu0 0
        %1332 = vmatpush1.bf16.msra.mxu0 0
        %1333 = vmatprep.subr.bf16.mxu0 0
        %1334 = vmatpush1.bf16.msra.mxu0 0
        %1335 = vmatprep.subr.bf16.mxu0 0
        %1336 = vmatpush1.bf16.msra.mxu0 0
        %1337 = vmatprep.subr.bf16.mxu0 0
        %1338 = vmatpush1.bf16.msra.mxu0 0
        %1339 = vmatprep.subr.bf16.mxu0 0
        %1340 = vmatpush1.bf16.msra.mxu0 0
        %1341 = vmatprep.subr.bf16.mxu0 0
        %1342 = vmatpush1.bf16.msra.mxu0 0
        %1343 = vmatprep.subr.bf16.mxu0 0
        %1344 = vmatpush1.bf16.msra.mxu0 0
        %1345 = vmatprep.subr.bf16.mxu0 0
        %1346 = vmatpush1.bf16.msra.mxu0 0
        %1347 = vmatprep.subr.bf16.mxu0 0
        %1348 = vmatpush1.bf16.msra.mxu0 0
        %1349 = vmatprep.subr.bf16.mxu0 0
        %1350 = vmatpush1.bf16.msra.mxu0 0
        %1351 = vmatprep.subr.bf16.mxu0 0
        %1352 = vmatpush1.bf16.msra.mxu0 0
        %1353 = vmatprep.subr.bf16.mxu0 0
        %1354 = vmatpush1.bf16.msra.mxu0 0
        %1355 = vmatprep.subr.bf16.mxu0 0
        %1356 = vmatpush1.bf16.msra.mxu0 0
        %1357 = vmatprep.mubr.bf16.mxu0 0
        %1358 = vmatmul.mubr.bf16.gmra.mrb[0].mxu0 %v1323
        %v1359 = vpop.f32.mrb[0].mxu0
        %v1360 = vadd.f32 0.0, %v1359
        %v1361 = vpop.f32.mrb[0].mxu0
        %v1362 = vadd.f32 0.0, %v1361
        %v1363 = vpop.f32.mrb[0].mxu0
        %v1364 = vpop.f32.mrb[0].mxu0
        %1365 = vdwg.mxu0
        %1366 = vmatprep.subr.bf16.mxu0 %v1319
        %1367 = vmatpush1.bf16.msra.mxu0 %v1318
        %1368 = vmatprep.subr.bf16.mxu0 0
        %1369 = vmatpush1.bf16.msra.mxu0 0
        %1370 = vmatprep.subr.bf16.mxu0 0
        %1371 = vmatpush1.bf16.msra.mxu0 0
        %1372 = vmatprep.subr.bf16.mxu0 0
        %1373 = vmatpush1.bf16.msra.mxu0 0
        %1374 = vmatprep.subr.bf16.mxu0 0
        %1375 = vmatpush1.bf16.msra.mxu0 0
        %1376 = vmatprep.subr.bf16.mxu0 0
        %1377 = vmatpush1.bf16.msra.mxu0 0
        %1378 = vmatprep.subr.bf16.mxu0 0
        %1379 = vmatpush1.bf16.msra.mxu0 0
        %1380 = vmatprep.subr.bf16.mxu0 0
        %1381 = vmatpush1.bf16.msra.mxu0 0
        %1382 = vmatprep.subr.bf16.mxu0 0
        %1383 = vmatpush1.bf16.msra.mxu0 0
        %1384 = vmatprep.subr.bf16.mxu0 0
        %1385 = vmatpush1.bf16.msra.mxu0 0
        %1386 = vmatprep.subr.bf16.mxu0 0
        %1387 = vmatpush1.bf16.msra.mxu0 0
        %1388 = vmatprep.subr.bf16.mxu0 0
        %1389 = vmatpush1.bf16.msra.mxu0 0
        %1390 = vmatprep.subr.bf16.mxu0 0
        %1391 = vmatpush1.bf16.msra.mxu0 0
        %1392 = vmatprep.subr.bf16.mxu0 0
        %1393 = vmatpush1.bf16.msra.mxu0 0
        %1394 = vmatprep.subr.bf16.mxu0 0
        %1395 = vmatpush1.bf16.msra.mxu0 0
        %1396 = vmatprep.subr.bf16.mxu0 0
        %1397 = vmatpush1.bf16.msra.mxu0 0
        %1398 = vmatprep.mubr.bf16.mxu0 0
        %1399 = vmatmul.mubr.bf16.gmra.mrb[0].mxu0 %v1323
        %v1400 = vpop.f32.mrb[0].mxu0
        %v1401 = vadd.f32 0.0, %v1400
        %v1402 = vpop.f32.mrb[0].mxu0
        %v1403 = vadd.f32 0.0, %v1402
        %v1404 = vpop.f32.mrb[0].mxu0
        %v1405 = vpop.f32.mrb[0].mxu0
        %1406 = vdwg.mxu0
        %v1407 = vpack.c.bf16 %v1360, %v1360
        %v1408 = vpack.c.bf16 %v1362, %v1362
        %v1409 = vpack.c.bf16 %v1401, %v1401
        %v1410 = vpack.c.bf16 %v1403, %v1403
        %v1411 = vld [vmem:[#allocation2] sm:$0xff]
        %v1412 = vld [vmem:[#allocation2 + $0x8] sm:$0xff]
        %v1413 = vld [vmem:[#allocation2 + $0x10] sm:$0xff]
        %v1414 = vld [vmem:[#allocation2 + $0x18] sm:$0xff]
        %v1415 = vld [vmem:[#allocation2 + $0x20] sm:$0xff]
        %v1416 = vld [vmem:[#allocation2 + $0x28] sm:$0xff]
        %v1417 = vld [vmem:[#allocation2 + $0x30] sm:$0xff]
        %v1418 = vld [vmem:[#allocation2 + $0x38] sm:$0xff]
        %v1419 = vld [vmem:[#allocation2 + $0x40] sm:$0xff]
        %v1420 = vld [vmem:[#allocation2 + $0x48] sm:$0xff]
        %v1421 = vld [vmem:[#allocation2 + $0x50] sm:$0xff]
        %v1422 = vld [vmem:[#allocation2 + $0x58] sm:$0xff]
        %v1423 = vld [vmem:[#allocation2 + $0x60] sm:$0xff]
        %v1424 = vld [vmem:[#allocation2 + $0x68] sm:$0xff]
        %v1425 = vld [vmem:[#allocation2 + $0x70] sm:$0xff]
        %v1426 = vld [vmem:[#allocation2 + $0x78] sm:$0xff]
        %v1427 = vld [vmem:[#allocation2 + $0x80] sm:$0xff]
        %v1428 = vld [vmem:[#allocation2 + $0x88] sm:$0xff]
        %v1429 = vld [vmem:[#allocation2 + $0x90] sm:$0xff]
        %v1430 = vld [vmem:[#allocation2 + $0x98] sm:$0xff]
        %v1431 = vld [vmem:[#allocation2 + $0xa0] sm:$0xff]
        %v1432 = vld [vmem:[#allocation2 + $0xa8] sm:$0xff]
        %v1433 = vld [vmem:[#allocation2 + $0xb0] sm:$0xff]
        %v1434 = vld [vmem:[#allocation2 + $0xb8] sm:$0xff]
        %v1435 = vld [vmem:[#allocation2 + $0xc0] sm:$0xff]
        %v1436 = vld [vmem:[#allocation2 + $0xc8] sm:$0xff]
        %v1437 = vld [vmem:[#allocation2 + $0xd0] sm:$0xff]
        %v1438 = vld [vmem:[#allocation2 + $0xd8] sm:$0xff]
        %v1439 = vld [vmem:[#allocation2 + $0xe0] sm:$0xff]
        %v1440 = vld [vmem:[#allocation2 + $0xe8] sm:$0xff]
        %v1441 = vld [vmem:[#allocation2 + $0xf0] sm:$0xff]
        %v1442 = vld [vmem:[#allocation2 + $0xf8] sm:$0xff]
        %v1443 = vld [vmem:[#allocation2 + $0x100] sm:$0xff]
        %v1444 = vld [vmem:[#allocation2 + $0x108] sm:$0xff]
        %v1445 = vld [vmem:[#allocation2 + $0x110] sm:$0xff]
        %v1446 = vld [vmem:[#allocation2 + $0x118] sm:$0xff]
        %v1447 = vld [vmem:[#allocation2 + $0x120] sm:$0xff]
        %v1448 = vld [vmem:[#allocation2 + $0x128] sm:$0xff]
        %v1449 = vld [vmem:[#allocation2 + $0x130] sm:$0xff]
        %v1450 = vld [vmem:[#allocation2 + $0x138] sm:$0xff]
        %v1451 = vld [vmem:[#allocation2 + $0x140] sm:$0xff]
        %v1452 = vld [vmem:[#allocation2 + $0x148] sm:$0xff]
        %v1453 = vld [vmem:[#allocation2 + $0x150] sm:$0xff]
        %v1454 = vld [vmem:[#allocation2 + $0x158] sm:$0xff]
        %v1455 = vld [vmem:[#allocation2 + $0x160] sm:$0xff]
        %v1456 = vld [vmem:[#allocation2 + $0x168] sm:$0xff]
        %v1457 = vld [vmem:[#allocation2 + $0x170] sm:$0xff]
        %v1458 = vld [vmem:[#allocation2 + $0x178] sm:$0xff]
        %v1459 = vld [vmem:[#allocation2 + $0x180] sm:$0xff]
        %v1460 = vld [vmem:[#allocation2 + $0x188] sm:$0xff]
        %v1461 = vld [vmem:[#allocation2 + $0x190] sm:$0xff]
        %v1462 = vld [vmem:[#allocation2 + $0x198] sm:$0xff]
        %v1463 = vld [vmem:[#allocation2 + $0x1a0] sm:$0xff]
        %v1464 = vld [vmem:[#allocation2 + $0x1a8] sm:$0xff]
        %v1465 = vld [vmem:[#allocation2 + $0x1b0] sm:$0xff]
        %v1466 = vld [vmem:[#allocation2 + $0x1b8] sm:$0xff]
        %v1467 = vld [vmem:[#allocation2 + $0x1c0] sm:$0xff]
        %v1468 = vld [vmem:[#allocation2 + $0x1c8] sm:$0xff]
        %v1469 = vld [vmem:[#allocation2 + $0x1d0] sm:$0xff]
        %v1470 = vld [vmem:[#allocation2 + $0x1d8] sm:$0xff]
        %v1471 = vld [vmem:[#allocation2 + $0x1e0] sm:$0xff]
        %v1472 = vld [vmem:[#allocation2 + $0x1e8] sm:$0xff]
        %v1473 = vld [vmem:[#allocation2 + $0x1f0] sm:$0xff]
        %v1474 = vld [vmem:[#allocation2 + $0x1f8] sm:$0xff]
        %s1475 = scalar_lea.vmem %s5, 4
        %v1476 = vld [vmem:[%s1475] sm:$0xf]
        %v1478 = vsel %vm1321, %v1476, 0
        %1480 = vmatprep.subr.bf16.mxu0 %v1317
        %1481 = vmatpush1.bf16.msra.mxu0 %v1316
        %1482 = vmatprep.subr.bf16.mxu0 0
        %1483 = vmatpush1.bf16.msra.mxu0 0
        %1484 = vmatprep.subr.bf16.mxu0 0
        %1485 = vmatpush1.bf16.msra.mxu0 0
        %1486 = vmatprep.subr.bf16.mxu0 0
        %1487 = vmatpush1.bf16.msra.mxu0 0
        %1488 = vmatprep.subr.bf16.mxu0 0
        %1489 = vmatpush1.bf16.msra.mxu0 0
        %1490 = vmatprep.subr.bf16.mxu0 0
        %1491 = vmatpush1.bf16.msra.mxu0 0
        %1492 = vmatprep.subr.bf16.mxu0 0
        %1493 = vmatpush1.bf16.msra.mxu0 0
        %1494 = vmatprep.subr.bf16.mxu0 0
        %1495 = vmatpush1.bf16.msra.mxu0 0
        %1496 = vmatprep.subr.bf16.mxu0 0
        %1497 = vmatpush1.bf16.msra.mxu0 0
        %1498 = vmatprep.subr.bf16.mxu0 0
        %1499 = vmatpush1.bf16.msra.mxu0 0
        %1500 = vmatprep.subr.bf16.mxu0 0
        %1501 = vmatpush1.bf16.msra.mxu0 0
        %1502 = vmatprep.subr.bf16.mxu0 0
        %1503 = vmatpush1.bf16.msra.mxu0 0
        %1504 = vmatprep.subr.bf16.mxu0 0
        %1505 = vmatpush1.bf16.msra.mxu0 0
        %1506 = vmatprep.subr.bf16.mxu0 0
        %1507 = vmatpush1.bf16.msra.mxu0 0
        %1508 = vmatprep.subr.bf16.mxu0 0
        %1509 = vmatpush1.bf16.msra.mxu0 0
        %1510 = vmatprep.subr.bf16.mxu0 0
        %1511 = vmatpush1.bf16.msra.mxu0 0
        %1512 = vmatprep.mubr.bf16.mxu0 0
        %1513 = vmatmul.mubr.bf16.gmra.mrb[0].mxu0 %v1478
        %v1514 = vpop.f32.mrb[0].mxu0
        %v1515 = vadd.f32 0.0, %v1514
        %v1516 = vpop.f32.mrb[0].mxu0
        %v1517 = vadd.f32 0.0, %v1516
        %v1518 = vpop.f32.mrb[0].mxu0
        %v1519 = vpop.f32.mrb[0].mxu0
        %1520 = vdwg.mxu0
        %1521 = vmatprep.subr.bf16.mxu0 %v1319
        %1522 = vmatpush1.bf16.msra.mxu0 %v1318
        %1523 = vmatprep.subr.bf16.mxu0 0
        %1524 = vmatpush1.bf16.msra.mxu0 0
        %1525 = vmatprep.subr.bf16.mxu0 0
        %1526 = vmatpush1.bf16.msra.mxu0 0
        %1527 = vmatprep.subr.bf16.mxu0 0
        %1528 = vmatpush1.bf16.msra.mxu0 0
        %1529 = vmatprep.subr.bf16.mxu0 0
        %1530 = vmatpush1.bf16.msra.mxu0 0
        %1531 = vmatprep.subr.bf16.mxu0 0
        %1532 = vmatpush1.bf16.msra.mxu0 0
        %1533 = vmatprep.subr.bf16.mxu0 0
        %1534 = vmatpush1.bf16.msra.mxu0 0
        %1535 = vmatprep.subr.bf16.mxu0 0
        %1536 = vmatpush1.bf16.msra.mxu0 0
        %1537 = vmatprep.subr.bf16.mxu0 0
        %1538 = vmatpush1.bf16.msra.mxu0 0
        %1539 = vmatprep.subr.bf16.mxu0 0
        %1540 = vmatpush1.bf16.msra.mxu0 0
        %1541 = vmatprep.subr.bf16.mxu0 0
        %1542 = vmatpush1.bf16.msra.mxu0 0
        %1543 = vmatprep.subr.bf16.mxu0 0
        %1544 = vmatpush1.bf16.msra.mxu0 0
        %1545 = vmatprep.subr.bf16.mxu0 0
        %1546 = vmatpush1.bf16.msra.mxu0 0
        %1547 = vmatprep.subr.bf16.mxu0 0
        %1548 = vmatpush1.bf16.msra.mxu0 0
        %1549 = vmatprep.subr.bf16.mxu0 0
        %1550 = vmatpush1.bf16.msra.mxu0 0
        %1551 = vmatprep.subr.bf16.mxu0 0
        %1552 = vmatpush1.bf16.msra.mxu0 0
        %1553 = vmatprep.mubr.bf16.mxu0 0
        %1554 = vmatmul.mubr.bf16.gmra.mrb[0].mxu0 %v1478
        %v1555 = vpop.f32.mrb[0].mxu0
        %v1556 = vadd.f32 0.0, %v1555
        %v1557 = vpop.f32.mrb[0].mxu0
        %v1558 = vadd.f32 0.0, %v1557
        %v1559 = vpop.f32.mrb[0].mxu0
        %v1560 = vpop.f32.mrb[0].mxu0
        %1561 = vdwg.mxu0
        %v1562 = vpack.c.bf16 %v1515, %v1515
        %v1563 = vpack.c.bf16 %v1517, %v1517
        %v1564 = vpack.c.bf16 %v1556, %v1556
        %v1565 = vpack.c.bf16 %v1558, %v1558
        %s1566 = scalar_lea.vmem [#allocation2], 512
        %v1567 = vld [vmem:[%s1566] sm:$0xff]
        %v1568 = vld [vmem:[%s1566 + $0x8] sm:$0xff]
        %v1569 = vld [vmem:[%s1566 + $0x10] sm:$0xff]
        %v1570 = vld [vmem:[%s1566 + $0x18] sm:$0xff]
        %v1571 = vld [vmem:[%s1566 + $0x20] sm:$0xff]
        %v1572 = vld [vmem:[%s1566 + $0x28] sm:$0xff]
        %v1573 = vld [vmem:[%s1566 + $0x30] sm:$0xff]
        %v1574 = vld [vmem:[%s1566 + $0x38] sm:$0xff]
        %v1575 = vld [vmem:[%s1566 + $0x40] sm:$0xff]
        %v1576 = vld [vmem:[%s1566 + $0x48] sm:$0xff]
        %v1577 = vld [vmem:[%s1566 + $0x50] sm:$0xff]
        %v1578 = vld [vmem:[%s1566 + $0x58] sm:$0xff]
        %v1579 = vld [vmem:[%s1566 + $0x60] sm:$0xff]
        %v1580 = vld [vmem:[%s1566 + $0x68] sm:$0xff]
        %v1581 = vld [vmem:[%s1566 + $0x70] sm:$0xff]
        %v1582 = vld [vmem:[%s1566 + $0x78] sm:$0xff]
        %v1583 = vld [vmem:[%s1566 + $0x80] sm:$0xff]
        %v1584 = vld [vmem:[%s1566 + $0x88] sm:$0xff]
        %v1585 = vld [vmem:[%s1566 + $0x90] sm:$0xff]
        %v1586 = vld [vmem:[%s1566 + $0x98] sm:$0xff]
        %v1587 = vld [vmem:[%s1566 + $0xa0] sm:$0xff]
        %v1588 = vld [vmem:[%s1566 + $0xa8] sm:$0xff]
        %v1589 = vld [vmem:[%s1566 + $0xb0] sm:$0xff]
        %v1590 = vld [vmem:[%s1566 + $0xb8] sm:$0xff]
        %v1591 = vld [vmem:[%s1566 + $0xc0] sm:$0xff]
        %v1592 = vld [vmem:[%s1566 + $0xc8] sm:$0xff]
        %v1593 = vld [vmem:[%s1566 + $0xd0] sm:$0xff]
        %v1594 = vld [vmem:[%s1566 + $0xd8] sm:$0xff]
        %v1595 = vld [vmem:[%s1566 + $0xe0] sm:$0xff]
        %v1596 = vld [vmem:[%s1566 + $0xe8] sm:$0xff]
        %v1597 = vld [vmem:[%s1566 + $0xf0] sm:$0xff]
        %v1598 = vld [vmem:[%s1566 + $0xf8] sm:$0xff]
        %v1599 = vld [vmem:[%s1566 + $0x100] sm:$0xff]
        %v1600 = vld [vmem:[%s1566 + $0x108] sm:$0xff]
        %v1601 = vld [vmem:[%s1566 + $0x110] sm:$0xff]
        %v1602 = vld [vmem:[%s1566 + $0x118] sm:$0xff]
        %v1603 = vld [vmem:[%s1566 + $0x120] sm:$0xff]
        %v1604 = vld [vmem:[%s1566 + $0x128] sm:$0xff]
        %v1605 = vld [vmem:[%s1566 + $0x130] sm:$0xff]
        %v1606 = vld [vmem:[%s1566 + $0x138] sm:$0xff]
        %v1607 = vld [vmem:[%s1566 + $0x140] sm:$0xff]
        %v1608 = vld [vmem:[%s1566 + $0x148] sm:$0xff]
        %v1609 = vld [vmem:[%s1566 + $0x150] sm:$0xff]
        %v1610 = vld [vmem:[%s1566 + $0x158] sm:$0xff]
        %v1611 = vld [vmem:[%s1566 + $0x160] sm:$0xff]
        %v1612 = vld [vmem:[%s1566 + $0x168] sm:$0xff]
        %v1613 = vld [vmem:[%s1566 + $0x170] sm:$0xff]
        %v1614 = vld [vmem:[%s1566 + $0x178] sm:$0xff]
        %v1615 = vld [vmem:[%s1566 + $0x180] sm:$0xff]
        %v1616 = vld [vmem:[%s1566 + $0x188] sm:$0xff]
        %v1617 = vld [vmem:[%s1566 + $0x190] sm:$0xff]
        %v1618 = vld [vmem:[%s1566 + $0x198] sm:$0xff]
        %v1619 = vld [vmem:[%s1566 + $0x1a0] sm:$0xff]
        %v1620 = vld [vmem:[%s1566 + $0x1a8] sm:$0xff]
        %v1621 = vld [vmem:[%s1566 + $0x1b0] sm:$0xff]
        %v1622 = vld [vmem:[%s1566 + $0x1b8] sm:$0xff]
        %v1623 = vld [vmem:[%s1566 + $0x1c0] sm:$0xff]
        %v1624 = vld [vmem:[%s1566 + $0x1c8] sm:$0xff]
        %v1625 = vld [vmem:[%s1566 + $0x1d0] sm:$0xff]
        %v1626 = vld [vmem:[%s1566 + $0x1d8] sm:$0xff]
        %v1627 = vld [vmem:[%s1566 + $0x1e0] sm:$0xff]
        %v1628 = vld [vmem:[%s1566 + $0x1e8] sm:$0xff]
        %v1629 = vld [vmem:[%s1566 + $0x1f0] sm:$0xff]
        %v1630 = vld [vmem:[%s1566 + $0x1f8] sm:$0xff]
        %v1695 = vunpack.c.l.b16 %v1567
        %v1696 = vunpack.c.h.b16 %v1567
        %v1697 = vunpack.c.l.b16 %v1568
        %v1698 = vunpack.c.h.b16 %v1568
        %v1699 = vunpack.c.l.b16 %v1569
        %v1700 = vunpack.c.h.b16 %v1569
        %v1701 = vunpack.c.l.b16 %v1570
        %v1702 = vunpack.c.h.b16 %v1570
        %v1703 = vunpack.c.l.b16 %v1571
        %v1704 = vunpack.c.h.b16 %v1571
        %v1705 = vunpack.c.l.b16 %v1572
        %v1706 = vunpack.c.h.b16 %v1572
        %v1707 = vunpack.c.l.b16 %v1573
        %v1708 = vunpack.c.h.b16 %v1573
        %v1709 = vunpack.c.l.b16 %v1574
        %v1710 = vunpack.c.h.b16 %v1574
        %v1711 = vunpack.c.l.b16 %v1575
        %v1712 = vunpack.c.h.b16 %v1575
        %v1713 = vunpack.c.l.b16 %v1576
        %v1714 = vunpack.c.h.b16 %v1576
        %v1715 = vunpack.c.l.b16 %v1577
        %v1716 = vunpack.c.h.b16 %v1577
        %v1717 = vunpack.c.l.b16 %v1578
        %v1718 = vunpack.c.h.b16 %v1578
        %v1719 = vunpack.c.l.b16 %v1579
        %v1720 = vunpack.c.h.b16 %v1579
        %v1721 = vunpack.c.l.b16 %v1580
        %v1722 = vunpack.c.h.b16 %v1580
        %v1723 = vunpack.c.l.b16 %v1581
        %v1724 = vunpack.c.h.b16 %v1581
        %v1725 = vunpack.c.l.b16 %v1582
        %v1726 = vunpack.c.h.b16 %v1582
        %v1727 = vunpack.c.l.b16 %v1583
        %v1728 = vunpack.c.h.b16 %v1583
        %v1729 = vunpack.c.l.b16 %v1584
        %v1730 = vunpack.c.h.b16 %v1584
        %v1731 = vunpack.c.l.b16 %v1585
        %v1732 = vunpack.c.h.b16 %v1585
        %v1733 = vunpack.c.l.b16 %v1586
        %v1734 = vunpack.c.h.b16 %v1586
        %v1735 = vunpack.c.l.b16 %v1587
        %v1736 = vunpack.c.h.b16 %v1587
        %v1737 = vunpack.c.l.b16 %v1588
        %v1738 = vunpack.c.h.b16 %v1588
        %v1739 = vunpack.c.l.b16 %v1589
        %v1740 = vunpack.c.h.b16 %v1589
        %v1741 = vunpack.c.l.b16 %v1590
        %v1742 = vunpack.c.h.b16 %v1590
        %v1743 = vunpack.c.l.b16 %v1591
        %v1744 = vunpack.c.h.b16 %v1591
        %v1745 = vunpack.c.l.b16 %v1592
        %v1746 = vunpack.c.h.b16 %v1592
        %v1747 = vunpack.c.l.b16 %v1593
        %v1748 = vunpack.c.h.b16 %v1593
        %v1749 = vunpack.c.l.b16 %v1594
        %v1750 = vunpack.c.h.b16 %v1594
        %v1751 = vunpack.c.l.b16 %v1595
        %v1752 = vunpack.c.h.b16 %v1595
        %v1753 = vunpack.c.l.b16 %v1596
        %v1754 = vunpack.c.h.b16 %v1596
        %v1755 = vunpack.c.l.b16 %v1597
        %v1756 = vunpack.c.h.b16 %v1597
        %v1757 = vunpack.c.l.b16 %v1598
        %v1758 = vunpack.c.h.b16 %v1598
        %v1759 = vunpack.c.l.b16 %v1599
        %v1760 = vunpack.c.h.b16 %v1599
        %v1761 = vunpack.c.l.b16 %v1600
        %v1762 = vunpack.c.h.b16 %v1600
        %v1763 = vunpack.c.l.b16 %v1601
        %v1764 = vunpack.c.h.b16 %v1601
        %v1765 = vunpack.c.l.b16 %v1602
        %v1766 = vunpack.c.h.b16 %v1602
        %v1767 = vunpack.c.l.b16 %v1603
        %v1768 = vunpack.c.h.b16 %v1603
        %v1769 = vunpack.c.l.b16 %v1604
        %v1770 = vunpack.c.h.b16 %v1604
        %v1771 = vunpack.c.l.b16 %v1605
        %v1772 = vunpack.c.h.b16 %v1605
        %v1773 = vunpack.c.l.b16 %v1606
        %v1774 = vunpack.c.h.b16 %v1606
        %v1775 = vunpack.c.l.b16 %v1607
        %v1776 = vunpack.c.h.b16 %v1607
        %v1777 = vunpack.c.l.b16 %v1608
        %v1778 = vunpack.c.h.b16 %v1608
        %v1779 = vunpack.c.l.b16 %v1609
        %v1780 = vunpack.c.h.b16 %v1609
        %v1781 = vunpack.c.l.b16 %v1610
        %v1782 = vunpack.c.h.b16 %v1610
        %v1783 = vunpack.c.l.b16 %v1611
        %v1784 = vunpack.c.h.b16 %v1611
        %v1785 = vunpack.c.l.b16 %v1612
        %v1786 = vunpack.c.h.b16 %v1612
        %v1787 = vunpack.c.l.b16 %v1613
        %v1788 = vunpack.c.h.b16 %v1613
        %v1789 = vunpack.c.l.b16 %v1614
        %v1790 = vunpack.c.h.b16 %v1614
        %v1791 = vunpack.c.l.b16 %v1615
        %v1792 = vunpack.c.h.b16 %v1615
        %v1793 = vunpack.c.l.b16 %v1616
        %v1794 = vunpack.c.h.b16 %v1616
        %v1795 = vunpack.c.l.b16 %v1617
        %v1796 = vunpack.c.h.b16 %v1617
        %v1797 = vunpack.c.l.b16 %v1618
        %v1798 = vunpack.c.h.b16 %v1618
        %v1799 = vunpack.c.l.b16 %v1619
        %v1800 = vunpack.c.h.b16 %v1619
        %v1801 = vunpack.c.l.b16 %v1620
        %v1802 = vunpack.c.h.b16 %v1620
        %v1803 = vunpack.c.l.b16 %v1621
        %v1804 = vunpack.c.h.b16 %v1621
        %v1805 = vunpack.c.l.b16 %v1622
        %v1806 = vunpack.c.h.b16 %v1622
        %v1807 = vunpack.c.l.b16 %v1623
        %v1808 = vunpack.c.h.b16 %v1623
        %v1809 = vunpack.c.l.b16 %v1624
        %v1810 = vunpack.c.h.b16 %v1624
        %v1811 = vunpack.c.l.b16 %v1625
        %v1812 = vunpack.c.h.b16 %v1625
        %v1813 = vunpack.c.l.b16 %v1626
        %v1814 = vunpack.c.h.b16 %v1626
        %v1815 = vunpack.c.l.b16 %v1627
        %v1816 = vunpack.c.h.b16 %v1627
        %v1817 = vunpack.c.l.b16 %v1628
        %v1818 = vunpack.c.h.b16 %v1628
        %v1819 = vunpack.c.l.b16 %v1629
        %v1820 = vunpack.c.h.b16 %v1629
        %v1821 = vunpack.c.l.b16 %v1630
        %v1822 = vunpack.c.h.b16 %v1630
        %v1823 = vpack.c.b16 %v1697, %v1695
        %v1824 = vpack.c.b16 %v1698, %v1696
        %v1825 = vpack.c.b16 %v1701, %v1699
        %v1826 = vpack.c.b16 %v1702, %v1700
        %v1827 = vpack.c.b16 %v1705, %v1703
        %v1828 = vpack.c.b16 %v1706, %v1704
        %v1829 = vpack.c.b16 %v1709, %v1707
        %v1830 = vpack.c.b16 %v1710, %v1708
        %v1831 = vpack.c.b16 %v1713, %v1711
        %v1832 = vpack.c.b16 %v1714, %v1712
        %v1833 = vpack.c.b16 %v1717, %v1715
        %v1834 = vpack.c.b16 %v1718, %v1716
        %v1835 = vpack.c.b16 %v1721, %v1719
        %v1836 = vpack.c.b16 %v1722, %v1720
        %v1837 = vpack.c.b16 %v1725, %v1723
        %v1838 = vpack.c.b16 %v1726, %v1724
        %v1839 = vpack.c.b16 %v1729, %v1727
        %v1840 = vpack.c.b16 %v1730, %v1728
        %v1841 = vpack.c.b16 %v1733, %v1731
        %v1842 = vpack.c.b16 %v1734, %v1732
        %v1843 = vpack.c.b16 %v1737, %v1735
        %v1844 = vpack.c.b16 %v1738, %v1736
        %v1845 = vpack.c.b16 %v1741, %v1739
        %v1846 = vpack.c.b16 %v1742, %v1740
        %v1847 = vpack.c.b16 %v1745, %v1743
        %v1848 = vpack.c.b16 %v1746, %v1744
        %v1849 = vpack.c.b16 %v1749, %v1747
        %v1850 = vpack.c.b16 %v1750, %v1748
        %v1851 = vpack.c.b16 %v1753, %v1751
        %v1852 = vpack.c.b16 %v1754, %v1752
        %v1853 = vpack.c.b16 %v1757, %v1755
        %v1854 = vpack.c.b16 %v1758, %v1756
        %v1855 = vpack.c.b16 %v1761, %v1759
        %v1856 = vpack.c.b16 %v1762, %v1760
        %v1857 = vpack.c.b16 %v1765, %v1763
        %v1858 = vpack.c.b16 %v1766, %v1764
        %v1859 = vpack.c.b16 %v1769, %v1767
        %v1860 = vpack.c.b16 %v1770, %v1768
        %v1861 = vpack.c.b16 %v1773, %v1771
        %v1862 = vpack.c.b16 %v1774, %v1772
        %v1863 = vpack.c.b16 %v1777, %v1775
        %v1864 = vpack.c.b16 %v1778, %v1776
        %v1865 = vpack.c.b16 %v1781, %v1779
        %v1866 = vpack.c.b16 %v1782, %v1780
        %v1867 = vpack.c.b16 %v1785, %v1783
        %v1868 = vpack.c.b16 %v1786, %v1784
        %v1869 = vpack.c.b16 %v1789, %v1787
        %v1870 = vpack.c.b16 %v1790, %v1788
        %v1871 = vpack.c.b16 %v1793, %v1791
        %v1872 = vpack.c.b16 %v1794, %v1792
        %v1873 = vpack.c.b16 %v1797, %v1795
        %v1874 = vpack.c.b16 %v1798, %v1796
        %v1875 = vpack.c.b16 %v1801, %v1799
        %v1876 = vpack.c.b16 %v1802, %v1800
        %v1877 = vpack.c.b16 %v1805, %v1803
        %v1878 = vpack.c.b16 %v1806, %v1804
        %v1879 = vpack.c.b16 %v1809, %v1807
        %v1880 = vpack.c.b16 %v1810, %v1808
        %v1881 = vpack.c.b16 %v1813, %v1811
        %v1882 = vpack.c.b16 %v1814, %v1812
        %v1883 = vpack.c.b16 %v1817, %v1815
        %v1884 = vpack.c.b16 %v1818, %v1816
        %v1885 = vpack.c.b16 %v1821, %v1819
        %v1886 = vpack.c.b16 %v1822, %v1820
        %1951 = vmatprep.subr.bf16.mxu0 %v1824
        %1952 = vmatpush1.bf16.msra.mxu0 %v1823
        %1953 = vmatprep.subr.bf16.mxu0 %v1826
        %1954 = vmatpush1.bf16.msra.mxu0 %v1825
        %1955 = vmatprep.subr.bf16.mxu0 %v1828
        %1956 = vmatpush1.bf16.msra.mxu0 %v1827
        %1957 = vmatprep.subr.bf16.mxu0 %v1830
        %1958 = vmatpush1.bf16.msra.mxu0 %v1829
        %1959 = vmatprep.subr.bf16.mxu0 %v1832
        %1960 = vmatpush1.bf16.msra.mxu0 %v1831
        %1961 = vmatprep.subr.bf16.mxu0 %v1834
        %1962 = vmatpush1.bf16.msra.mxu0 %v1833
        %1963 = vmatprep.subr.bf16.mxu0 %v1836
        %1964 = vmatpush1.bf16.msra.mxu0 %v1835
        %1965 = vmatprep.subr.bf16.mxu0 %v1838
        %1966 = vmatpush1.bf16.msra.mxu0 %v1837
        %1967 = vmatprep.subr.bf16.mxu0 %v1840
        %1968 = vmatpush1.bf16.msra.mxu0 %v1839
        %1969 = vmatprep.subr.bf16.mxu0 %v1842
        %1970 = vmatpush1.bf16.msra.mxu0 %v1841
        %1971 = vmatprep.subr.bf16.mxu0 %v1844
        %1972 = vmatpush1.bf16.msra.mxu0 %v1843
        %1973 = vmatprep.subr.bf16.mxu0 %v1846
        %1974 = vmatpush1.bf16.msra.mxu0 %v1845
        %1975 = vmatprep.subr.bf16.mxu0 %v1848
        %1976 = vmatpush1.bf16.msra.mxu0 %v1847
        %1977 = vmatprep.subr.bf16.mxu0 %v1850
        %1978 = vmatpush1.bf16.msra.mxu0 %v1849
        %1979 = vmatprep.subr.bf16.mxu0 %v1852
        %1980 = vmatpush1.bf16.msra.mxu0 %v1851
        %1981 = vmatprep.subr.bf16.mxu0 %v1854
        %1982 = vmatpush1.bf16.msra.mxu0 %v1853
        %1983 = vmatprep.mubr.bf16.mxu0 %v1563
        %1984 = vmatmul.mubr.bf16.gmra.mrb[0].mxu0 %v1562
        %v1985 = vpop.f32.mrb[0].mxu0
        %v1986 = vadd.f32 0.0, %v1985
        %v1987 = vpop.f32.mrb[0].mxu0
        %v1988 = vadd.f32 0.0, %v1987
        %v1989 = vpop.f32.mrb[0].mxu0
        %v1990 = vpop.f32.mrb[0].mxu0
        %1991 = vdwg.mxu0
        %1992 = vmatprep.subr.bf16.mxu0 %v1856
        %1993 = vmatpush1.bf16.msra.mxu0 %v1855
        %1994 = vmatprep.subr.bf16.mxu0 %v1858
        %1995 = vmatpush1.bf16.msra.mxu0 %v1857
        %1996 = vmatprep.subr.bf16.mxu0 %v1860
        %1997 = vmatpush1.bf16.msra.mxu0 %v1859
        %1998 = vmatprep.subr.bf16.mxu0 %v1862
        %1999 = vmatpush1.bf16.msra.mxu0 %v1861
        %2000 = vmatprep.subr.bf16.mxu0 %v1864
        %2001 = vmatpush1.bf16.msra.mxu0 %v1863
        %2002 = vmatprep.subr.bf16.mxu0 %v1866
        %2003 = vmatpush1.bf16.msra.mxu0 %v1865
        %2004 = vmatprep.subr.bf16.mxu0 %v1868
        %2005 = vmatpush1.bf16.msra.mxu0 %v1867
        %2006 = vmatprep.subr.bf16.mxu0 %v1870
        %2007 = vmatpush1.bf16.msra.mxu0 %v1869
        %2008 = vmatprep.subr.bf16.mxu0 %v1872
        %2009 = vmatpush1.bf16.msra.mxu0 %v1871
        %2010 = vmatprep.subr.bf16.mxu0 %v1874
        %2011 = vmatpush1.bf16.msra.mxu0 %v1873
        %2012 = vmatprep.subr.bf16.mxu0 %v1876
        %2013 = vmatpush1.bf16.msra.mxu0 %v1875
        %2014 = vmatprep.subr.bf16.mxu0 %v1878
        %2015 = vmatpush1.bf16.msra.mxu0 %v1877
        %2016 = vmatprep.subr.bf16.mxu0 %v1880
        %2017 = vmatpush1.bf16.msra.mxu0 %v1879
        %2018 = vmatprep.subr.bf16.mxu0 %v1882
        %2019 = vmatpush1.bf16.msra.mxu0 %v1881
        %2020 = vmatprep.subr.bf16.mxu0 %v1884
        %2021 = vmatpush1.bf16.msra.mxu0 %v1883
        %2022 = vmatprep.subr.bf16.mxu0 %v1886
        %2023 = vmatpush1.bf16.msra.mxu0 %v1885
        %2024 = vmatprep.mubr.bf16.mxu0 %v1565
        %2025 = vmatmul.mubr.bf16.gmra.mrb[0].mxu0 %v1564
        %v2026 = vpop.f32.mrb[0].mxu0
        %v2027 = vadd.f32 %v1986, %v2026
        %v2028 = vpop.f32.mrb[0].mxu0
        %v2029 = vadd.f32 %v1988, %v2028
        %v2030 = vpop.f32.mrb[0].mxu0
        %v2031 = vpop.f32.mrb[0].mxu0
        %2032 = vdwg.mxu0
        %v2097 = vunpack.c.l.b16 %v1411
        %v2098 = vunpack.c.h.b16 %v1411
        %v2099 = vunpack.c.l.b16 %v1412
        %v2100 = vunpack.c.h.b16 %v1412
        %v2101 = vunpack.c.l.b16 %v1413
        %v2102 = vunpack.c.h.b16 %v1413
        %v2103 = vunpack.c.l.b16 %v1414
        %v2104 = vunpack.c.h.b16 %v1414
        %v2105 = vunpack.c.l.b16 %v1415
        %v2106 = vunpack.c.h.b16 %v1415
        %v2107 = vunpack.c.l.b16 %v1416
        %v2108 = vunpack.c.h.b16 %v1416
        %v2109 = vunpack.c.l.b16 %v1417
        %v2110 = vunpack.c.h.b16 %v1417
        %v2111 = vunpack.c.l.b16 %v1418
        %v2112 = vunpack.c.h.b16 %v1418
        %v2113 = vunpack.c.l.b16 %v1419
        %v2114 = vunpack.c.h.b16 %v1419
        %v2115 = vunpack.c.l.b16 %v1420
        %v2116 = vunpack.c.h.b16 %v1420
        %v2117 = vunpack.c.l.b16 %v1421
        %v2118 = vunpack.c.h.b16 %v1421
        %v2119 = vunpack.c.l.b16 %v1422
        %v2120 = vunpack.c.h.b16 %v1422
        %v2121 = vunpack.c.l.b16 %v1423
        %v2122 = vunpack.c.h.b16 %v1423
        %v2123 = vunpack.c.l.b16 %v1424
        %v2124 = vunpack.c.h.b16 %v1424
        %v2125 = vunpack.c.l.b16 %v1425
        %v2126 = vunpack.c.h.b16 %v1425
        %v2127 = vunpack.c.l.b16 %v1426
        %v2128 = vunpack.c.h.b16 %v1426
        %v2129 = vunpack.c.l.b16 %v1427
        %v2130 = vunpack.c.h.b16 %v1427
        %v2131 = vunpack.c.l.b16 %v1428
        %v2132 = vunpack.c.h.b16 %v1428
        %v2133 = vunpack.c.l.b16 %v1429
        %v2134 = vunpack.c.h.b16 %v1429
        %v2135 = vunpack.c.l.b16 %v1430
        %v2136 = vunpack.c.h.b16 %v1430
        %v2137 = vunpack.c.l.b16 %v1431
        %v2138 = vunpack.c.h.b16 %v1431
        %v2139 = vunpack.c.l.b16 %v1432
        %v2140 = vunpack.c.h.b16 %v1432
        %v2141 = vunpack.c.l.b16 %v1433
        %v2142 = vunpack.c.h.b16 %v1433
        %v2143 = vunpack.c.l.b16 %v1434
        %v2144 = vunpack.c.h.b16 %v1434
        %v2145 = vunpack.c.l.b16 %v1435
        %v2146 = vunpack.c.h.b16 %v1435
        %v2147 = vunpack.c.l.b16 %v1436
        %v2148 = vunpack.c.h.b16 %v1436
        %v2149 = vunpack.c.l.b16 %v1437
        %v2150 = vunpack.c.h.b16 %v1437
        %v2151 = vunpack.c.l.b16 %v1438
        %v2152 = vunpack.c.h.b16 %v1438
        %v2153 = vunpack.c.l.b16 %v1439
        %v2154 = vunpack.c.h.b16 %v1439
        %v2155 = vunpack.c.l.b16 %v1440
        %v2156 = vunpack.c.h.b16 %v1440
        %v2157 = vunpack.c.l.b16 %v1441
        %v2158 = vunpack.c.h.b16 %v1441
        %v2159 = vunpack.c.l.b16 %v1442
        %v2160 = vunpack.c.h.b16 %v1442
        %v2161 = vunpack.c.l.b16 %v1443
        %v2162 = vunpack.c.h.b16 %v1443
        %v2163 = vunpack.c.l.b16 %v1444
        %v2164 = vunpack.c.h.b16 %v1444
        %v2165 = vunpack.c.l.b16 %v1445
        %v2166 = vunpack.c.h.b16 %v1445
        %v2167 = vunpack.c.l.b16 %v1446
        %v2168 = vunpack.c.h.b16 %v1446
        %v2169 = vunpack.c.l.b16 %v1447
        %v2170 = vunpack.c.h.b16 %v1447
        %v2171 = vunpack.c.l.b16 %v1448
        %v2172 = vunpack.c.h.b16 %v1448
        %v2173 = vunpack.c.l.b16 %v1449
        %v2174 = vunpack.c.h.b16 %v1449
        %v2175 = vunpack.c.l.b16 %v1450
        %v2176 = vunpack.c.h.b16 %v1450
        %v2177 = vunpack.c.l.b16 %v1451
        %v2178 = vunpack.c.h.b16 %v1451
        %v2179 = vunpack.c.l.b16 %v1452
        %v2180 = vunpack.c.h.b16 %v1452
        %v2181 = vunpack.c.l.b16 %v1453
        %v2182 = vunpack.c.h.b16 %v1453
        %v2183 = vunpack.c.l.b16 %v1454
        %v2184 = vunpack.c.h.b16 %v1454
        %v2185 = vunpack.c.l.b16 %v1455
        %v2186 = vunpack.c.h.b16 %v1455
        %v2187 = vunpack.c.l.b16 %v1456
        %v2188 = vunpack.c.h.b16 %v1456
        %v2189 = vunpack.c.l.b16 %v1457
        %v2190 = vunpack.c.h.b16 %v1457
        %v2191 = vunpack.c.l.b16 %v1458
        %v2192 = vunpack.c.h.b16 %v1458
        %v2193 = vunpack.c.l.b16 %v1459
        %v2194 = vunpack.c.h.b16 %v1459
        %v2195 = vunpack.c.l.b16 %v1460
        %v2196 = vunpack.c.h.b16 %v1460
        %v2197 = vunpack.c.l.b16 %v1461
        %v2198 = vunpack.c.h.b16 %v1461
        %v2199 = vunpack.c.l.b16 %v1462
        %v2200 = vunpack.c.h.b16 %v1462
        %v2201 = vunpack.c.l.b16 %v1463
        %v2202 = vunpack.c.h.b16 %v1463
        %v2203 = vunpack.c.l.b16 %v1464
        %v2204 = vunpack.c.h.b16 %v1464
        %v2205 = vunpack.c.l.b16 %v1465
        %v2206 = vunpack.c.h.b16 %v1465
        %v2207 = vunpack.c.l.b16 %v1466
        %v2208 = vunpack.c.h.b16 %v1466
        %v2209 = vunpack.c.l.b16 %v1467
        %v2210 = vunpack.c.h.b16 %v1467
        %v2211 = vunpack.c.l.b16 %v1468
        %v2212 = vunpack.c.h.b16 %v1468
        %v2213 = vunpack.c.l.b16 %v1469
        %v2214 = vunpack.c.h.b16 %v1469
        %v2215 = vunpack.c.l.b16 %v1470
        %v2216 = vunpack.c.h.b16 %v1470
        %v2217 = vunpack.c.l.b16 %v1471
        %v2218 = vunpack.c.h.b16 %v1471
        %v2219 = vunpack.c.l.b16 %v1472
        %v2220 = vunpack.c.h.b16 %v1472
        %v2221 = vunpack.c.l.b16 %v1473
        %v2222 = vunpack.c.h.b16 %v1473
        %v2223 = vunpack.c.l.b16 %v1474
        %v2224 = vunpack.c.h.b16 %v1474
        %v2225 = vpack.c.b16 %v2099, %v2097
        %v2226 = vpack.c.b16 %v2100, %v2098
        %v2227 = vpack.c.b16 %v2103, %v2101
        %v2228 = vpack.c.b16 %v2104, %v2102
        %v2229 = vpack.c.b16 %v2107, %v2105
        %v2230 = vpack.c.b16 %v2108, %v2106
        %v2231 = vpack.c.b16 %v2111, %v2109
        %v2232 = vpack.c.b16 %v2112, %v2110
        %v2233 = vpack.c.b16 %v2115, %v2113
        %v2234 = vpack.c.b16 %v2116, %v2114
        %v2235 = vpack.c.b16 %v2119, %v2117
        %v2236 = vpack.c.b16 %v2120, %v2118
        %v2237 = vpack.c.b16 %v2123, %v2121
        %v2238 = vpack.c.b16 %v2124, %v2122
        %v2239 = vpack.c.b16 %v2127, %v2125
        %v2240 = vpack.c.b16 %v2128, %v2126
        %v2241 = vpack.c.b16 %v2131, %v2129
        %v2242 = vpack.c.b16 %v2132, %v2130
        %v2243 = vpack.c.b16 %v2135, %v2133
        %v2244 = vpack.c.b16 %v2136, %v2134
        %v2245 = vpack.c.b16 %v2139, %v2137
        %v2246 = vpack.c.b16 %v2140, %v2138
        %v2247 = vpack.c.b16 %v2143, %v2141
        %v2248 = vpack.c.b16 %v2144, %v2142
        %v2249 = vpack.c.b16 %v2147, %v2145
        %v2250 = vpack.c.b16 %v2148, %v2146
        %v2251 = vpack.c.b16 %v2151, %v2149
        %v2252 = vpack.c.b16 %v2152, %v2150
        %v2253 = vpack.c.b16 %v2155, %v2153
        %v2254 = vpack.c.b16 %v2156, %v2154
        %v2255 = vpack.c.b16 %v2159, %v2157
        %v2256 = vpack.c.b16 %v2160, %v2158
        %v2257 = vpack.c.b16 %v2163, %v2161
        %v2258 = vpack.c.b16 %v2164, %v2162
        %v2259 = vpack.c.b16 %v2167, %v2165
        %v2260 = vpack.c.b16 %v2168, %v2166
        %v2261 = vpack.c.b16 %v2171, %v2169
        %v2262 = vpack.c.b16 %v2172, %v2170
        %v2263 = vpack.c.b16 %v2175, %v2173
        %v2264 = vpack.c.b16 %v2176, %v2174
        %v2265 = vpack.c.b16 %v2179, %v2177
        %v2266 = vpack.c.b16 %v2180, %v2178
        %v2267 = vpack.c.b16 %v2183, %v2181
        %v2268 = vpack.c.b16 %v2184, %v2182
        %v2269 = vpack.c.b16 %v2187, %v2185
        %v2270 = vpack.c.b16 %v2188, %v2186
        %v2271 = vpack.c.b16 %v2191, %v2189
        %v2272 = vpack.c.b16 %v2192, %v2190
        %v2273 = vpack.c.b16 %v2195, %v2193
        %v2274 = vpack.c.b16 %v2196, %v2194
        %v2275 = vpack.c.b16 %v2199, %v2197
        %v2276 = vpack.c.b16 %v2200, %v2198
        %v2277 = vpack.c.b16 %v2203, %v2201
        %v2278 = vpack.c.b16 %v2204, %v2202
        %v2279 = vpack.c.b16 %v2207, %v2205
        %v2280 = vpack.c.b16 %v2208, %v2206
        %v2281 = vpack.c.b16 %v2211, %v2209
        %v2282 = vpack.c.b16 %v2212, %v2210
        %v2283 = vpack.c.b16 %v2215, %v2213
        %v2284 = vpack.c.b16 %v2216, %v2214
        %v2285 = vpack.c.b16 %v2219, %v2217
        %v2286 = vpack.c.b16 %v2220, %v2218
        %v2287 = vpack.c.b16 %v2223, %v2221
        %v2288 = vpack.c.b16 %v2224, %v2222
        %2353 = vmatprep.subr.bf16.mxu0 %v2226
        %2354 = vmatpush1.bf16.msra.mxu0 %v2225
        %2355 = vmatprep.subr.bf16.mxu0 %v2228
        %2356 = vmatpush1.bf16.msra.mxu0 %v2227
        %2357 = vmatprep.subr.bf16.mxu0 %v2230
        %2358 = vmatpush1.bf16.msra.mxu0 %v2229
        %2359 = vmatprep.subr.bf16.mxu0 %v2232
        %2360 = vmatpush1.bf16.msra.mxu0 %v2231
        %2361 = vmatprep.subr.bf16.mxu0 %v2234
        %2362 = vmatpush1.bf16.msra.mxu0 %v2233
        %2363 = vmatprep.subr.bf16.mxu0 %v2236
        %2364 = vmatpush1.bf16.msra.mxu0 %v2235
        %2365 = vmatprep.subr.bf16.mxu0 %v2238
        %2366 = vmatpush1.bf16.msra.mxu0 %v2237
        %2367 = vmatprep.subr.bf16.mxu0 %v2240
        %2368 = vmatpush1.bf16.msra.mxu0 %v2239
        %2369 = vmatprep.subr.bf16.mxu0 %v2242
        %2370 = vmatpush1.bf16.msra.mxu0 %v2241
        %2371 = vmatprep.subr.bf16.mxu0 %v2244
        %2372 = vmatpush1.bf16.msra.mxu0 %v2243
        %2373 = vmatprep.subr.bf16.mxu0 %v2246
        %2374 = vmatpush1.bf16.msra.mxu0 %v2245
        %2375 = vmatprep.subr.bf16.mxu0 %v2248
        %2376 = vmatpush1.bf16.msra.mxu0 %v2247
        %2377 = vmatprep.subr.bf16.mxu0 %v2250
        %2378 = vmatpush1.bf16.msra.mxu0 %v2249
        %2379 = vmatprep.subr.bf16.mxu0 %v2252
        %2380 = vmatpush1.bf16.msra.mxu0 %v2251
        %2381 = vmatprep.subr.bf16.mxu0 %v2254
        %2382 = vmatpush1.bf16.msra.mxu0 %v2253
        %2383 = vmatprep.subr.bf16.mxu0 %v2256
        %2384 = vmatpush1.bf16.msra.mxu0 %v2255
        %2385 = vmatprep.mubr.bf16.mxu0 %v1408
        %2386 = vmatmul.mubr.bf16.gmra.mrb[0].mxu0 %v1407
        %v2387 = vpop.f32.mrb[0].mxu0
        %v2388 = vadd.f32 %v2027, %v2387
        %v2389 = vpop.f32.mrb[0].mxu0
        %v2390 = vadd.f32 %v2029, %v2389
        %v2391 = vpop.f32.mrb[0].mxu0
        %v2392 = vpop.f32.mrb[0].mxu0
        %2393 = vdwg.mxu0
        %2394 = vmatprep.subr.bf16.mxu0 %v2258
        %2395 = vmatpush1.bf16.msra.mxu0 %v2257
        %2396 = vmatprep.subr.bf16.mxu0 %v2260
        %2397 = vmatpush1.bf16.msra.mxu0 %v2259
        %2398 = vmatprep.subr.bf16.mxu0 %v2262
        %2399 = vmatpush1.bf16.msra.mxu0 %v2261
        %2400 = vmatprep.subr.bf16.mxu0 %v2264
        %2401 = vmatpush1.bf16.msra.mxu0 %v2263
        %2402 = vmatprep.subr.bf16.mxu0 %v2266
        %2403 = vmatpush1.bf16.msra.mxu0 %v2265
        %2404 = vmatprep.subr.bf16.mxu0 %v2268
        %2405 = vmatpush1.bf16.msra.mxu0 %v2267
        %2406 = vmatprep.subr.bf16.mxu0 %v2270
        %2407 = vmatpush1.bf16.msra.mxu0 %v2269
        %2408 = vmatprep.subr.bf16.mxu0 %v2272
        %2409 = vmatpush1.bf16.msra.mxu0 %v2271
        %2410 = vmatprep.subr.bf16.mxu0 %v2274
        %2411 = vmatpush1.bf16.msra.mxu0 %v2273
        %2412 = vmatprep.subr.bf16.mxu0 %v2276
        %2413 = vmatpush1.bf16.msra.mxu0 %v2275
        %2414 = vmatprep.subr.bf16.mxu0 %v2278
        %2415 = vmatpush1.bf16.msra.mxu0 %v2277
        %2416 = vmatprep.subr.bf16.mxu0 %v2280
        %2417 = vmatpush1.bf16.msra.mxu0 %v2279
        %2418 = vmatprep.subr.bf16.mxu0 %v2282
        %2419 = vmatpush1.bf16.msra.mxu0 %v2281
        %2420 = vmatprep.subr.bf16.mxu0 %v2284
        %2421 = vmatpush1.bf16.msra.mxu0 %v2283
        %2422 = vmatprep.subr.bf16.mxu0 %v2286
        %2423 = vmatpush1.bf16.msra.mxu0 %v2285
        %2424 = vmatprep.subr.bf16.mxu0 %v2288
        %2425 = vmatpush1.bf16.msra.mxu0 %v2287
        %2426 = vmatprep.mubr.bf16.mxu0 %v1410
        %2427 = vmatmul.mubr.bf16.gmra.mrb[0].mxu0 %v1409
        %v2428 = vpop.f32.mrb[0].mxu0
        %v2429 = vadd.f32 %v2388, %v2428
        %v2430 = vpop.f32.mrb[0].mxu0
        %v2431 = vadd.f32 %v2390, %v2430
        %v2432 = vpop.f32.mrb[0].mxu0
        %v2433 = vpop.f32.mrb[0].mxu0
        %2434 = vdwg.mxu0
        %s2435 = scalar_lea.vmem %s5, 8
        %v2436 = vld [vmem:[%s2435] sm:$0xf]
        %v2438 = vsel %vm1321, %v2436, 0
        %2440 = vmatprep.subr.bf16.mxu0 %v1317
        %2441 = vmatpush1.bf16.msra.mxu0 %v1316
        %2442 = vmatprep.subr.bf16.mxu0 0
        %2443 = vmatpush1.bf16.msra.mxu0 0
        %2444 = vmatprep.subr.bf16.mxu0 0
        %2445 = vmatpush1.bf16.msra.mxu0 0
        %2446 = vmatprep.subr.bf16.mxu0 0
        %2447 = vmatpush1.bf16.msra.mxu0 0
        %2448 = vmatprep.subr.bf16.mxu0 0
        %2449 = vmatpush1.bf16.msra.mxu0 0
        %2450 = vmatprep.subr.bf16.mxu0 0
        %2451 = vmatpush1.bf16.msra.mxu0 0
        %2452 = vmatprep.subr.bf16.mxu0 0
        %2453 = vmatpush1.bf16.msra.mxu0 0
        %2454 = vmatprep.subr.bf16.mxu0 0
        %2455 = vmatpush1.bf16.msra.mxu0 0
        %2456 = vmatprep.subr.bf16.mxu0 0
        %2457 = vmatpush1.bf16.msra.mxu0 0
        %2458 = vmatprep.subr.bf16.mxu0 0
        %2459 = vmatpush1.bf16.msra.mxu0 0
        %2460 = vmatprep.subr.bf16.mxu0 0
        %2461 = vmatpush1.bf16.msra.mxu0 0
        %2462 = vmatprep.subr.bf16.mxu0 0
        %2463 = vmatpush1.bf16.msra.mxu0 0
        %2464 = vmatprep.subr.bf16.mxu0 0
        %2465 = vmatpush1.bf16.msra.mxu0 0
        %2466 = vmatprep.subr.bf16.mxu0 0
        %2467 = vmatpush1.bf16.msra.mxu0 0
        %2468 = vmatprep.subr.bf16.mxu0 0
        %2469 = vmatpush1.bf16.msra.mxu0 0
        %2470 = vmatprep.subr.bf16.mxu0 0
        %2471 = vmatpush1.bf16.msra.mxu0 0
        %2472 = vmatprep.mubr.bf16.mxu0 0
        %2473 = vmatmul.mubr.bf16.gmra.mrb[0].mxu0 %v2438
        %v2474 = vpop.f32.mrb[0].mxu0
        %v2475 = vadd.f32 0.0, %v2474
        %v2476 = vpop.f32.mrb[0].mxu0
        %v2477 = vadd.f32 0.0, %v2476
        %v2478 = vpop.f32.mrb[0].mxu0
        %v2479 = vpop.f32.mrb[0].mxu0
        %2480 = vdwg.mxu0
        %2481 = vmatprep.subr.bf16.mxu0 %v1319
        %2482 = vmatpush1.bf16.msra.mxu0 %v1318
        %2483 = vmatprep.subr.bf16.mxu0 0
        %2484 = vmatpush1.bf16.msra.mxu0 0
        %2485 = vmatprep.subr.bf16.mxu0 0
        %2486 = vmatpush1.bf16.msra.mxu0 0
        %2487 = vmatprep.subr.bf16.mxu0 0
        %2488 = vmatpush1.bf16.msra.mxu0 0
        %2489 = vmatprep.subr.bf16.mxu0 0
        %2490 = vmatpush1.bf16.msra.mxu0 0
        %2491 = vmatprep.subr.bf16.mxu0 0
        %2492 = vmatpush1.bf16.msra.mxu0 0
        %2493 = vmatprep.subr.bf16.mxu0 0
        %2494 = vmatpush1.bf16.msra.mxu0 0
        %2495 = vmatprep.subr.bf16.mxu0 0
        %2496 = vmatpush1.bf16.msra.mxu0 0
        %2497 = vmatprep.subr.bf16.mxu0 0
        %2498 = vmatpush1.bf16.msra.mxu0 0
        %2499 = vmatprep.subr.bf16.mxu0 0
        %2500 = vmatpush1.bf16.msra.mxu0 0
        %2501 = vmatprep.subr.bf16.mxu0 0
        %2502 = vmatpush1.bf16.msra.mxu0 0
        %2503 = vmatprep.subr.bf16.mxu0 0
        %2504 = vmatpush1.bf16.msra.mxu0 0
        %2505 = vmatprep.subr.bf16.mxu0 0
        %2506 = vmatpush1.bf16.msra.mxu0 0
        %2507 = vmatprep.subr.bf16.mxu0 0
        %2508 = vmatpush1.bf16.msra.mxu0 0
        %2509 = vmatprep.subr.bf16.mxu0 0
        %2510 = vmatpush1.bf16.msra.mxu0 0
        %2511 = vmatprep.subr.bf16.mxu0 0
        %2512 = vmatpush1.bf16.msra.mxu0 0
        %2513 = vmatprep.mubr.bf16.mxu0 0
        %2514 = vmatmul.mubr.bf16.gmra.mrb[0].mxu0 %v2438
        %v2515 = vpop.f32.mrb[0].mxu0
        %v2516 = vadd.f32 0.0, %v2515
        %v2517 = vpop.f32.mrb[0].mxu0
        %v2518 = vadd.f32 0.0, %v2517
        %v2519 = vpop.f32.mrb[0].mxu0
        %v2520 = vpop.f32.mrb[0].mxu0
        %2521 = vdwg.mxu0
        %v2522 = vpack.c.bf16 %v2475, %v2475
        %v2523 = vpack.c.bf16 %v2477, %v2477
        %v2524 = vpack.c.bf16 %v2516, %v2516
        %v2525 = vpack.c.bf16 %v2518, %v2518
        %s2526 = scalar_lea.vmem [#allocation2], 1024
        %v2527 = vld [vmem:[%s2526] sm:$0xff]
        %v2528 = vld [vmem:[%s2526 + $0x8] sm:$0xff]
        %v2529 = vld [vmem:[%s2526 + $0x10] sm:$0xff]
        %v2530 = vld [vmem:[%s2526 + $0x18] sm:$0xff]
        %v2531 = vld [vmem:[%s2526 + $0x20] sm:$0xff]
        %v2532 = vld [vmem:[%s2526 + $0x28] sm:$0xff]
        %v2533 = vld [vmem:[%s2526 + $0x30] sm:$0xff]
        %v2534 = vld [vmem:[%s2526 + $0x38] sm:$0xff]
        %v2535 = vld [vmem:[%s2526 + $0x40] sm:$0xff]
        %v2536 = vld [vmem:[%s2526 + $0x48] sm:$0xff]
        %v2537 = vld [vmem:[%s2526 + $0x50] sm:$0xff]
        %v2538 = vld [vmem:[%s2526 + $0x58] sm:$0xff]
        %v2539 = vld [vmem:[%s2526 + $0x60] sm:$0xff]
        %v2540 = vld [vmem:[%s2526 + $0x68] sm:$0xff]
        %v2541 = vld [vmem:[%s2526 + $0x70] sm:$0xff]
        %v2542 = vld [vmem:[%s2526 + $0x78] sm:$0xff]
        %v2543 = vld [vmem:[%s2526 + $0x80] sm:$0xff]
        %v2544 = vld [vmem:[%s2526 + $0x88] sm:$0xff]
        %v2545 = vld [vmem:[%s2526 + $0x90] sm:$0xff]
        %v2546 = vld [vmem:[%s2526 + $0x98] sm:$0xff]
        %v2547 = vld [vmem:[%s2526 + $0xa0] sm:$0xff]
        %v2548 = vld [vmem:[%s2526 + $0xa8] sm:$0xff]
        %v2549 = vld [vmem:[%s2526 + $0xb0] sm:$0xff]
        %v2550 = vld [vmem:[%s2526 + $0xb8] sm:$0xff]
        %v2551 = vld [vmem:[%s2526 + $0xc0] sm:$0xff]
        %v2552 = vld [vmem:[%s2526 + $0xc8] sm:$0xff]
        %v2553 = vld [vmem:[%s2526 + $0xd0] sm:$0xff]
        %v2554 = vld [vmem:[%s2526 + $0xd8] sm:$0xff]
        %v2555 = vld [vmem:[%s2526 + $0xe0] sm:$0xff]
        %v2556 = vld [vmem:[%s2526 + $0xe8] sm:$0xff]
        %v2557 = vld [vmem:[%s2526 + $0xf0] sm:$0xff]
        %v2558 = vld [vmem:[%s2526 + $0xf8] sm:$0xff]
        %v2559 = vld [vmem:[%s2526 + $0x100] sm:$0xff]
        %v2560 = vld [vmem:[%s2526 + $0x108] sm:$0xff]
        %v2561 = vld [vmem:[%s2526 + $0x110] sm:$0xff]
        %v2562 = vld [vmem:[%s2526 + $0x118] sm:$0xff]
        %v2563 = vld [vmem:[%s2526 + $0x120] sm:$0xff]
        %v2564 = vld [vmem:[%s2526 + $0x128] sm:$0xff]
        %v2565 = vld [vmem:[%s2526 + $0x130] sm:$0xff]
        %v2566 = vld [vmem:[%s2526 + $0x138] sm:$0xff]
        %v2567 = vld [vmem:[%s2526 + $0x140] sm:$0xff]
        %v2568 = vld [vmem:[%s2526 + $0x148] sm:$0xff]
        %v2569 = vld [vmem:[%s2526 + $0x150] sm:$0xff]
        %v2570 = vld [vmem:[%s2526 + $0x158] sm:$0xff]
        %v2571 = vld [vmem:[%s2526 + $0x160] sm:$0xff]
        %v2572 = vld [vmem:[%s2526 + $0x168] sm:$0xff]
        %v2573 = vld [vmem:[%s2526 + $0x170] sm:$0xff]
        %v2574 = vld [vmem:[%s2526 + $0x178] sm:$0xff]
        %v2575 = vld [vmem:[%s2526 + $0x180] sm:$0xff]
        %v2576 = vld [vmem:[%s2526 + $0x188] sm:$0xff]
        %v2577 = vld [vmem:[%s2526 + $0x190] sm:$0xff]
        %v2578 = vld [vmem:[%s2526 + $0x198] sm:$0xff]
        %v2579 = vld [vmem:[%s2526 + $0x1a0] sm:$0xff]
        %v2580 = vld [vmem:[%s2526 + $0x1a8] sm:$0xff]
        %v2581 = vld [vmem:[%s2526 + $0x1b0] sm:$0xff]
        %v2582 = vld [vmem:[%s2526 + $0x1b8] sm:$0xff]
        %v2583 = vld [vmem:[%s2526 + $0x1c0] sm:$0xff]
        %v2584 = vld [vmem:[%s2526 + $0x1c8] sm:$0xff]
        %v2585 = vld [vmem:[%s2526 + $0x1d0] sm:$0xff]
        %v2586 = vld [vmem:[%s2526 + $0x1d8] sm:$0xff]
        %v2587 = vld [vmem:[%s2526 + $0x1e0] sm:$0xff]
        %v2588 = vld [vmem:[%s2526 + $0x1e8] sm:$0xff]
        %v2589 = vld [vmem:[%s2526 + $0x1f0] sm:$0xff]
        %v2590 = vld [vmem:[%s2526 + $0x1f8] sm:$0xff]
        %v2655 = vunpack.c.l.b16 %v2527
        %v2656 = vunpack.c.h.b16 %v2527
        %v2657 = vunpack.c.l.b16 %v2528
        %v2658 = vunpack.c.h.b16 %v2528
        %v2659 = vunpack.c.l.b16 %v2529
        %v2660 = vunpack.c.h.b16 %v2529
        %v2661 = vunpack.c.l.b16 %v2530
        %v2662 = vunpack.c.h.b16 %v2530
        %v2663 = vunpack.c.l.b16 %v2531
        %v2664 = vunpack.c.h.b16 %v2531
        %v2665 = vunpack.c.l.b16 %v2532
        %v2666 = vunpack.c.h.b16 %v2532
        %v2667 = vunpack.c.l.b16 %v2533
        %v2668 = vunpack.c.h.b16 %v2533
        %v2669 = vunpack.c.l.b16 %v2534
        %v2670 = vunpack.c.h.b16 %v2534
        %v2671 = vunpack.c.l.b16 %v2535
        %v2672 = vunpack.c.h.b16 %v2535
        %v2673 = vunpack.c.l.b16 %v2536
        %v2674 = vunpack.c.h.b16 %v2536
        %v2675 = vunpack.c.l.b16 %v2537
        %v2676 = vunpack.c.h.b16 %v2537
        %v2677 = vunpack.c.l.b16 %v2538
        %v2678 = vunpack.c.h.b16 %v2538
        %v2679 = vunpack.c.l.b16 %v2539
        %v2680 = vunpack.c.h.b16 %v2539
        %v2681 = vunpack.c.l.b16 %v2540
        %v2682 = vunpack.c.h.b16 %v2540
        %v2683 = vunpack.c.l.b16 %v2541
        %v2684 = vunpack.c.h.b16 %v2541
        %v2685 = vunpack.c.l.b16 %v2542
        %v2686 = vunpack.c.h.b16 %v2542
        %v2687 = vunpack.c.l.b16 %v2543
        %v2688 = vunpack.c.h.b16 %v2543
        %v2689 = vunpack.c.l.b16 %v2544
        %v2690 = vunpack.c.h.b16 %v2544
        %v2691 = vunpack.c.l.b16 %v2545
        %v2692 = vunpack.c.h.b16 %v2545
        %v2693 = vunpack.c.l.b16 %v2546
        %v2694 = vunpack.c.h.b16 %v2546
        %v2695 = vunpack.c.l.b16 %v2547
        %v2696 = vunpack.c.h.b16 %v2547
        %v2697 = vunpack.c.l.b16 %v2548
        %v2698 = vunpack.c.h.b16 %v2548
        %v2699 = vunpack.c.l.b16 %v2549
        %v2700 = vunpack.c.h.b16 %v2549
        %v2701 = vunpack.c.l.b16 %v2550
        %v2702 = vunpack.c.h.b16 %v2550
        %v2703 = vunpack.c.l.b16 %v2551
        %v2704 = vunpack.c.h.b16 %v2551
        %v2705 = vunpack.c.l.b16 %v2552
        %v2706 = vunpack.c.h.b16 %v2552
        %v2707 = vunpack.c.l.b16 %v2553
        %v2708 = vunpack.c.h.b16 %v2553
        %v2709 = vunpack.c.l.b16 %v2554
        %v2710 = vunpack.c.h.b16 %v2554
        %v2711 = vunpack.c.l.b16 %v2555
        %v2712 = vunpack.c.h.b16 %v2555
        %v2713 = vunpack.c.l.b16 %v2556
        %v2714 = vunpack.c.h.b16 %v2556
        %v2715 = vunpack.c.l.b16 %v2557
        %v2716 = vunpack.c.h.b16 %v2557
        %v2717 = vunpack.c.l.b16 %v2558
        %v2718 = vunpack.c.h.b16 %v2558
        %v2719 = vunpack.c.l.b16 %v2559
        %v2720 = vunpack.c.h.b16 %v2559
        %v2721 = vunpack.c.l.b16 %v2560
        %v2722 = vunpack.c.h.b16 %v2560
        %v2723 = vunpack.c.l.b16 %v2561
        %v2724 = vunpack.c.h.b16 %v2561
        %v2725 = vunpack.c.l.b16 %v2562
        %v2726 = vunpack.c.h.b16 %v2562
        %v2727 = vunpack.c.l.b16 %v2563
        %v2728 = vunpack.c.h.b16 %v2563
        %v2729 = vunpack.c.l.b16 %v2564
        %v2730 = vunpack.c.h.b16 %v2564
        %v2731 = vunpack.c.l.b16 %v2565
        %v2732 = vunpack.c.h.b16 %v2565
        %v2733 = vunpack.c.l.b16 %v2566
        %v2734 = vunpack.c.h.b16 %v2566
        %v2735 = vunpack.c.l.b16 %v2567
        %v2736 = vunpack.c.h.b16 %v2567
        %v2737 = vunpack.c.l.b16 %v2568
        %v2738 = vunpack.c.h.b16 %v2568
        %v2739 = vunpack.c.l.b16 %v2569
        %v2740 = vunpack.c.h.b16 %v2569
        %v2741 = vunpack.c.l.b16 %v2570
        %v2742 = vunpack.c.h.b16 %v2570
        %v2743 = vunpack.c.l.b16 %v2571
        %v2744 = vunpack.c.h.b16 %v2571
        %v2745 = vunpack.c.l.b16 %v2572
        %v2746 = vunpack.c.h.b16 %v2572
        %v2747 = vunpack.c.l.b16 %v2573
        %v2748 = vunpack.c.h.b16 %v2573
        %v2749 = vunpack.c.l.b16 %v2574
        %v2750 = vunpack.c.h.b16 %v2574
        %v2751 = vunpack.c.l.b16 %v2575
        %v2752 = vunpack.c.h.b16 %v2575
        %v2753 = vunpack.c.l.b16 %v2576
        %v2754 = vunpack.c.h.b16 %v2576
        %v2755 = vunpack.c.l.b16 %v2577
        %v2756 = vunpack.c.h.b16 %v2577
        %v2757 = vunpack.c.l.b16 %v2578
        %v2758 = vunpack.c.h.b16 %v2578
        %v2759 = vunpack.c.l.b16 %v2579
        %v2760 = vunpack.c.h.b16 %v2579
        %v2761 = vunpack.c.l.b16 %v2580
        %v2762 = vunpack.c.h.b16 %v2580
        %v2763 = vunpack.c.l.b16 %v2581
        %v2764 = vunpack.c.h.b16 %v2581
        %v2765 = vunpack.c.l.b16 %v2582
        %v2766 = vunpack.c.h.b16 %v2582
        %v2767 = vunpack.c.l.b16 %v2583
        %v2768 = vunpack.c.h.b16 %v2583
        %v2769 = vunpack.c.l.b16 %v2584
        %v2770 = vunpack.c.h.b16 %v2584
        %v2771 = vunpack.c.l.b16 %v2585
        %v2772 = vunpack.c.h.b16 %v2585
        %v2773 = vunpack.c.l.b16 %v2586
        %v2774 = vunpack.c.h.b16 %v2586
        %v2775 = vunpack.c.l.b16 %v2587
        %v2776 = vunpack.c.h.b16 %v2587
        %v2777 = vunpack.c.l.b16 %v2588
        %v2778 = vunpack.c.h.b16 %v2588
        %v2779 = vunpack.c.l.b16 %v2589
        %v2780 = vunpack.c.h.b16 %v2589
        %v2781 = vunpack.c.l.b16 %v2590
        %v2782 = vunpack.c.h.b16 %v2590
        %v2783 = vpack.c.b16 %v2657, %v2655
        %v2784 = vpack.c.b16 %v2658, %v2656
        %v2785 = vpack.c.b16 %v2661, %v2659
        %v2786 = vpack.c.b16 %v2662, %v2660
        %v2787 = vpack.c.b16 %v2665, %v2663
        %v2788 = vpack.c.b16 %v2666, %v2664
        %v2789 = vpack.c.b16 %v2669, %v2667
        %v2790 = vpack.c.b16 %v2670, %v2668
        %v2791 = vpack.c.b16 %v2673, %v2671
        %v2792 = vpack.c.b16 %v2674, %v2672
        %v2793 = vpack.c.b16 %v2677, %v2675
        %v2794 = vpack.c.b16 %v2678, %v2676
        %v2795 = vpack.c.b16 %v2681, %v2679
        %v2796 = vpack.c.b16 %v2682, %v2680
        %v2797 = vpack.c.b16 %v2685, %v2683
        %v2798 = vpack.c.b16 %v2686, %v2684
        %v2799 = vpack.c.b16 %v2689, %v2687
        %v2800 = vpack.c.b16 %v2690, %v2688
        %v2801 = vpack.c.b16 %v2693, %v2691
        %v2802 = vpack.c.b16 %v2694, %v2692
        %v2803 = vpack.c.b16 %v2697, %v2695
        %v2804 = vpack.c.b16 %v2698, %v2696
        %v2805 = vpack.c.b16 %v2701, %v2699
        %v2806 = vpack.c.b16 %v2702, %v2700
        %v2807 = vpack.c.b16 %v2705, %v2703
        %v2808 = vpack.c.b16 %v2706, %v2704
        %v2809 = vpack.c.b16 %v2709, %v2707
        %v2810 = vpack.c.b16 %v2710, %v2708
        %v2811 = vpack.c.b16 %v2713, %v2711
        %v2812 = vpack.c.b16 %v2714, %v2712
        %v2813 = vpack.c.b16 %v2717, %v2715
        %v2814 = vpack.c.b16 %v2718, %v2716
        %v2815 = vpack.c.b16 %v2721, %v2719
        %v2816 = vpack.c.b16 %v2722, %v2720
        %v2817 = vpack.c.b16 %v2725, %v2723
        %v2818 = vpack.c.b16 %v2726, %v2724
        %v2819 = vpack.c.b16 %v2729, %v2727
        %v2820 = vpack.c.b16 %v2730, %v2728
        %v2821 = vpack.c.b16 %v2733, %v2731
        %v2822 = vpack.c.b16 %v2734, %v2732
        %v2823 = vpack.c.b16 %v2737, %v2735
        %v2824 = vpack.c.b16 %v2738, %v2736
        %v2825 = vpack.c.b16 %v2741, %v2739
        %v2826 = vpack.c.b16 %v2742, %v2740
        %v2827 = vpack.c.b16 %v2745, %v2743
        %v2828 = vpack.c.b16 %v2746, %v2744
        %v2829 = vpack.c.b16 %v2749, %v2747
        %v2830 = vpack.c.b16 %v2750, %v2748
        %v2831 = vpack.c.b16 %v2753, %v2751
        %v2832 = vpack.c.b16 %v2754, %v2752
        %v2833 = vpack.c.b16 %v2757, %v2755
        %v2834 = vpack.c.b16 %v2758, %v2756
        %v2835 = vpack.c.b16 %v2761, %v2759
        %v2836 = vpack.c.b16 %v2762, %v2760
        %v2837 = vpack.c.b16 %v2765, %v2763
        %v2838 = vpack.c.b16 %v2766, %v2764
        %v2839 = vpack.c.b16 %v2769, %v2767
        %v2840 = vpack.c.b16 %v2770, %v2768
        %v2841 = vpack.c.b16 %v2773, %v2771
        %v2842 = vpack.c.b16 %v2774, %v2772
        %v2843 = vpack.c.b16 %v2777, %v2775
        %v2844 = vpack.c.b16 %v2778, %v2776
        %v2845 = vpack.c.b16 %v2781, %v2779
        %v2846 = vpack.c.b16 %v2782, %v2780
        %2911 = vmatprep.subr.bf16.mxu0 %v2784
        %2912 = vmatpush1.bf16.msra.mxu0 %v2783
        %2913 = vmatprep.subr.bf16.mxu0 %v2786
        %2914 = vmatpush1.bf16.msra.mxu0 %v2785
        %2915 = vmatprep.subr.bf16.mxu0 %v2788
        %2916 = vmatpush1.bf16.msra.mxu0 %v2787
        %2917 = vmatprep.subr.bf16.mxu0 %v2790
        %2918 = vmatpush1.bf16.msra.mxu0 %v2789
        %2919 = vmatprep.subr.bf16.mxu0 %v2792
        %2920 = vmatpush1.bf16.msra.mxu0 %v2791
        %2921 = vmatprep.subr.bf16.mxu0 %v2794
        %2922 = vmatpush1.bf16.msra.mxu0 %v2793
        %2923 = vmatprep.subr.bf16.mxu0 %v2796
        %2924 = vmatpush1.bf16.msra.mxu0 %v2795
        %2925 = vmatprep.subr.bf16.mxu0 %v2798
        %2926 = vmatpush1.bf16.msra.mxu0 %v2797
        %2927 = vmatprep.subr.bf16.mxu0 %v2800
        %2928 = vmatpush1.bf16.msra.mxu0 %v2799
        %2929 = vmatprep.subr.bf16.mxu0 %v2802
        %2930 = vmatpush1.bf16.msra.mxu0 %v2801
        %2931 = vmatprep.subr.bf16.mxu0 %v2804
        %2932 = vmatpush1.bf16.msra.mxu0 %v2803
        %2933 = vmatprep.subr.bf16.mxu0 %v2806
        %2934 = vmatpush1.bf16.msra.mxu0 %v2805
        %2935 = vmatprep.subr.bf16.mxu0 %v2808
        %2936 = vmatpush1.bf16.msra.mxu0 %v2807
        %2937 = vmatprep.subr.bf16.mxu0 %v2810
        %2938 = vmatpush1.bf16.msra.mxu0 %v2809
        %2939 = vmatprep.subr.bf16.mxu0 %v2812
        %2940 = vmatpush1.bf16.msra.mxu0 %v2811
        %2941 = vmatprep.subr.bf16.mxu0 %v2814
        %2942 = vmatpush1.bf16.msra.mxu0 %v2813
        %2943 = vmatprep.mubr.bf16.mxu0 %v2523
        %2944 = vmatmul.mubr.bf16.gmra.mrb[0].mxu0 %v2522
        %v2945 = vpop.f32.mrb[0].mxu0
        %v2946 = vadd.f32 0.0, %v2945
        %v2947 = vpop.f32.mrb[0].mxu0
        %v2948 = vadd.f32 0.0, %v2947
        %v2949 = vpop.f32.mrb[0].mxu0
        %v2950 = vpop.f32.mrb[0].mxu0
        %2951 = vdwg.mxu0
        %2952 = vmatprep.subr.bf16.mxu0 %v2816
        %2953 = vmatpush1.bf16.msra.mxu0 %v2815
        %2954 = vmatprep.subr.bf16.mxu0 %v2818
        %2955 = vmatpush1.bf16.msra.mxu0 %v2817
        %2956 = vmatprep.subr.bf16.mxu0 %v2820
        %2957 = vmatpush1.bf16.msra.mxu0 %v2819
        %2958 = vmatprep.subr.bf16.mxu0 %v2822
        %2959 = vmatpush1.bf16.msra.mxu0 %v2821
        %2960 = vmatprep.subr.bf16.mxu0 %v2824
        %2961 = vmatpush1.bf16.msra.mxu0 %v2823
        %2962 = vmatprep.subr.bf16.mxu0 %v2826
        %2963 = vmatpush1.bf16.msra.mxu0 %v2825
        %2964 = vmatprep.subr.bf16.mxu0 %v2828
        %2965 = vmatpush1.bf16.msra.mxu0 %v2827
        %2966 = vmatprep.subr.bf16.mxu0 %v2830
        %2967 = vmatpush1.bf16.msra.mxu0 %v2829
        %2968 = vmatprep.subr.bf16.mxu0 %v2832
        %2969 = vmatpush1.bf16.msra.mxu0 %v2831
        %2970 = vmatprep.subr.bf16.mxu0 %v2834
        %2971 = vmatpush1.bf16.msra.mxu0 %v2833
        %2972 = vmatprep.subr.bf16.mxu0 %v2836
        %2973 = vmatpush1.bf16.msra.mxu0 %v2835
        %2974 = vmatprep.subr.bf16.mxu0 %v2838
        %2975 = vmatpush1.bf16.msra.mxu0 %v2837
        %2976 = vmatprep.subr.bf16.mxu0 %v2840
        %2977 = vmatpush1.bf16.msra.mxu0 %v2839
        %2978 = vmatprep.subr.bf16.mxu0 %v2842
        %2979 = vmatpush1.bf16.msra.mxu0 %v2841
        %2980 = vmatprep.subr.bf16.mxu0 %v2844
        %2981 = vmatpush1.bf16.msra.mxu0 %v2843
        %2982 = vmatprep.subr.bf16.mxu0 %v2846
        %2983 = vmatpush1.bf16.msra.mxu0 %v2845
        %2984 = vmatprep.mubr.bf16.mxu0 %v2525
        %2985 = vmatmul.mubr.bf16.gmra.mrb[0].mxu0 %v2524
        %v2986 = vpop.f32.mrb[0].mxu0
        %v2987 = vadd.f32 %v2946, %v2986
        %v2988 = vpop.f32.mrb[0].mxu0
        %v2989 = vadd.f32 %v2948, %v2988
        %v2990 = vpop.f32.mrb[0].mxu0
        %v2991 = vpop.f32.mrb[0].mxu0
        %2992 = vdwg.mxu0
        %v2993 = vadd.f32 %v2429, %v2987
        %v2994 = vadd.f32 %v2431, %v2989
        %s2995 = scalar_lea.vmem %s5, 12
        %v2996 = vld [vmem:[%s2995] sm:$0xf]
        %v2998 = vsel %vm1321, %v2996, 0
        %3000 = vmatprep.subr.bf16.mxu0 %v1317
        %3001 = vmatpush1.bf16.msra.mxu0 %v1316
        %3002 = vmatprep.subr.bf16.mxu0 0
        %3003 = vmatpush1.bf16.msra.mxu0 0
        %3004 = vmatprep.subr.bf16.mxu0 0
        %3005 = vmatpush1.bf16.msra.mxu0 0
        %3006 = vmatprep.subr.bf16.mxu0 0
        %3007 = vmatpush1.bf16.msra.mxu0 0
        %3008 = vmatprep.subr.bf16.mxu0 0
        %3009 = vmatpush1.bf16.msra.mxu0 0
        %3010 = vmatprep.subr.bf16.mxu0 0
        %3011 = vmatpush1.bf16.msra.mxu0 0
        %3012 = vmatprep.subr.bf16.mxu0 0
        %3013 = vmatpush1.bf16.msra.mxu0 0
        %3014 = vmatprep.subr.bf16.mxu0 0
        %3015 = vmatpush1.bf16.msra.mxu0 0
        %3016 = vmatprep.subr.bf16.mxu0 0
        %3017 = vmatpush1.bf16.msra.mxu0 0
        %3018 = vmatprep.subr.bf16.mxu0 0
        %3019 = vmatpush1.bf16.msra.mxu0 0
        %3020 = vmatprep.subr.bf16.mxu0 0
        %3021 = vmatpush1.bf16.msra.mxu0 0
        %3022 = vmatprep.subr.bf16.mxu0 0
        %3023 = vmatpush1.bf16.msra.mxu0 0
        %3024 = vmatprep.subr.bf16.mxu0 0
        %3025 = vmatpush1.bf16.msra.mxu0 0
        %3026 = vmatprep.subr.bf16.mxu0 0
        %3027 = vmatpush1.bf16.msra.mxu0 0
        %3028 = vmatprep.subr.bf16.mxu0 0
        %3029 = vmatpush1.bf16.msra.mxu0 0
        %3030 = vmatprep.subr.bf16.mxu0 0
        %3031 = vmatpush1.bf16.msra.mxu0 0
        %3032 = vmatprep.mubr.bf16.mxu0 0
        %3033 = vmatmul.mubr.bf16.gmra.mrb[0].mxu0 %v2998
        %v3034 = vpop.f32.mrb[0].mxu0
        %v3035 = vadd.f32 0.0, %v3034
        %v3036 = vpop.f32.mrb[0].mxu0
        %v3037 = vadd.f32 0.0, %v3036
        %v3038 = vpop.f32.mrb[0].mxu0
        %v3039 = vpop.f32.mrb[0].mxu0
        %3040 = vdwg.mxu0
        %3041 = vmatprep.subr.bf16.mxu0 %v1319
        %3042 = vmatpush1.bf16.msra.mxu0 %v1318
        %3043 = vmatprep.subr.bf16.mxu0 0
        %3044 = vmatpush1.bf16.msra.mxu0 0
        %3045 = vmatprep.subr.bf16.mxu0 0
        %3046 = vmatpush1.bf16.msra.mxu0 0
        %3047 = vmatprep.subr.bf16.mxu0 0
        %3048 = vmatpush1.bf16.msra.mxu0 0
        %3049 = vmatprep.subr.bf16.mxu0 0
        %3050 = vmatpush1.bf16.msra.mxu0 0
        %3051 = vmatprep.subr.bf16.mxu0 0
        %3052 = vmatpush1.bf16.msra.mxu0 0
        %3053 = vmatprep.subr.bf16.mxu0 0
        %3054 = vmatpush1.bf16.msra.mxu0 0
        %3055 = vmatprep.subr.bf16.mxu0 0
        %3056 = vmatpush1.bf16.msra.mxu0 0
        %3057 = vmatprep.subr.bf16.mxu0 0
        %3058 = vmatpush1.bf16.msra.mxu0 0
        %3059 = vmatprep.subr.bf16.mxu0 0
        %3060 = vmatpush1.bf16.msra.mxu0 0
        %3061 = vmatprep.subr.bf16.mxu0 0
        %3062 = vmatpush1.bf16.msra.mxu0 0
        %3063 = vmatprep.subr.bf16.mxu0 0
        %3064 = vmatpush1.bf16.msra.mxu0 0
        %3065 = vmatprep.subr.bf16.mxu0 0
        %3066 = vmatpush1.bf16.msra.mxu0 0
        %3067 = vmatprep.subr.bf16.mxu0 0
        %3068 = vmatpush1.bf16.msra.mxu0 0
        %3069 = vmatprep.subr.bf16.mxu0 0
        %3070 = vmatpush1.bf16.msra.mxu0 0
        %3071 = vmatprep.subr.bf16.mxu0 0
        %3072 = vmatpush1.bf16.msra.mxu0 0
        %3073 = vmatprep.mubr.bf16.mxu0 0
        %3074 = vmatmul.mubr.bf16.gmra.mrb[0].mxu0 %v2998
        %v3075 = vpop.f32.mrb[0].mxu0
        %v3076 = vadd.f32 0.0, %v3075
        %v3077 = vpop.f32.mrb[0].mxu0
        %v3078 = vadd.f32 0.0, %v3077
        %v3079 = vpop.f32.mrb[0].mxu0
        %v3080 = vpop.f32.mrb[0].mxu0
        %3081 = vdwg.mxu0
        %v3082 = vpack.c.bf16 %v3035, %v3035
        %v3083 = vpack.c.bf16 %v3037, %v3037
        %v3084 = vpack.c.bf16 %v3076, %v3076
        %v3085 = vpack.c.bf16 %v3078, %v3078
        %s3086 = scalar_lea.vmem [#allocation2], 1536
        %v3087 = vld [vmem:[%s3086] sm:$0xff]
        %v3088 = vld [vmem:[%s3086 + $0x8] sm:$0xff]
        %v3089 = vld [vmem:[%s3086 + $0x10] sm:$0xff]
        %v3090 = vld [vmem:[%s3086 + $0x18] sm:$0xff]
        %v3091 = vld [vmem:[%s3086 + $0x20] sm:$0xff]
        %v3092 = vld [vmem:[%s3086 + $0x28] sm:$0xff]
        %v3093 = vld [vmem:[%s3086 + $0x30] sm:$0xff]
        %v3094 = vld [vmem:[%s3086 + $0x38] sm:$0xff]
        %v3095 = vld [vmem:[%s3086 + $0x40] sm:$0xff]
        %v3096 = vld [vmem:[%s3086 + $0x48] sm:$0xff]
        %v3097 = vld [vmem:[%s3086 + $0x50] sm:$0xff]
        %v3098 = vld [vmem:[%s3086 + $0x58] sm:$0xff]
        %v3099 = vld [vmem:[%s3086 + $0x60] sm:$0xff]
        %v3100 = vld [vmem:[%s3086 + $0x68] sm:$0xff]
        %v3101 = vld [vmem:[%s3086 + $0x70] sm:$0xff]
        %v3102 = vld [vmem:[%s3086 + $0x78] sm:$0xff]
        %v3103 = vld [vmem:[%s3086 + $0x80] sm:$0xff]
        %v3104 = vld [vmem:[%s3086 + $0x88] sm:$0xff]
        %v3105 = vld [vmem:[%s3086 + $0x90] sm:$0xff]
        %v3106 = vld [vmem:[%s3086 + $0x98] sm:$0xff]
        %v3107 = vld [vmem:[%s3086 + $0xa0] sm:$0xff]
        %v3108 = vld [vmem:[%s3086 + $0xa8] sm:$0xff]
        %v3109 = vld [vmem:[%s3086 + $0xb0] sm:$0xff]
        %v3110 = vld [vmem:[%s3086 + $0xb8] sm:$0xff]
        %v3111 = vld [vmem:[%s3086 + $0xc0] sm:$0xff]
        %v3112 = vld [vmem:[%s3086 + $0xc8] sm:$0xff]
        %v3113 = vld [vmem:[%s3086 + $0xd0] sm:$0xff]
        %v3114 = vld [vmem:[%s3086 + $0xd8] sm:$0xff]
        %v3115 = vld [vmem:[%s3086 + $0xe0] sm:$0xff]
        %v3116 = vld [vmem:[%s3086 + $0xe8] sm:$0xff]
        %v3117 = vld [vmem:[%s3086 + $0xf0] sm:$0xff]
        %v3118 = vld [vmem:[%s3086 + $0xf8] sm:$0xff]
        %v3119 = vld [vmem:[%s3086 + $0x100] sm:$0xff]
        %v3120 = vld [vmem:[%s3086 + $0x108] sm:$0xff]
        %v3121 = vld [vmem:[%s3086 + $0x110] sm:$0xff]
        %v3122 = vld [vmem:[%s3086 + $0x118] sm:$0xff]
        %v3123 = vld [vmem:[%s3086 + $0x120] sm:$0xff]
        %v3124 = vld [vmem:[%s3086 + $0x128] sm:$0xff]
        %v3125 = vld [vmem:[%s3086 + $0x130] sm:$0xff]
        %v3126 = vld [vmem:[%s3086 + $0x138] sm:$0xff]
        %v3127 = vld [vmem:[%s3086 + $0x140] sm:$0xff]
        %v3128 = vld [vmem:[%s3086 + $0x148] sm:$0xff]
        %v3129 = vld [vmem:[%s3086 + $0x150] sm:$0xff]
        %v3130 = vld [vmem:[%s3086 + $0x158] sm:$0xff]
        %v3131 = vld [vmem:[%s3086 + $0x160] sm:$0xff]
        %v3132 = vld [vmem:[%s3086 + $0x168] sm:$0xff]
        %v3133 = vld [vmem:[%s3086 + $0x170] sm:$0xff]
        %v3134 = vld [vmem:[%s3086 + $0x178] sm:$0xff]
        %v3135 = vld [vmem:[%s3086 + $0x180] sm:$0xff]
        %v3136 = vld [vmem:[%s3086 + $0x188] sm:$0xff]
        %v3137 = vld [vmem:[%s3086 + $0x190] sm:$0xff]
        %v3138 = vld [vmem:[%s3086 + $0x198] sm:$0xff]
        %v3139 = vld [vmem:[%s3086 + $0x1a0] sm:$0xff]
        %v3140 = vld [vmem:[%s3086 + $0x1a8] sm:$0xff]
        %v3141 = vld [vmem:[%s3086 + $0x1b0] sm:$0xff]
        %v3142 = vld [vmem:[%s3086 + $0x1b8] sm:$0xff]
        %v3143 = vld [vmem:[%s3086 + $0x1c0] sm:$0xff]
        %v3144 = vld [vmem:[%s3086 + $0x1c8] sm:$0xff]
        %v3145 = vld [vmem:[%s3086 + $0x1d0] sm:$0xff]
        %v3146 = vld [vmem:[%s3086 + $0x1d8] sm:$0xff]
        %v3147 = vld [vmem:[%s3086 + $0x1e0] sm:$0xff]
        %v3148 = vld [vmem:[%s3086 + $0x1e8] sm:$0xff]
        %v3149 = vld [vmem:[%s3086 + $0x1f0] sm:$0xff]
        %v3150 = vld [vmem:[%s3086 + $0x1f8] sm:$0xff]
        %v3215 = vunpack.c.l.b16 %v3087
        %v3216 = vunpack.c.h.b16 %v3087
        %v3217 = vunpack.c.l.b16 %v3088
        %v3218 = vunpack.c.h.b16 %v3088
        %v3219 = vunpack.c.l.b16 %v3089
        %v3220 = vunpack.c.h.b16 %v3089
        %v3221 = vunpack.c.l.b16 %v3090
        %v3222 = vunpack.c.h.b16 %v3090
        %v3223 = vunpack.c.l.b16 %v3091
        %v3224 = vunpack.c.h.b16 %v3091
        %v3225 = vunpack.c.l.b16 %v3092
        %v3226 = vunpack.c.h.b16 %v3092
        %v3227 = vunpack.c.l.b16 %v3093
        %v3228 = vunpack.c.h.b16 %v3093
        %v3229 = vunpack.c.l.b16 %v3094
        %v3230 = vunpack.c.h.b16 %v3094
        %v3231 = vunpack.c.l.b16 %v3095
        %v3232 = vunpack.c.h.b16 %v3095
        %v3233 = vunpack.c.l.b16 %v3096
        %v3234 = vunpack.c.h.b16 %v3096
        %v3235 = vunpack.c.l.b16 %v3097
        %v3236 = vunpack.c.h.b16 %v3097
        %v3237 = vunpack.c.l.b16 %v3098
        %v3238 = vunpack.c.h.b16 %v3098
        %v3239 = vunpack.c.l.b16 %v3099
        %v3240 = vunpack.c.h.b16 %v3099
        %v3241 = vunpack.c.l.b16 %v3100
        %v3242 = vunpack.c.h.b16 %v3100
        %v3243 = vunpack.c.l.b16 %v3101
        %v3244 = vunpack.c.h.b16 %v3101
        %v3245 = vunpack.c.l.b16 %v3102
        %v3246 = vunpack.c.h.b16 %v3102
        %v3247 = vunpack.c.l.b16 %v3103
        %v3248 = vunpack.c.h.b16 %v3103
        %v3249 = vunpack.c.l.b16 %v3104
        %v3250 = vunpack.c.h.b16 %v3104
        %v3251 = vunpack.c.l.b16 %v3105
        %v3252 = vunpack.c.h.b16 %v3105
        %v3253 = vunpack.c.l.b16 %v3106
        %v3254 = vunpack.c.h.b16 %v3106
        %v3255 = vunpack.c.l.b16 %v3107
        %v3256 = vunpack.c.h.b16 %v3107
        %v3257 = vunpack.c.l.b16 %v3108
        %v3258 = vunpack.c.h.b16 %v3108
        %v3259 = vunpack.c.l.b16 %v3109
        %v3260 = vunpack.c.h.b16 %v3109
        %v3261 = vunpack.c.l.b16 %v3110
        %v3262 = vunpack.c.h.b16 %v3110
        %v3263 = vunpack.c.l.b16 %v3111
        %v3264 = vunpack.c.h.b16 %v3111
        %v3265 = vunpack.c.l.b16 %v3112
        %v3266 = vunpack.c.h.b16 %v3112
        %v3267 = vunpack.c.l.b16 %v3113
        %v3268 = vunpack.c.h.b16 %v3113
        %v3269 = vunpack.c.l.b16 %v3114
        %v3270 = vunpack.c.h.b16 %v3114
        %v3271 = vunpack.c.l.b16 %v3115
        %v3272 = vunpack.c.h.b16 %v3115
        %v3273 = vunpack.c.l.b16 %v3116
        %v3274 = vunpack.c.h.b16 %v3116
        %v3275 = vunpack.c.l.b16 %v3117
        %v3276 = vunpack.c.h.b16 %v3117
        %v3277 = vunpack.c.l.b16 %v3118
        %v3278 = vunpack.c.h.b16 %v3118
        %v3279 = vunpack.c.l.b16 %v3119
        %v3280 = vunpack.c.h.b16 %v3119
        %v3281 = vunpack.c.l.b16 %v3120
        %v3282 = vunpack.c.h.b16 %v3120
        %v3283 = vunpack.c.l.b16 %v3121
        %v3284 = vunpack.c.h.b16 %v3121
        %v3285 = vunpack.c.l.b16 %v3122
        %v3286 = vunpack.c.h.b16 %v3122
        %v3287 = vunpack.c.l.b16 %v3123
        %v3288 = vunpack.c.h.b16 %v3123
        %v3289 = vunpack.c.l.b16 %v3124
        %v3290 = vunpack.c.h.b16 %v3124
        %v3291 = vunpack.c.l.b16 %v3125
        %v3292 = vunpack.c.h.b16 %v3125
        %v3293 = vunpack.c.l.b16 %v3126
        %v3294 = vunpack.c.h.b16 %v3126
        %v3295 = vunpack.c.l.b16 %v3127
        %v3296 = vunpack.c.h.b16 %v3127
        %v3297 = vunpack.c.l.b16 %v3128
        %v3298 = vunpack.c.h.b16 %v3128
        %v3299 = vunpack.c.l.b16 %v3129
        %v3300 = vunpack.c.h.b16 %v3129
        %v3301 = vunpack.c.l.b16 %v3130
        %v3302 = vunpack.c.h.b16 %v3130
        %v3303 = vunpack.c.l.b16 %v3131
        %v3304 = vunpack.c.h.b16 %v3131
        %v3305 = vunpack.c.l.b16 %v3132
        %v3306 = vunpack.c.h.b16 %v3132
        %v3307 = vunpack.c.l.b16 %v3133
        %v3308 = vunpack.c.h.b16 %v3133
        %v3309 = vunpack.c.l.b16 %v3134
        %v3310 = vunpack.c.h.b16 %v3134
        %v3311 = vunpack.c.l.b16 %v3135
        %v3312 = vunpack.c.h.b16 %v3135
        %v3313 = vunpack.c.l.b16 %v3136
        %v3314 = vunpack.c.h.b16 %v3136
        %v3315 = vunpack.c.l.b16 %v3137
        %v3316 = vunpack.c.h.b16 %v3137
        %v3317 = vunpack.c.l.b16 %v3138
        %v3318 = vunpack.c.h.b16 %v3138
        %v3319 = vunpack.c.l.b16 %v3139
        %v3320 = vunpack.c.h.b16 %v3139
        %v3321 = vunpack.c.l.b16 %v3140
        %v3322 = vunpack.c.h.b16 %v3140
        %v3323 = vunpack.c.l.b16 %v3141
        %v3324 = vunpack.c.h.b16 %v3141
        %v3325 = vunpack.c.l.b16 %v3142
        %v3326 = vunpack.c.h.b16 %v3142
        %v3327 = vunpack.c.l.b16 %v3143
        %v3328 = vunpack.c.h.b16 %v3143
        %v3329 = vunpack.c.l.b16 %v3144
        %v3330 = vunpack.c.h.b16 %v3144
        %v3331 = vunpack.c.l.b16 %v3145
        %v3332 = vunpack.c.h.b16 %v3145
        %v3333 = vunpack.c.l.b16 %v3146
        %v3334 = vunpack.c.h.b16 %v3146
        %v3335 = vunpack.c.l.b16 %v3147
        %v3336 = vunpack.c.h.b16 %v3147
        %v3337 = vunpack.c.l.b16 %v3148
        %v3338 = vunpack.c.h.b16 %v3148
        %v3339 = vunpack.c.l.b16 %v3149
        %v3340 = vunpack.c.h.b16 %v3149
        %v3341 = vunpack.c.l.b16 %v3150
        %v3342 = vunpack.c.h.b16 %v3150
        %v3343 = vpack.c.b16 %v3217, %v3215
        %v3344 = vpack.c.b16 %v3218, %v3216
        %v3345 = vpack.c.b16 %v3221, %v3219
        %v3346 = vpack.c.b16 %v3222, %v3220
        %v3347 = vpack.c.b16 %v3225, %v3223
        %v3348 = vpack.c.b16 %v3226, %v3224
        %v3349 = vpack.c.b16 %v3229, %v3227
        %v3350 = vpack.c.b16 %v3230, %v3228
        %v3351 = vpack.c.b16 %v3233, %v3231
        %v3352 = vpack.c.b16 %v3234, %v3232
        %v3353 = vpack.c.b16 %v3237, %v3235
        %v3354 = vpack.c.b16 %v3238, %v3236
        %v3355 = vpack.c.b16 %v3241, %v3239
        %v3356 = vpack.c.b16 %v3242, %v3240
        %v3357 = vpack.c.b16 %v3245, %v3243
        %v3358 = vpack.c.b16 %v3246, %v3244
        %v3359 = vpack.c.b16 %v3249, %v3247
        %v3360 = vpack.c.b16 %v3250, %v3248
        %v3361 = vpack.c.b16 %v3253, %v3251
        %v3362 = vpack.c.b16 %v3254, %v3252
        %v3363 = vpack.c.b16 %v3257, %v3255
        %v3364 = vpack.c.b16 %v3258, %v3256
        %v3365 = vpack.c.b16 %v3261, %v3259
        %v3366 = vpack.c.b16 %v3262, %v3260
        %v3367 = vpack.c.b16 %v3265, %v3263
        %v3368 = vpack.c.b16 %v3266, %v3264
        %v3369 = vpack.c.b16 %v3269, %v3267
        %v3370 = vpack.c.b16 %v3270, %v3268
        %v3371 = vpack.c.b16 %v3273, %v3271
        %v3372 = vpack.c.b16 %v3274, %v3272
        %v3373 = vpack.c.b16 %v3277, %v3275
        %v3374 = vpack.c.b16 %v3278, %v3276
        %v3375 = vpack.c.b16 %v3281, %v3279
        %v3376 = vpack.c.b16 %v3282, %v3280
        %v3377 = vpack.c.b16 %v3285, %v3283
        %v3378 = vpack.c.b16 %v3286, %v3284
        %v3379 = vpack.c.b16 %v3289, %v3287
        %v3380 = vpack.c.b16 %v3290, %v3288
        %v3381 = vpack.c.b16 %v3293, %v3291
        %v3382 = vpack.c.b16 %v3294, %v3292
        %v3383 = vpack.c.b16 %v3297, %v3295
        %v3384 = vpack.c.b16 %v3298, %v3296
        %v3385 = vpack.c.b16 %v3301, %v3299
        %v3386 = vpack.c.b16 %v3302, %v3300
        %v3387 = vpack.c.b16 %v3305, %v3303
        %v3388 = vpack.c.b16 %v3306, %v3304
        %v3389 = vpack.c.b16 %v3309, %v3307
        %v3390 = vpack.c.b16 %v3310, %v3308
        %v3391 = vpack.c.b16 %v3313, %v3311
        %v3392 = vpack.c.b16 %v3314, %v3312
        %v3393 = vpack.c.b16 %v3317, %v3315
        %v3394 = vpack.c.b16 %v3318, %v3316
        %v3395 = vpack.c.b16 %v3321, %v3319
        %v3396 = vpack.c.b16 %v3322, %v3320
        %v3397 = vpack.c.b16 %v3325, %v3323
        %v3398 = vpack.c.b16 %v3326, %v3324
        %v3399 = vpack.c.b16 %v3329, %v3327
        %v3400 = vpack.c.b16 %v3330, %v3328
        %v3401 = vpack.c.b16 %v3333, %v3331
        %v3402 = vpack.c.b16 %v3334, %v3332
        %v3403 = vpack.c.b16 %v3337, %v3335
        %v3404 = vpack.c.b16 %v3338, %v3336
        %v3405 = vpack.c.b16 %v3341, %v3339
        %v3406 = vpack.c.b16 %v3342, %v3340
        %3471 = vmatprep.subr.bf16.mxu0 %v3344
        %3472 = vmatpush1.bf16.msra.mxu0 %v3343
        %3473 = vmatprep.subr.bf16.mxu0 %v3346
        %3474 = vmatpush1.bf16.msra.mxu0 %v3345
        %3475 = vmatprep.subr.bf16.mxu0 %v3348
        %3476 = vmatpush1.bf16.msra.mxu0 %v3347
        %3477 = vmatprep.subr.bf16.mxu0 %v3350
        %3478 = vmatpush1.bf16.msra.mxu0 %v3349
        %3479 = vmatprep.subr.bf16.mxu0 %v3352
        %3480 = vmatpush1.bf16.msra.mxu0 %v3351
        %3481 = vmatprep.subr.bf16.mxu0 %v3354
        %3482 = vmatpush1.bf16.msra.mxu0 %v3353
        %3483 = vmatprep.subr.bf16.mxu0 %v3356
        %3484 = vmatpush1.bf16.msra.mxu0 %v3355
        %3485 = vmatprep.subr.bf16.mxu0 %v3358
        %3486 = vmatpush1.bf16.msra.mxu0 %v3357
        %3487 = vmatprep.subr.bf16.mxu0 %v3360
        %3488 = vmatpush1.bf16.msra.mxu0 %v3359
        %3489 = vmatprep.subr.bf16.mxu0 %v3362
        %3490 = vmatpush1.bf16.msra.mxu0 %v3361
        %3491 = vmatprep.subr.bf16.mxu0 %v3364
        %3492 = vmatpush1.bf16.msra.mxu0 %v3363
        %3493 = vmatprep.subr.bf16.mxu0 %v3366
        %3494 = vmatpush1.bf16.msra.mxu0 %v3365
        %3495 = vmatprep.subr.bf16.mxu0 %v3368
        %3496 = vmatpush1.bf16.msra.mxu0 %v3367
        %3497 = vmatprep.subr.bf16.mxu0 %v3370
        %3498 = vmatpush1.bf16.msra.mxu0 %v3369
        %3499 = vmatprep.subr.bf16.mxu0 %v3372
        %3500 = vmatpush1.bf16.msra.mxu0 %v3371
        %3501 = vmatprep.subr.bf16.mxu0 %v3374
        %3502 = vmatpush1.bf16.msra.mxu0 %v3373
        %3503 = vmatprep.mubr.bf16.mxu0 %v3083
        %3504 = vmatmul.mubr.bf16.gmra.mrb[0].mxu0 %v3082
        %v3505 = vpop.f32.mrb[0].mxu0
        %v3506 = vadd.f32 0.0, %v3505
        %v3507 = vpop.f32.mrb[0].mxu0
        %v3508 = vadd.f32 0.0, %v3507
        %v3509 = vpop.f32.mrb[0].mxu0
        %v3510 = vpop.f32.mrb[0].mxu0
        %3511 = vdwg.mxu0
        %3512 = vmatprep.subr.bf16.mxu0 %v3376
        %3513 = vmatpush1.bf16.msra.mxu0 %v3375
        %3514 = vmatprep.subr.bf16.mxu0 %v3378
        %3515 = vmatpush1.bf16.msra.mxu0 %v3377
        %3516 = vmatprep.subr.bf16.mxu0 %v3380
        %3517 = vmatpush1.bf16.msra.mxu0 %v3379
        %3518 = vmatprep.subr.bf16.mxu0 %v3382
        %3519 = vmatpush1.bf16.msra.mxu0 %v3381
        %3520 = vmatprep.subr.bf16.mxu0 %v3384
        %3521 = vmatpush1.bf16.msra.mxu0 %v3383
        %3522 = vmatprep.subr.bf16.mxu0 %v3386
        %3523 = vmatpush1.bf16.msra.mxu0 %v3385
        %3524 = vmatprep.subr.bf16.mxu0 %v3388
        %3525 = vmatpush1.bf16.msra.mxu0 %v3387
        %3526 = vmatprep.subr.bf16.mxu0 %v3390
        %3527 = vmatpush1.bf16.msra.mxu0 %v3389
        %3528 = vmatprep.subr.bf16.mxu0 %v3392
        %3529 = vmatpush1.bf16.msra.mxu0 %v3391
        %3530 = vmatprep.subr.bf16.mxu0 %v3394
        %3531 = vmatpush1.bf16.msra.mxu0 %v3393
        %3532 = vmatprep.subr.bf16.mxu0 %v3396
        %3533 = vmatpush1.bf16.msra.mxu0 %v3395
        %3534 = vmatprep.subr.bf16.mxu0 %v3398
        %3535 = vmatpush1.bf16.msra.mxu0 %v3397
        %3536 = vmatprep.subr.bf16.mxu0 %v3400
        %3537 = vmatpush1.bf16.msra.mxu0 %v3399
        %3538 = vmatprep.subr.bf16.mxu0 %v3402
        %3539 = vmatpush1.bf16.msra.mxu0 %v3401
        %3540 = vmatprep.subr.bf16.mxu0 %v3404
        %3541 = vmatpush1.bf16.msra.mxu0 %v3403
        %3542 = vmatprep.subr.bf16.mxu0 %v3406
        %3543 = vmatpush1.bf16.msra.mxu0 %v3405
        %3544 = vmatprep.mubr.bf16.mxu0 %v3085
        %3545 = vmatmul.mubr.bf16.gmra.mrb[0].mxu0 %v3084
        %v3546 = vpop.f32.mrb[0].mxu0
        %v3547 = vadd.f32 %v3506, %v3546
        %v3548 = vpop.f32.mrb[0].mxu0
        %v3549 = vadd.f32 %v3508, %v3548
        %v3550 = vpop.f32.mrb[0].mxu0
        %v3551 = vpop.f32.mrb[0].mxu0
        %3552 = vdwg.mxu0
        %v3553 = vadd.f32 %v2993, %v3547
        %v3554 = vadd.f32 %v2994, %v3549
        %v3555 = vld [vmem:[%s7] sm:$0x3]
        %v3557 = vlaneseq
        %v3558 = vshrl.u32 %v3557, 7
        %v3559 = vsub.s32 0, %v3558
        %v3560 = vrot.slane %v3555, %v3559
        %v3561 = vlaneseq
        %v3562 = vshrl.u32 %v3561, 7
        %v3563 = vsub.s32 1, %v3562
        %v3564 = vrot.slane %v3555, %v3563
        %v3567 = vadd.f32 %v3553, %v3560
        %v3568 = vadd.f32 %v3554, %v3564
        %v3569 = vmax.f32 %v3567, 0.0
        %v3570 = vmax.f32 %v3568, 0.0
        %v3571 = vpack.c.bf16 %v3569, %v3569
        %v3572 = vpack.c.bf16 %v3570, %v3570
        %v3573 = vld [vmem:[%s8] sm:$0x3]
        %vm3574 = vcmask 64512
        %v3576 = vsel %vm3574, %v3573, 0
        %vm3578 = vcmask 1043456
        %v3580 = vsel %vm3578, %v3571, 0
        %v3583 = vsel %vm3578, %v3572, 0
        %3585 = vmatprep.subr.bf16.mxu0 %v3583
        %3586 = vmatpush1.bf16.msra.mxu0 %v3580
        %3587 = vmatprep.subr.bf16.mxu0 0
        %3588 = vmatpush1.bf16.msra.mxu0 0
        %3589 = vmatprep.subr.bf16.mxu0 0
        %3590 = vmatpush1.bf16.msra.mxu0 0
        %3591 = vmatprep.subr.bf16.mxu0 0
        %3592 = vmatpush1.bf16.msra.mxu0 0
        %3593 = vmatprep.subr.bf16.mxu0 0
        %3594 = vmatpush1.bf16.msra.mxu0 0
        %3595 = vmatprep.subr.bf16.mxu0 0
        %3596 = vmatpush1.bf16.msra.mxu0 0
        %3597 = vmatprep.subr.bf16.mxu0 0
        %3598 = vmatpush1.bf16.msra.mxu0 0
        %3599 = vmatprep.subr.bf16.mxu0 0
        %3600 = vmatpush1.bf16.msra.mxu0 0
        %3601 = vmatprep.subr.bf16.mxu0 0
        %3602 = vmatpush1.bf16.msra.mxu0 0
        %3603 = vmatprep.subr.bf16.mxu0 0
        %3604 = vmatpush1.bf16.msra.mxu0 0
        %3605 = vmatprep.subr.bf16.mxu0 0
        %3606 = vmatpush1.bf16.msra.mxu0 0
        %3607 = vmatprep.subr.bf16.mxu0 0
        %3608 = vmatpush1.bf16.msra.mxu0 0
        %3609 = vmatprep.subr.bf16.mxu0 0
        %3610 = vmatpush1.bf16.msra.mxu0 0
        %3611 = vmatprep.subr.bf16.mxu0 0
        %3612 = vmatpush1.bf16.msra.mxu0 0
        %3613 = vmatprep.subr.bf16.mxu0 0
        %3614 = vmatpush1.bf16.msra.mxu0 0
        %3615 = vmatprep.subr.bf16.mxu0 0
        %3616 = vmatpush1.bf16.msra.mxu0 0
        %3617 = vmatprep.mubr.bf16.mxu0 0
        %3618 = vmatmul.mubr.bf16.gmra.mrb[0].mxu0 %v3576
        %v3619 = vpop.f32.mrb[0].mxu0
        %v3620 = vadd.f32 0.0, %v3619
        %v3621 = vpop.f32.mrb[0].mxu0
        %v3622 = vadd.f32 0.0, %v3621
        %v3623 = vpop.f32.mrb[0].mxu0
        %v3624 = vpop.f32.mrb[0].mxu0
        %3625 = vdwg.mxu0
        %v3626 = vpack.c.bf16 %v3620, %v3620
        %v3627 = vpack.c.bf16 %v3622, %v3622
        %v3628 = vld [vmem:[#allocation5] sm:$0xff]
        %v3629 = vld [vmem:[#allocation5 + $0x8] sm:$0xff]
        %v3630 = vld [vmem:[#allocation5 + $0x10] sm:$0xff]
        %v3631 = vld [vmem:[#allocation5 + $0x18] sm:$0xff]
        %v3632 = vld [vmem:[#allocation5 + $0x20] sm:$0xff]
        %v3633 = vld [vmem:[#allocation5 + $0x28] sm:$0xff]
        %v3634 = vld [vmem:[#allocation5 + $0x30] sm:$0xff]
        %v3635 = vld [vmem:[#allocation5 + $0x38] sm:$0xff]
        %v3636 = vld [vmem:[#allocation5 + $0x40] sm:$0xff]
        %v3637 = vld [vmem:[#allocation5 + $0x48] sm:$0xff]
        %v3638 = vld [vmem:[#allocation5 + $0x50] sm:$0xff]
        %v3639 = vld [vmem:[#allocation5 + $0x58] sm:$0xff]
        %v3640 = vld [vmem:[#allocation5 + $0x60] sm:$0xff]
        %v3641 = vld [vmem:[#allocation5 + $0x68] sm:$0xff]
        %v3642 = vld [vmem:[#allocation5 + $0x70] sm:$0xff]
        %v3643 = vld [vmem:[#allocation5 + $0x78] sm:$0xff]
        %v3644 = vld [vmem:[#allocation5 + $0x80] sm:$0xff]
        %v3645 = vld [vmem:[#allocation5 + $0x88] sm:$0xff]
        %v3646 = vld [vmem:[#allocation5 + $0x90] sm:$0xff]
        %v3647 = vld [vmem:[#allocation5 + $0x98] sm:$0xff]
        %v3648 = vld [vmem:[#allocation5 + $0xa0] sm:$0xff]
        %v3649 = vld [vmem:[#allocation5 + $0xa8] sm:$0xff]
        %v3650 = vld [vmem:[#allocation5 + $0xb0] sm:$0xff]
        %v3651 = vld [vmem:[#allocation5 + $0xb8] sm:$0xff]
        %v3652 = vld [vmem:[#allocation5 + $0xc0] sm:$0xff]
        %v3653 = vld [vmem:[#allocation5 + $0xc8] sm:$0xff]
        %v3654 = vld [vmem:[#allocation5 + $0xd0] sm:$0xff]
        %v3655 = vld [vmem:[#allocation5 + $0xd8] sm:$0xff]
        %v3656 = vld [vmem:[#allocation5 + $0xe0] sm:$0xff]
        %v3657 = vld [vmem:[#allocation5 + $0xe8] sm:$0xff]
        %v3658 = vld [vmem:[#allocation5 + $0xf0] sm:$0xff]
        %v3659 = vld [vmem:[#allocation5 + $0xf8] sm:$0xff]
        %s3660 = scalar_lea.vmem %s8, 2
        %v3661 = vld [vmem:[%s3660] sm:$0x3]
        %v3663 = vsel %vm3574, %v3661, 0
        %3665 = vmatprep.subr.bf16.mxu0 %v3583
        %3666 = vmatpush1.bf16.msra.mxu0 %v3580
        %3667 = vmatprep.subr.bf16.mxu0 0
        %3668 = vmatpush1.bf16.msra.mxu0 0
        %3669 = vmatprep.subr.bf16.mxu0 0
        %3670 = vmatpush1.bf16.msra.mxu0 0
        %3671 = vmatprep.subr.bf16.mxu0 0
        %3672 = vmatpush1.bf16.msra.mxu0 0
        %3673 = vmatprep.subr.bf16.mxu0 0
        %3674 = vmatpush1.bf16.msra.mxu0 0
        %3675 = vmatprep.subr.bf16.mxu0 0
        %3676 = vmatpush1.bf16.msra.mxu0 0
        %3677 = vmatprep.subr.bf16.mxu0 0
        %3678 = vmatpush1.bf16.msra.mxu0 0
        %3679 = vmatprep.subr.bf16.mxu0 0
        %3680 = vmatpush1.bf16.msra.mxu0 0
        %3681 = vmatprep.subr.bf16.mxu0 0
        %3682 = vmatpush1.bf16.msra.mxu0 0
        %3683 = vmatprep.subr.bf16.mxu0 0
        %3684 = vmatpush1.bf16.msra.mxu0 0
        %3685 = vmatprep.subr.bf16.mxu0 0
        %3686 = vmatpush1.bf16.msra.mxu0 0
        %3687 = vmatprep.subr.bf16.mxu0 0
        %3688 = vmatpush1.bf16.msra.mxu0 0
        %3689 = vmatprep.subr.bf16.mxu0 0
        %3690 = vmatpush1.bf16.msra.mxu0 0
        %3691 = vmatprep.subr.bf16.mxu0 0
        %3692 = vmatpush1.bf16.msra.mxu0 0
        %3693 = vmatprep.subr.bf16.mxu0 0
        %3694 = vmatpush1.bf16.msra.mxu0 0
        %3695 = vmatprep.subr.bf16.mxu0 0
        %3696 = vmatpush1.bf16.msra.mxu0 0
        %3697 = vmatprep.mubr.bf16.mxu0 0
        %3698 = vmatmul.mubr.bf16.gmra.mrb[0].mxu0 %v3663
        %v3699 = vpop.f32.mrb[0].mxu0
        %v3700 = vadd.f32 0.0, %v3699
        %v3701 = vpop.f32.mrb[0].mxu0
        %v3702 = vadd.f32 0.0, %v3701
        %v3703 = vpop.f32.mrb[0].mxu0
        %v3704 = vpop.f32.mrb[0].mxu0
        %3705 = vdwg.mxu0
        %v3706 = vpack.c.bf16 %v3700, %v3700
        %v3707 = vpack.c.bf16 %v3702, %v3702
        %s3708 = scalar_lea.vmem [#allocation5], 256
        %v3709 = vld [vmem:[%s3708] sm:$0xff]
        %v3710 = vld [vmem:[%s3708 + $0x8] sm:$0xff]
        %v3711 = vld [vmem:[%s3708 + $0x10] sm:$0xff]
        %v3712 = vld [vmem:[%s3708 + $0x18] sm:$0xff]
        %v3713 = vld [vmem:[%s3708 + $0x20] sm:$0xff]
        %v3714 = vld [vmem:[%s3708 + $0x28] sm:$0xff]
        %v3715 = vld [vmem:[%s3708 + $0x30] sm:$0xff]
        %v3716 = vld [vmem:[%s3708 + $0x38] sm:$0xff]
        %v3717 = vld [vmem:[%s3708 + $0x40] sm:$0xff]
        %v3718 = vld [vmem:[%s3708 + $0x48] sm:$0xff]
        %v3719 = vld [vmem:[%s3708 + $0x50] sm:$0xff]
        %v3720 = vld [vmem:[%s3708 + $0x58] sm:$0xff]
        %v3721 = vld [vmem:[%s3708 + $0x60] sm:$0xff]
        %v3722 = vld [vmem:[%s3708 + $0x68] sm:$0xff]
        %v3723 = vld [vmem:[%s3708 + $0x70] sm:$0xff]
        %v3724 = vld [vmem:[%s3708 + $0x78] sm:$0xff]
        %v3725 = vld [vmem:[%s3708 + $0x80] sm:$0xff]
        %v3726 = vld [vmem:[%s3708 + $0x88] sm:$0xff]
        %v3727 = vld [vmem:[%s3708 + $0x90] sm:$0xff]
        %v3728 = vld [vmem:[%s3708 + $0x98] sm:$0xff]
        %v3729 = vld [vmem:[%s3708 + $0xa0] sm:$0xff]
        %v3730 = vld [vmem:[%s3708 + $0xa8] sm:$0xff]
        %v3731 = vld [vmem:[%s3708 + $0xb0] sm:$0xff]
        %v3732 = vld [vmem:[%s3708 + $0xb8] sm:$0xff]
        %v3733 = vld [vmem:[%s3708 + $0xc0] sm:$0xff]
        %v3734 = vld [vmem:[%s3708 + $0xc8] sm:$0xff]
        %v3735 = vld [vmem:[%s3708 + $0xd0] sm:$0xff]
        %v3736 = vld [vmem:[%s3708 + $0xd8] sm:$0xff]
        %v3737 = vld [vmem:[%s3708 + $0xe0] sm:$0xff]
        %v3738 = vld [vmem:[%s3708 + $0xe8] sm:$0xff]
        %v3739 = vld [vmem:[%s3708 + $0xf0] sm:$0xff]
        %v3740 = vld [vmem:[%s3708 + $0xf8] sm:$0xff]
        %v3773 = vunpack.c.l.b16 %v3709
        %v3774 = vunpack.c.h.b16 %v3709
        %v3775 = vunpack.c.l.b16 %v3710
        %v3776 = vunpack.c.h.b16 %v3710
        %v3777 = vunpack.c.l.b16 %v3711
        %v3778 = vunpack.c.h.b16 %v3711
        %v3779 = vunpack.c.l.b16 %v3712
        %v3780 = vunpack.c.h.b16 %v3712
        %v3781 = vunpack.c.l.b16 %v3713
        %v3782 = vunpack.c.h.b16 %v3713
        %v3783 = vunpack.c.l.b16 %v3714
        %v3784 = vunpack.c.h.b16 %v3714
        %v3785 = vunpack.c.l.b16 %v3715
        %v3786 = vunpack.c.h.b16 %v3715
        %v3787 = vunpack.c.l.b16 %v3716
        %v3788 = vunpack.c.h.b16 %v3716
        %v3789 = vunpack.c.l.b16 %v3717
        %v3790 = vunpack.c.h.b16 %v3717
        %v3791 = vunpack.c.l.b16 %v3718
        %v3792 = vunpack.c.h.b16 %v3718
        %v3793 = vunpack.c.l.b16 %v3719
        %v3794 = vunpack.c.h.b16 %v3719
        %v3795 = vunpack.c.l.b16 %v3720
        %v3796 = vunpack.c.h.b16 %v3720
        %v3797 = vunpack.c.l.b16 %v3721
        %v3798 = vunpack.c.h.b16 %v3721
        %v3799 = vunpack.c.l.b16 %v3722
        %v3800 = vunpack.c.h.b16 %v3722
        %v3801 = vunpack.c.l.b16 %v3723
        %v3802 = vunpack.c.h.b16 %v3723
        %v3803 = vunpack.c.l.b16 %v3724
        %v3804 = vunpack.c.h.b16 %v3724
        %v3805 = vunpack.c.l.b16 %v3725
        %v3806 = vunpack.c.h.b16 %v3725
        %v3807 = vunpack.c.l.b16 %v3726
        %v3808 = vunpack.c.h.b16 %v3726
        %v3809 = vunpack.c.l.b16 %v3727
        %v3810 = vunpack.c.h.b16 %v3727
        %v3811 = vunpack.c.l.b16 %v3728
        %v3812 = vunpack.c.h.b16 %v3728
        %v3813 = vunpack.c.l.b16 %v3729
        %v3814 = vunpack.c.h.b16 %v3729
        %v3815 = vunpack.c.l.b16 %v3730
        %v3816 = vunpack.c.h.b16 %v3730
        %v3817 = vunpack.c.l.b16 %v3731
        %v3818 = vunpack.c.h.b16 %v3731
        %v3819 = vunpack.c.l.b16 %v3732
        %v3820 = vunpack.c.h.b16 %v3732
        %v3821 = vunpack.c.l.b16 %v3733
        %v3822 = vunpack.c.h.b16 %v3733
        %v3823 = vunpack.c.l.b16 %v3734
        %v3824 = vunpack.c.h.b16 %v3734
        %v3825 = vunpack.c.l.b16 %v3735
        %v3826 = vunpack.c.h.b16 %v3735
        %v3827 = vunpack.c.l.b16 %v3736
        %v3828 = vunpack.c.h.b16 %v3736
        %v3829 = vunpack.c.l.b16 %v3737
        %v3830 = vunpack.c.h.b16 %v3737
        %v3831 = vunpack.c.l.b16 %v3738
        %v3832 = vunpack.c.h.b16 %v3738
        %v3833 = vunpack.c.l.b16 %v3739
        %v3834 = vunpack.c.h.b16 %v3739
        %v3835 = vunpack.c.l.b16 %v3740
        %v3836 = vunpack.c.h.b16 %v3740
        %v3837 = vpack.c.b16 %v3775, %v3773
        %v3838 = vpack.c.b16 %v3776, %v3774
        %v3839 = vpack.c.b16 %v3779, %v3777
        %v3840 = vpack.c.b16 %v3780, %v3778
        %v3841 = vpack.c.b16 %v3783, %v3781
        %v3842 = vpack.c.b16 %v3784, %v3782
        %v3843 = vpack.c.b16 %v3787, %v3785
        %v3844 = vpack.c.b16 %v3788, %v3786
        %v3845 = vpack.c.b16 %v3791, %v3789
        %v3846 = vpack.c.b16 %v3792, %v3790
        %v3847 = vpack.c.b16 %v3795, %v3793
        %v3848 = vpack.c.b16 %v3796, %v3794
        %v3849 = vpack.c.b16 %v3799, %v3797
        %v3850 = vpack.c.b16 %v3800, %v3798
        %v3851 = vpack.c.b16 %v3803, %v3801
        %v3852 = vpack.c.b16 %v3804, %v3802
        %v3853 = vpack.c.b16 %v3807, %v3805
        %v3854 = vpack.c.b16 %v3808, %v3806
        %v3855 = vpack.c.b16 %v3811, %v3809
        %v3856 = vpack.c.b16 %v3812, %v3810
        %v3857 = vpack.c.b16 %v3815, %v3813
        %v3858 = vpack.c.b16 %v3816, %v3814
        %v3859 = vpack.c.b16 %v3819, %v3817
        %v3860 = vpack.c.b16 %v3820, %v3818
        %v3861 = vpack.c.b16 %v3823, %v3821
        %v3862 = vpack.c.b16 %v3824, %v3822
        %v3863 = vpack.c.b16 %v3827, %v3825
        %v3864 = vpack.c.b16 %v3828, %v3826
        %v3865 = vpack.c.b16 %v3831, %v3829
        %v3866 = vpack.c.b16 %v3832, %v3830
        %v3867 = vpack.c.b16 %v3835, %v3833
        %v3868 = vpack.c.b16 %v3836, %v3834
        %3901 = vmatprep.subr.bf16.mxu0 %v3838
        %3902 = vmatpush1.bf16.msra.mxu0 %v3837
        %3903 = vmatprep.subr.bf16.mxu0 %v3840
        %3904 = vmatpush1.bf16.msra.mxu0 %v3839
        %3905 = vmatprep.subr.bf16.mxu0 %v3842
        %3906 = vmatpush1.bf16.msra.mxu0 %v3841
        %3907 = vmatprep.subr.bf16.mxu0 %v3844
        %3908 = vmatpush1.bf16.msra.mxu0 %v3843
        %3909 = vmatprep.subr.bf16.mxu0 %v3846
        %3910 = vmatpush1.bf16.msra.mxu0 %v3845
        %3911 = vmatprep.subr.bf16.mxu0 %v3848
        %3912 = vmatpush1.bf16.msra.mxu0 %v3847
        %3913 = vmatprep.subr.bf16.mxu0 %v3850
        %3914 = vmatpush1.bf16.msra.mxu0 %v3849
        %3915 = vmatprep.subr.bf16.mxu0 %v3852
        %3916 = vmatpush1.bf16.msra.mxu0 %v3851
        %3917 = vmatprep.subr.bf16.mxu0 %v3854
        %3918 = vmatpush1.bf16.msra.mxu0 %v3853
        %3919 = vmatprep.subr.bf16.mxu0 %v3856
        %3920 = vmatpush1.bf16.msra.mxu0 %v3855
        %3921 = vmatprep.subr.bf16.mxu0 %v3858
        %3922 = vmatpush1.bf16.msra.mxu0 %v3857
        %3923 = vmatprep.subr.bf16.mxu0 %v3860
        %3924 = vmatpush1.bf16.msra.mxu0 %v3859
        %3925 = vmatprep.subr.bf16.mxu0 %v3862
        %3926 = vmatpush1.bf16.msra.mxu0 %v3861
        %3927 = vmatprep.subr.bf16.mxu0 %v3864
        %3928 = vmatpush1.bf16.msra.mxu0 %v3863
        %3929 = vmatprep.subr.bf16.mxu0 %v3866
        %3930 = vmatpush1.bf16.msra.mxu0 %v3865
        %3931 = vmatprep.subr.bf16.mxu0 %v3868
        %3932 = vmatpush1.bf16.msra.mxu0 %v3867
        %3933 = vmatprep.mubr.bf16.mxu0 %v3707
        %3934 = vmatmul.mubr.bf16.gmra.mrb[0].mxu0 %v3706
        %v3935 = vpop.f32.mrb[0].mxu0
        %v3936 = vadd.f32 0.0, %v3935
        %v3937 = vpop.f32.mrb[0].mxu0
        %v3938 = vadd.f32 0.0, %v3937
        %v3939 = vpop.f32.mrb[0].mxu0
        %v3940 = vpop.f32.mrb[0].mxu0
        %3941 = vdwg.mxu0
        %v3974 = vunpack.c.l.b16 %v3628
        %v3975 = vunpack.c.h.b16 %v3628
        %v3976 = vunpack.c.l.b16 %v3629
        %v3977 = vunpack.c.h.b16 %v3629
        %v3978 = vunpack.c.l.b16 %v3630
        %v3979 = vunpack.c.h.b16 %v3630
        %v3980 = vunpack.c.l.b16 %v3631
        %v3981 = vunpack.c.h.b16 %v3631
        %v3982 = vunpack.c.l.b16 %v3632
        %v3983 = vunpack.c.h.b16 %v3632
        %v3984 = vunpack.c.l.b16 %v3633
        %v3985 = vunpack.c.h.b16 %v3633
        %v3986 = vunpack.c.l.b16 %v3634
        %v3987 = vunpack.c.h.b16 %v3634
        %v3988 = vunpack.c.l.b16 %v3635
        %v3989 = vunpack.c.h.b16 %v3635
        %v3990 = vunpack.c.l.b16 %v3636
        %v3991 = vunpack.c.h.b16 %v3636
        %v3992 = vunpack.c.l.b16 %v3637
        %v3993 = vunpack.c.h.b16 %v3637
        %v3994 = vunpack.c.l.b16 %v3638
        %v3995 = vunpack.c.h.b16 %v3638
        %v3996 = vunpack.c.l.b16 %v3639
        %v3997 = vunpack.c.h.b16 %v3639
        %v3998 = vunpack.c.l.b16 %v3640
        %v3999 = vunpack.c.h.b16 %v3640
        %v4000 = vunpack.c.l.b16 %v3641
        %v4001 = vunpack.c.h.b16 %v3641
        %v4002 = vunpack.c.l.b16 %v3642
        %v4003 = vunpack.c.h.b16 %v3642
        %v4004 = vunpack.c.l.b16 %v3643
        %v4005 = vunpack.c.h.b16 %v3643
        %v4006 = vunpack.c.l.b16 %v3644
        %v4007 = vunpack.c.h.b16 %v3644
        %v4008 = vunpack.c.l.b16 %v3645
        %v4009 = vunpack.c.h.b16 %v3645
        %v4010 = vunpack.c.l.b16 %v3646
        %v4011 = vunpack.c.h.b16 %v3646
        %v4012 = vunpack.c.l.b16 %v3647
        %v4013 = vunpack.c.h.b16 %v3647
        %v4014 = vunpack.c.l.b16 %v3648
        %v4015 = vunpack.c.h.b16 %v3648
        %v4016 = vunpack.c.l.b16 %v3649
        %v4017 = vunpack.c.h.b16 %v3649
        %v4018 = vunpack.c.l.b16 %v3650
        %v4019 = vunpack.c.h.b16 %v3650
        %v4020 = vunpack.c.l.b16 %v3651
        %v4021 = vunpack.c.h.b16 %v3651
        %v4022 = vunpack.c.l.b16 %v3652
        %v4023 = vunpack.c.h.b16 %v3652
        %v4024 = vunpack.c.l.b16 %v3653
        %v4025 = vunpack.c.h.b16 %v3653
        %v4026 = vunpack.c.l.b16 %v3654
        %v4027 = vunpack.c.h.b16 %v3654
        %v4028 = vunpack.c.l.b16 %v3655
        %v4029 = vunpack.c.h.b16 %v3655
        %v4030 = vunpack.c.l.b16 %v3656
        %v4031 = vunpack.c.h.b16 %v3656
        %v4032 = vunpack.c.l.b16 %v3657
        %v4033 = vunpack.c.h.b16 %v3657
        %v4034 = vunpack.c.l.b16 %v3658
        %v4035 = vunpack.c.h.b16 %v3658
        %v4036 = vunpack.c.l.b16 %v3659
        %v4037 = vunpack.c.h.b16 %v3659
        %v4038 = vpack.c.b16 %v3976, %v3974
        %v4039 = vpack.c.b16 %v3977, %v3975
        %v4040 = vpack.c.b16 %v3980, %v3978
        %v4041 = vpack.c.b16 %v3981, %v3979
        %v4042 = vpack.c.b16 %v3984, %v3982
        %v4043 = vpack.c.b16 %v3985, %v3983
        %v4044 = vpack.c.b16 %v3988, %v3986
        %v4045 = vpack.c.b16 %v3989, %v3987
        %v4046 = vpack.c.b16 %v3992, %v3990
        %v4047 = vpack.c.b16 %v3993, %v3991
        %v4048 = vpack.c.b16 %v3996, %v3994
        %v4049 = vpack.c.b16 %v3997, %v3995
        %v4050 = vpack.c.b16 %v4000, %v3998
        %v4051 = vpack.c.b16 %v4001, %v3999
        %v4052 = vpack.c.b16 %v4004, %v4002
        %v4053 = vpack.c.b16 %v4005, %v4003
        %v4054 = vpack.c.b16 %v4008, %v4006
        %v4055 = vpack.c.b16 %v4009, %v4007
        %v4056 = vpack.c.b16 %v4012, %v4010
        %v4057 = vpack.c.b16 %v4013, %v4011
        %v4058 = vpack.c.b16 %v4016, %v4014
        %v4059 = vpack.c.b16 %v4017, %v4015
        %v4060 = vpack.c.b16 %v4020, %v4018
        %v4061 = vpack.c.b16 %v4021, %v4019
        %v4062 = vpack.c.b16 %v4024, %v4022
        %v4063 = vpack.c.b16 %v4025, %v4023
        %v4064 = vpack.c.b16 %v4028, %v4026
        %v4065 = vpack.c.b16 %v4029, %v4027
        %v4066 = vpack.c.b16 %v4032, %v4030
        %v4067 = vpack.c.b16 %v4033, %v4031
        %v4068 = vpack.c.b16 %v4036, %v4034
        %v4069 = vpack.c.b16 %v4037, %v4035
        %4102 = vmatprep.subr.bf16.mxu0 %v4039
        %4103 = vmatpush1.bf16.msra.mxu0 %v4038
        %4104 = vmatprep.subr.bf16.mxu0 %v4041
        %4105 = vmatpush1.bf16.msra.mxu0 %v4040
        %4106 = vmatprep.subr.bf16.mxu0 %v4043
        %4107 = vmatpush1.bf16.msra.mxu0 %v4042
        %4108 = vmatprep.subr.bf16.mxu0 %v4045
        %4109 = vmatpush1.bf16.msra.mxu0 %v4044
        %4110 = vmatprep.subr.bf16.mxu0 %v4047
        %4111 = vmatpush1.bf16.msra.mxu0 %v4046
        %4112 = vmatprep.subr.bf16.mxu0 %v4049
        %4113 = vmatpush1.bf16.msra.mxu0 %v4048
        %4114 = vmatprep.subr.bf16.mxu0 %v4051
        %4115 = vmatpush1.bf16.msra.mxu0 %v4050
        %4116 = vmatprep.subr.bf16.mxu0 %v4053
        %4117 = vmatpush1.bf16.msra.mxu0 %v4052
        %4118 = vmatprep.subr.bf16.mxu0 %v4055
        %4119 = vmatpush1.bf16.msra.mxu0 %v4054
        %4120 = vmatprep.subr.bf16.mxu0 %v4057
        %4121 = vmatpush1.bf16.msra.mxu0 %v4056
        %4122 = vmatprep.subr.bf16.mxu0 %v4059
        %4123 = vmatpush1.bf16.msra.mxu0 %v4058
        %4124 = vmatprep.subr.bf16.mxu0 %v4061
        %4125 = vmatpush1.bf16.msra.mxu0 %v4060
        %4126 = vmatprep.subr.bf16.mxu0 %v4063
        %4127 = vmatpush1.bf16.msra.mxu0 %v4062
        %4128 = vmatprep.subr.bf16.mxu0 %v4065
        %4129 = vmatpush1.bf16.msra.mxu0 %v4064
        %4130 = vmatprep.subr.bf16.mxu0 %v4067
        %4131 = vmatpush1.bf16.msra.mxu0 %v4066
        %4132 = vmatprep.subr.bf16.mxu0 %v4069
        %4133 = vmatpush1.bf16.msra.mxu0 %v4068
        %4134 = vmatprep.mubr.bf16.mxu0 %v3627
        %4135 = vmatmul.mubr.bf16.gmra.mrb[0].mxu0 %v3626
        %v4136 = vpop.f32.mrb[0].mxu0
        %v4137 = vadd.f32 %v3936, %v4136
        %v4138 = vpop.f32.mrb[0].mxu0
        %v4139 = vadd.f32 %v3938, %v4138
        %v4140 = vpop.f32.mrb[0].mxu0
        %v4141 = vpop.f32.mrb[0].mxu0
        %4142 = vdwg.mxu0
        %s4143 = scalar_lea.vmem %s8, 4
        %v4144 = vld [vmem:[%s4143] sm:$0x3]
        %v4146 = vsel %vm3574, %v4144, 0
        %4148 = vmatprep.subr.bf16.mxu0 %v3583
        %4149 = vmatpush1.bf16.msra.mxu0 %v3580
        %4150 = vmatprep.subr.bf16.mxu0 0
        %4151 = vmatpush1.bf16.msra.mxu0 0
        %4152 = vmatprep.subr.bf16.mxu0 0
        %4153 = vmatpush1.bf16.msra.mxu0 0
        %4154 = vmatprep.subr.bf16.mxu0 0
        %4155 = vmatpush1.bf16.msra.mxu0 0
        %4156 = vmatprep.subr.bf16.mxu0 0
        %4157 = vmatpush1.bf16.msra.mxu0 0
        %4158 = vmatprep.subr.bf16.mxu0 0
        %4159 = vmatpush1.bf16.msra.mxu0 0
        %4160 = vmatprep.subr.bf16.mxu0 0
        %4161 = vmatpush1.bf16.msra.mxu0 0
        %4162 = vmatprep.subr.bf16.mxu0 0
        %4163 = vmatpush1.bf16.msra.mxu0 0
        %4164 = vmatprep.subr.bf16.mxu0 0
        %4165 = vmatpush1.bf16.msra.mxu0 0
        %4166 = vmatprep.subr.bf16.mxu0 0
        %4167 = vmatpush1.bf16.msra.mxu0 0
        %4168 = vmatprep.subr.bf16.mxu0 0
        %4169 = vmatpush1.bf16.msra.mxu0 0
        %4170 = vmatprep.subr.bf16.mxu0 0
        %4171 = vmatpush1.bf16.msra.mxu0 0
        %4172 = vmatprep.subr.bf16.mxu0 0
        %4173 = vmatpush1.bf16.msra.mxu0 0
        %4174 = vmatprep.subr.bf16.mxu0 0
        %4175 = vmatpush1.bf16.msra.mxu0 0
        %4176 = vmatprep.subr.bf16.mxu0 0
        %4177 = vmatpush1.bf16.msra.mxu0 0
        %4178 = vmatprep.subr.bf16.mxu0 0
        %4179 = vmatpush1.bf16.msra.mxu0 0
        %4180 = vmatprep.mubr.bf16.mxu0 0
        %4181 = vmatmul.mubr.bf16.gmra.mrb[0].mxu0 %v4146
        %v4182 = vpop.f32.mrb[0].mxu0
        %v4183 = vadd.f32 0.0, %v4182
        %v4184 = vpop.f32.mrb[0].mxu0
        %v4185 = vadd.f32 0.0, %v4184
        %v4186 = vpop.f32.mrb[0].mxu0
        %v4187 = vpop.f32.mrb[0].mxu0
        %4188 = vdwg.mxu0
        %v4189 = vpack.c.bf16 %v4183, %v4183
        %v4190 = vpack.c.bf16 %v4185, %v4185
        %s4191 = scalar_lea.vmem [#allocation5], 512
        %v4192 = vld [vmem:[%s4191] sm:$0xff]
        %v4193 = vld [vmem:[%s4191 + $0x8] sm:$0xff]
        %v4194 = vld [vmem:[%s4191 + $0x10] sm:$0xff]
        %v4195 = vld [vmem:[%s4191 + $0x18] sm:$0xff]
        %v4196 = vld [vmem:[%s4191 + $0x20] sm:$0xff]
        %v4197 = vld [vmem:[%s4191 + $0x28] sm:$0xff]
        %v4198 = vld [vmem:[%s4191 + $0x30] sm:$0xff]
        %v4199 = vld [vmem:[%s4191 + $0x38] sm:$0xff]
        %v4200 = vld [vmem:[%s4191 + $0x40] sm:$0xff]
        %v4201 = vld [vmem:[%s4191 + $0x48] sm:$0xff]
        %v4202 = vld [vmem:[%s4191 + $0x50] sm:$0xff]
        %v4203 = vld [vmem:[%s4191 + $0x58] sm:$0xff]
        %v4204 = vld [vmem:[%s4191 + $0x60] sm:$0xff]
        %v4205 = vld [vmem:[%s4191 + $0x68] sm:$0xff]
        %v4206 = vld [vmem:[%s4191 + $0x70] sm:$0xff]
        %v4207 = vld [vmem:[%s4191 + $0x78] sm:$0xff]
        %v4208 = vld [vmem:[%s4191 + $0x80] sm:$0xff]
        %v4209 = vld [vmem:[%s4191 + $0x88] sm:$0xff]
        %v4210 = vld [vmem:[%s4191 + $0x90] sm:$0xff]
        %v4211 = vld [vmem:[%s4191 + $0x98] sm:$0xff]
        %v4212 = vld [vmem:[%s4191 + $0xa0] sm:$0xff]
        %v4213 = vld [vmem:[%s4191 + $0xa8] sm:$0xff]
        %v4214 = vld [vmem:[%s4191 + $0xb0] sm:$0xff]
        %v4215 = vld [vmem:[%s4191 + $0xb8] sm:$0xff]
        %v4216 = vld [vmem:[%s4191 + $0xc0] sm:$0xff]
        %v4217 = vld [vmem:[%s4191 + $0xc8] sm:$0xff]
        %v4218 = vld [vmem:[%s4191 + $0xd0] sm:$0xff]
        %v4219 = vld [vmem:[%s4191 + $0xd8] sm:$0xff]
        %v4220 = vld [vmem:[%s4191 + $0xe0] sm:$0xff]
        %v4221 = vld [vmem:[%s4191 + $0xe8] sm:$0xff]
        %v4222 = vld [vmem:[%s4191 + $0xf0] sm:$0xff]
        %v4223 = vld [vmem:[%s4191 + $0xf8] sm:$0xff]
        %v4256 = vunpack.c.l.b16 %v4192
        %v4257 = vunpack.c.h.b16 %v4192
        %v4258 = vunpack.c.l.b16 %v4193
        %v4259 = vunpack.c.h.b16 %v4193
        %v4260 = vunpack.c.l.b16 %v4194
        %v4261 = vunpack.c.h.b16 %v4194
        %v4262 = vunpack.c.l.b16 %v4195
        %v4263 = vunpack.c.h.b16 %v4195
        %v4264 = vunpack.c.l.b16 %v4196
        %v4265 = vunpack.c.h.b16 %v4196
        %v4266 = vunpack.c.l.b16 %v4197
        %v4267 = vunpack.c.h.b16 %v4197
        %v4268 = vunpack.c.l.b16 %v4198
        %v4269 = vunpack.c.h.b16 %v4198
        %v4270 = vunpack.c.l.b16 %v4199
        %v4271 = vunpack.c.h.b16 %v4199
        %v4272 = vunpack.c.l.b16 %v4200
        %v4273 = vunpack.c.h.b16 %v4200
        %v4274 = vunpack.c.l.b16 %v4201
        %v4275 = vunpack.c.h.b16 %v4201
        %v4276 = vunpack.c.l.b16 %v4202
        %v4277 = vunpack.c.h.b16 %v4202
        %v4278 = vunpack.c.l.b16 %v4203
        %v4279 = vunpack.c.h.b16 %v4203
        %v4280 = vunpack.c.l.b16 %v4204
        %v4281 = vunpack.c.h.b16 %v4204
        %v4282 = vunpack.c.l.b16 %v4205
        %v4283 = vunpack.c.h.b16 %v4205
        %v4284 = vunpack.c.l.b16 %v4206
        %v4285 = vunpack.c.h.b16 %v4206
        %v4286 = vunpack.c.l.b16 %v4207
        %v4287 = vunpack.c.h.b16 %v4207
        %v4288 = vunpack.c.l.b16 %v4208
        %v4289 = vunpack.c.h.b16 %v4208
        %v4290 = vunpack.c.l.b16 %v4209
        %v4291 = vunpack.c.h.b16 %v4209
        %v4292 = vunpack.c.l.b16 %v4210
        %v4293 = vunpack.c.h.b16 %v4210
        %v4294 = vunpack.c.l.b16 %v4211
        %v4295 = vunpack.c.h.b16 %v4211
        %v4296 = vunpack.c.l.b16 %v4212
        %v4297 = vunpack.c.h.b16 %v4212
        %v4298 = vunpack.c.l.b16 %v4213
        %v4299 = vunpack.c.h.b16 %v4213
        %v4300 = vunpack.c.l.b16 %v4214
        %v4301 = vunpack.c.h.b16 %v4214
        %v4302 = vunpack.c.l.b16 %v4215
        %v4303 = vunpack.c.h.b16 %v4215
        %v4304 = vunpack.c.l.b16 %v4216
        %v4305 = vunpack.c.h.b16 %v4216
        %v4306 = vunpack.c.l.b16 %v4217
        %v4307 = vunpack.c.h.b16 %v4217
        %v4308 = vunpack.c.l.b16 %v4218
        %v4309 = vunpack.c.h.b16 %v4218
        %v4310 = vunpack.c.l.b16 %v4219
        %v4311 = vunpack.c.h.b16 %v4219
        %v4312 = vunpack.c.l.b16 %v4220
        %v4313 = vunpack.c.h.b16 %v4220
        %v4314 = vunpack.c.l.b16 %v4221
        %v4315 = vunpack.c.h.b16 %v4221
        %v4316 = vunpack.c.l.b16 %v4222
        %v4317 = vunpack.c.h.b16 %v4222
        %v4318 = vunpack.c.l.b16 %v4223
        %v4319 = vunpack.c.h.b16 %v4223
        %v4320 = vpack.c.b16 %v4258, %v4256
        %v4321 = vpack.c.b16 %v4259, %v4257
        %v4322 = vpack.c.b16 %v4262, %v4260
        %v4323 = vpack.c.b16 %v4263, %v4261
        %v4324 = vpack.c.b16 %v4266, %v4264
        %v4325 = vpack.c.b16 %v4267, %v4265
        %v4326 = vpack.c.b16 %v4270, %v4268
        %v4327 = vpack.c.b16 %v4271, %v4269
        %v4328 = vpack.c.b16 %v4274, %v4272
        %v4329 = vpack.c.b16 %v4275, %v4273
        %v4330 = vpack.c.b16 %v4278, %v4276
        %v4331 = vpack.c.b16 %v4279, %v4277
        %v4332 = vpack.c.b16 %v4282, %v4280
        %v4333 = vpack.c.b16 %v4283, %v4281
        %v4334 = vpack.c.b16 %v4286, %v4284
        %v4335 = vpack.c.b16 %v4287, %v4285
        %v4336 = vpack.c.b16 %v4290, %v4288
        %v4337 = vpack.c.b16 %v4291, %v4289
        %v4338 = vpack.c.b16 %v4294, %v4292
        %v4339 = vpack.c.b16 %v4295, %v4293
        %v4340 = vpack.c.b16 %v4298, %v4296
        %v4341 = vpack.c.b16 %v4299, %v4297
        %v4342 = vpack.c.b16 %v4302, %v4300
        %v4343 = vpack.c.b16 %v4303, %v4301
        %v4344 = vpack.c.b16 %v4306, %v4304
        %v4345 = vpack.c.b16 %v4307, %v4305
        %v4346 = vpack.c.b16 %v4310, %v4308
        %v4347 = vpack.c.b16 %v4311, %v4309
        %v4348 = vpack.c.b16 %v4314, %v4312
        %v4349 = vpack.c.b16 %v4315, %v4313
        %v4350 = vpack.c.b16 %v4318, %v4316
        %v4351 = vpack.c.b16 %v4319, %v4317
        %4384 = vmatprep.subr.bf16.mxu0 %v4321
        %4385 = vmatpush1.bf16.msra.mxu0 %v4320
        %4386 = vmatprep.subr.bf16.mxu0 %v4323
        %4387 = vmatpush1.bf16.msra.mxu0 %v4322
        %4388 = vmatprep.subr.bf16.mxu0 %v4325
        %4389 = vmatpush1.bf16.msra.mxu0 %v4324
        %4390 = vmatprep.subr.bf16.mxu0 %v4327
        %4391 = vmatpush1.bf16.msra.mxu0 %v4326
        %4392 = vmatprep.subr.bf16.mxu0 %v4329
        %4393 = vmatpush1.bf16.msra.mxu0 %v4328
        %4394 = vmatprep.subr.bf16.mxu0 %v4331
        %4395 = vmatpush1.bf16.msra.mxu0 %v4330
        %4396 = vmatprep.subr.bf16.mxu0 %v4333
        %4397 = vmatpush1.bf16.msra.mxu0 %v4332
        %4398 = vmatprep.subr.bf16.mxu0 %v4335
        %4399 = vmatpush1.bf16.msra.mxu0 %v4334
        %4400 = vmatprep.subr.bf16.mxu0 %v4337
        %4401 = vmatpush1.bf16.msra.mxu0 %v4336
        %4402 = vmatprep.subr.bf16.mxu0 %v4339
        %4403 = vmatpush1.bf16.msra.mxu0 %v4338
        %4404 = vmatprep.subr.bf16.mxu0 %v4341
        %4405 = vmatpush1.bf16.msra.mxu0 %v4340
        %4406 = vmatprep.subr.bf16.mxu0 %v4343
        %4407 = vmatpush1.bf16.msra.mxu0 %v4342
        %4408 = vmatprep.subr.bf16.mxu0 %v4345
        %4409 = vmatpush1.bf16.msra.mxu0 %v4344
        %4410 = vmatprep.subr.bf16.mxu0 %v4347
        %4411 = vmatpush1.bf16.msra.mxu0 %v4346
        %4412 = vmatprep.subr.bf16.mxu0 %v4349
        %4413 = vmatpush1.bf16.msra.mxu0 %v4348
        %4414 = vmatprep.subr.bf16.mxu0 %v4351
        %4415 = vmatpush1.bf16.msra.mxu0 %v4350
        %4416 = vmatprep.mubr.bf16.mxu0 %v4190
        %4417 = vmatmul.mubr.bf16.gmra.mrb[0].mxu0 %v4189
        %v4418 = vpop.f32.mrb[0].mxu0
        %v4419 = vadd.f32 0.0, %v4418
        %v4420 = vpop.f32.mrb[0].mxu0
        %v4421 = vadd.f32 0.0, %v4420
        %v4422 = vpop.f32.mrb[0].mxu0
        %v4423 = vpop.f32.mrb[0].mxu0
        %4424 = vdwg.mxu0
        %v4425 = vadd.f32 %v4137, %v4419
        %v4426 = vadd.f32 %v4139, %v4421
        %s4427 = scalar_lea.vmem %s8, 6
        %v4428 = vld [vmem:[%s4427] sm:$0x3]
        %v4430 = vsel %vm3574, %v4428, 0
        %4432 = vmatprep.subr.bf16.mxu0 %v3583
        %4433 = vmatpush1.bf16.msra.mxu0 %v3580
        %4434 = vmatprep.subr.bf16.mxu0 0
        %4435 = vmatpush1.bf16.msra.mxu0 0
        %4436 = vmatprep.subr.bf16.mxu0 0
        %4437 = vmatpush1.bf16.msra.mxu0 0
        %4438 = vmatprep.subr.bf16.mxu0 0
        %4439 = vmatpush1.bf16.msra.mxu0 0
        %4440 = vmatprep.subr.bf16.mxu0 0
        %4441 = vmatpush1.bf16.msra.mxu0 0
        %4442 = vmatprep.subr.bf16.mxu0 0
        %4443 = vmatpush1.bf16.msra.mxu0 0
        %4444 = vmatprep.subr.bf16.mxu0 0
        %4445 = vmatpush1.bf16.msra.mxu0 0
        %4446 = vmatprep.subr.bf16.mxu0 0
        %4447 = vmatpush1.bf16.msra.mxu0 0
        %4448 = vmatprep.subr.bf16.mxu0 0
        %4449 = vmatpush1.bf16.msra.mxu0 0
        %4450 = vmatprep.subr.bf16.mxu0 0
        %4451 = vmatpush1.bf16.msra.mxu0 0
        %4452 = vmatprep.subr.bf16.mxu0 0
        %4453 = vmatpush1.bf16.msra.mxu0 0
        %4454 = vmatprep.subr.bf16.mxu0 0
        %4455 = vmatpush1.bf16.msra.mxu0 0
        %4456 = vmatprep.subr.bf16.mxu0 0
        %4457 = vmatpush1.bf16.msra.mxu0 0
        %4458 = vmatprep.subr.bf16.mxu0 0
        %4459 = vmatpush1.bf16.msra.mxu0 0
        %4460 = vmatprep.subr.bf16.mxu0 0
        %4461 = vmatpush1.bf16.msra.mxu0 0
        %4462 = vmatprep.subr.bf16.mxu0 0
        %4463 = vmatpush1.bf16.msra.mxu0 0
        %4464 = vmatprep.mubr.bf16.mxu0 0
        %4465 = vmatmul.mubr.bf16.gmra.mrb[0].mxu0 %v4430
        %v4466 = vpop.f32.mrb[0].mxu0
        %v4467 = vadd.f32 0.0, %v4466
        %v4468 = vpop.f32.mrb[0].mxu0
        %v4469 = vadd.f32 0.0, %v4468
        %v4470 = vpop.f32.mrb[0].mxu0
        %v4471 = vpop.f32.mrb[0].mxu0
        %4472 = vdwg.mxu0
        %v4473 = vpack.c.bf16 %v4467, %v4467
        %v4474 = vpack.c.bf16 %v4469, %v4469
        %s4475 = scalar_lea.vmem [#allocation5], 768
        %v4476 = vld [vmem:[%s4475] sm:$0xff]
        %v4477 = vld [vmem:[%s4475 + $0x8] sm:$0xff]
        %v4478 = vld [vmem:[%s4475 + $0x10] sm:$0xff]
        %v4479 = vld [vmem:[%s4475 + $0x18] sm:$0xff]
        %v4480 = vld [vmem:[%s4475 + $0x20] sm:$0xff]
        %v4481 = vld [vmem:[%s4475 + $0x28] sm:$0xff]
        %v4482 = vld [vmem:[%s4475 + $0x30] sm:$0xff]
        %v4483 = vld [vmem:[%s4475 + $0x38] sm:$0xff]
        %v4484 = vld [vmem:[%s4475 + $0x40] sm:$0xff]
        %v4485 = vld [vmem:[%s4475 + $0x48] sm:$0xff]
        %v4486 = vld [vmem:[%s4475 + $0x50] sm:$0xff]
        %v4487 = vld [vmem:[%s4475 + $0x58] sm:$0xff]
        %v4488 = vld [vmem:[%s4475 + $0x60] sm:$0xff]
        %v4489 = vld [vmem:[%s4475 + $0x68] sm:$0xff]
        %v4490 = vld [vmem:[%s4475 + $0x70] sm:$0xff]
        %v4491 = vld [vmem:[%s4475 + $0x78] sm:$0xff]
        %v4492 = vld [vmem:[%s4475 + $0x80] sm:$0xff]
        %v4493 = vld [vmem:[%s4475 + $0x88] sm:$0xff]
        %v4494 = vld [vmem:[%s4475 + $0x90] sm:$0xff]
        %v4495 = vld [vmem:[%s4475 + $0x98] sm:$0xff]
        %v4496 = vld [vmem:[%s4475 + $0xa0] sm:$0xff]
        %v4497 = vld [vmem:[%s4475 + $0xa8] sm:$0xff]
        %v4498 = vld [vmem:[%s4475 + $0xb0] sm:$0xff]
        %v4499 = vld [vmem:[%s4475 + $0xb8] sm:$0xff]
        %v4500 = vld [vmem:[%s4475 + $0xc0] sm:$0xff]
        %v4501 = vld [vmem:[%s4475 + $0xc8] sm:$0xff]
        %v4502 = vld [vmem:[%s4475 + $0xd0] sm:$0xff]
        %v4503 = vld [vmem:[%s4475 + $0xd8] sm:$0xff]
        %v4504 = vld [vmem:[%s4475 + $0xe0] sm:$0xff]
        %v4505 = vld [vmem:[%s4475 + $0xe8] sm:$0xff]
        %v4506 = vld [vmem:[%s4475 + $0xf0] sm:$0xff]
        %v4507 = vld [vmem:[%s4475 + $0xf8] sm:$0xff]
        %v4540 = vunpack.c.l.b16 %v4476
        %v4541 = vunpack.c.h.b16 %v4476
        %v4542 = vunpack.c.l.b16 %v4477
        %v4543 = vunpack.c.h.b16 %v4477
        %v4544 = vunpack.c.l.b16 %v4478
        %v4545 = vunpack.c.h.b16 %v4478
        %v4546 = vunpack.c.l.b16 %v4479
        %v4547 = vunpack.c.h.b16 %v4479
        %v4548 = vunpack.c.l.b16 %v4480
        %v4549 = vunpack.c.h.b16 %v4480
        %v4550 = vunpack.c.l.b16 %v4481
        %v4551 = vunpack.c.h.b16 %v4481
        %v4552 = vunpack.c.l.b16 %v4482
        %v4553 = vunpack.c.h.b16 %v4482
        %v4554 = vunpack.c.l.b16 %v4483
        %v4555 = vunpack.c.h.b16 %v4483
        %v4556 = vunpack.c.l.b16 %v4484
        %v4557 = vunpack.c.h.b16 %v4484
        %v4558 = vunpack.c.l.b16 %v4485
        %v4559 = vunpack.c.h.b16 %v4485
        %v4560 = vunpack.c.l.b16 %v4486
        %v4561 = vunpack.c.h.b16 %v4486
        %v4562 = vunpack.c.l.b16 %v4487
        %v4563 = vunpack.c.h.b16 %v4487
        %v4564 = vunpack.c.l.b16 %v4488
        %v4565 = vunpack.c.h.b16 %v4488
        %v4566 = vunpack.c.l.b16 %v4489
        %v4567 = vunpack.c.h.b16 %v4489
        %v4568 = vunpack.c.l.b16 %v4490
        %v4569 = vunpack.c.h.b16 %v4490
        %v4570 = vunpack.c.l.b16 %v4491
        %v4571 = vunpack.c.h.b16 %v4491
        %v4572 = vunpack.c.l.b16 %v4492
        %v4573 = vunpack.c.h.b16 %v4492
        %v4574 = vunpack.c.l.b16 %v4493
        %v4575 = vunpack.c.h.b16 %v4493
        %v4576 = vunpack.c.l.b16 %v4494
        %v4577 = vunpack.c.h.b16 %v4494
        %v4578 = vunpack.c.l.b16 %v4495
        %v4579 = vunpack.c.h.b16 %v4495
        %v4580 = vunpack.c.l.b16 %v4496
        %v4581 = vunpack.c.h.b16 %v4496
        %v4582 = vunpack.c.l.b16 %v4497
        %v4583 = vunpack.c.h.b16 %v4497
        %v4584 = vunpack.c.l.b16 %v4498
        %v4585 = vunpack.c.h.b16 %v4498
        %v4586 = vunpack.c.l.b16 %v4499
        %v4587 = vunpack.c.h.b16 %v4499
        %v4588 = vunpack.c.l.b16 %v4500
        %v4589 = vunpack.c.h.b16 %v4500
        %v4590 = vunpack.c.l.b16 %v4501
        %v4591 = vunpack.c.h.b16 %v4501
        %v4592 = vunpack.c.l.b16 %v4502
        %v4593 = vunpack.c.h.b16 %v4502
        %v4594 = vunpack.c.l.b16 %v4503
        %v4595 = vunpack.c.h.b16 %v4503
        %v4596 = vunpack.c.l.b16 %v4504
        %v4597 = vunpack.c.h.b16 %v4504
        %v4598 = vunpack.c.l.b16 %v4505
        %v4599 = vunpack.c.h.b16 %v4505
        %v4600 = vunpack.c.l.b16 %v4506
        %v4601 = vunpack.c.h.b16 %v4506
        %v4602 = vunpack.c.l.b16 %v4507
        %v4603 = vunpack.c.h.b16 %v4507
        %v4604 = vpack.c.b16 %v4542, %v4540
        %v4605 = vpack.c.b16 %v4543, %v4541
        %v4606 = vpack.c.b16 %v4546, %v4544
        %v4607 = vpack.c.b16 %v4547, %v4545
        %v4608 = vpack.c.b16 %v4550, %v4548
        %v4609 = vpack.c.b16 %v4551, %v4549
        %v4610 = vpack.c.b16 %v4554, %v4552
        %v4611 = vpack.c.b16 %v4555, %v4553
        %v4612 = vpack.c.b16 %v4558, %v4556
        %v4613 = vpack.c.b16 %v4559, %v4557
        %v4614 = vpack.c.b16 %v4562, %v4560
        %v4615 = vpack.c.b16 %v4563, %v4561
        %v4616 = vpack.c.b16 %v4566, %v4564
        %v4617 = vpack.c.b16 %v4567, %v4565
        %v4618 = vpack.c.b16 %v4570, %v4568
        %v4619 = vpack.c.b16 %v4571, %v4569
        %v4620 = vpack.c.b16 %v4574, %v4572
        %v4621 = vpack.c.b16 %v4575, %v4573
        %v4622 = vpack.c.b16 %v4578, %v4576
        %v4623 = vpack.c.b16 %v4579, %v4577
        %v4624 = vpack.c.b16 %v4582, %v4580
        %v4625 = vpack.c.b16 %v4583, %v4581
        %v4626 = vpack.c.b16 %v4586, %v4584
        %v4627 = vpack.c.b16 %v4587, %v4585
        %v4628 = vpack.c.b16 %v4590, %v4588
        %v4629 = vpack.c.b16 %v4591, %v4589
        %v4630 = vpack.c.b16 %v4594, %v4592
        %v4631 = vpack.c.b16 %v4595, %v4593
        %v4632 = vpack.c.b16 %v4598, %v4596
        %v4633 = vpack.c.b16 %v4599, %v4597
        %v4634 = vpack.c.b16 %v4602, %v4600
        %v4635 = vpack.c.b16 %v4603, %v4601
        %4668 = vmatprep.subr.bf16.mxu0 %v4605
        %4669 = vmatpush1.bf16.msra.mxu0 %v4604
        %4670 = vmatprep.subr.bf16.mxu0 %v4607
        %4671 = vmatpush1.bf16.msra.mxu0 %v4606
        %4672 = vmatprep.subr.bf16.mxu0 %v4609
        %4673 = vmatpush1.bf16.msra.mxu0 %v4608
        %4674 = vmatprep.subr.bf16.mxu0 %v4611
        %4675 = vmatpush1.bf16.msra.mxu0 %v4610
        %4676 = vmatprep.subr.bf16.mxu0 %v4613
        %4677 = vmatpush1.bf16.msra.mxu0 %v4612
        %4678 = vmatprep.subr.bf16.mxu0 %v4615
        %4679 = vmatpush1.bf16.msra.mxu0 %v4614
        %4680 = vmatprep.subr.bf16.mxu0 %v4617
        %4681 = vmatpush1.bf16.msra.mxu0 %v4616
        %4682 = vmatprep.subr.bf16.mxu0 %v4619
        %4683 = vmatpush1.bf16.msra.mxu0 %v4618
        %4684 = vmatprep.subr.bf16.mxu0 %v4621
        %4685 = vmatpush1.bf16.msra.mxu0 %v4620
        %4686 = vmatprep.subr.bf16.mxu0 %v4623
        %4687 = vmatpush1.bf16.msra.mxu0 %v4622
        %4688 = vmatprep.subr.bf16.mxu0 %v4625
        %4689 = vmatpush1.bf16.msra.mxu0 %v4624
        %4690 = vmatprep.subr.bf16.mxu0 %v4627
        %4691 = vmatpush1.bf16.msra.mxu0 %v4626
        %4692 = vmatprep.subr.bf16.mxu0 %v4629
        %4693 = vmatpush1.bf16.msra.mxu0 %v4628
        %4694 = vmatprep.subr.bf16.mxu0 %v4631
        %4695 = vmatpush1.bf16.msra.mxu0 %v4630
        %4696 = vmatprep.subr.bf16.mxu0 %v4633
        %4697 = vmatpush1.bf16.msra.mxu0 %v4632
        %4698 = vmatprep.subr.bf16.mxu0 %v4635
        %4699 = vmatpush1.bf16.msra.mxu0 %v4634
        %4700 = vmatprep.mubr.bf16.mxu0 %v4474
        %4701 = vmatmul.mubr.bf16.gmra.mrb[0].mxu0 %v4473
        %v4702 = vpop.f32.mrb[0].mxu0
        %v4703 = vadd.f32 0.0, %v4702
        %v4704 = vpop.f32.mrb[0].mxu0
        %v4705 = vadd.f32 0.0, %v4704
        %v4706 = vpop.f32.mrb[0].mxu0
        %v4707 = vpop.f32.mrb[0].mxu0
        %4708 = vdwg.mxu0
        %v4709 = vadd.f32 %v4425, %v4703
        %v4710 = vadd.f32 %v4426, %v4705
        %v4711 = vld [vmem:[%s10] sm:$0x3]
        %v4713 = vlaneseq
        %v4714 = vshrl.u32 %v4713, 7
        %v4715 = vsub.s32 0, %v4714
        %v4716 = vrot.slane %v4711, %v4715
        %v4717 = vlaneseq
        %v4718 = vshrl.u32 %v4717, 7
        %v4719 = vsub.s32 1, %v4718
        %v4720 = vrot.slane %v4711, %v4719
        %v4723 = vadd.f32 %v4709, %v4716
        %v4724 = vadd.f32 %v4710, %v4720
        %v4725 = vmax.f32 %v4723, 0.0
        %v4726 = vmax.f32 %v4724, 0.0
        %v4727 = vpack.c.bf16 %v4725, %v4725
        %v4728 = vpack.c.bf16 %v4726, %v4726
        %v4729 = vld [vmem:[%s12] sm:$0x1]
        %v4730 = vld [vmem:[%s11] sm:$0xf]
        %v4731 = vld [vmem:[%s11 + $0x4] sm:$0xf]
        %v4732 = vld [vmem:[%s11 + $0x8] sm:$0xf]
        %v4733 = vld [vmem:[%s11 + $0xc] sm:$0xf]
        %v4734 = vld [vmem:[%s11 + $0x10] sm:$0xf]
        %v4735 = vld [vmem:[%s11 + $0x14] sm:$0xf]
        %v4736 = vld [vmem:[%s11 + $0x18] sm:$0xf]
        %v4737 = vld [vmem:[%s11 + $0x1c] sm:$0xf]
        %v4738 = vld [vmem:[%s11 + $0x20] sm:$0xf]
        %v4739 = vld [vmem:[%s11 + $0x24] sm:$0xf]
        %v4740 = vld [vmem:[%s11 + $0x28] sm:$0xf]
        %v4741 = vld [vmem:[%s11 + $0x2c] sm:$0xf]
        %v4742 = vld [vmem:[%s11 + $0x30] sm:$0xf]
        %v4743 = vld [vmem:[%s11 + $0x34] sm:$0xf]
        %v4744 = vld [vmem:[%s11 + $0x38] sm:$0xf]
        %v4745 = vld [vmem:[%s11 + $0x3c] sm:$0xf]
        %v4746 = vld [vmem:[%s11 + $0x40] sm:$0xf]
        %v4747 = vld [vmem:[%s11 + $0x44] sm:$0xf]
        %v4748 = vld [vmem:[%s11 + $0x48] sm:$0xf]
        %v4749 = vld [vmem:[%s11 + $0x4c] sm:$0xf]
        %v4750 = vld [vmem:[%s11 + $0x50] sm:$0xf]
        %v4751 = vld [vmem:[%s11 + $0x54] sm:$0xf]
        %v4752 = vld [vmem:[%s11 + $0x58] sm:$0xf]
        %v4753 = vld [vmem:[%s11 + $0x5c] sm:$0xf]
        %v4754 = vld [vmem:[%s11 + $0x60] sm:$0xf]
        %v4755 = vld [vmem:[%s11 + $0x64] sm:$0xf]
        %v4756 = vld [vmem:[%s11 + $0x68] sm:$0xf]
        %v4757 = vld [vmem:[%s11 + $0x6c] sm:$0xf]
        %v4758 = vld [vmem:[%s11 + $0x70] sm:$0xf]
        %v4759 = vld [vmem:[%s11 + $0x74] sm:$0xf]
        %v4760 = vld [vmem:[%s11 + $0x78] sm:$0xf]
        %v4761 = vld [vmem:[%s11 + $0x7c] sm:$0xf]
        %v4794 = vunpack.c.l.b16 %v4730
        %v4795 = vunpack.c.l.b16 %v4731
        %v4796 = vunpack.c.l.b16 %v4732
        %v4797 = vunpack.c.l.b16 %v4733
        %v4798 = vunpack.c.l.b16 %v4734
        %v4799 = vunpack.c.l.b16 %v4735
        %v4800 = vunpack.c.l.b16 %v4736
        %v4801 = vunpack.c.l.b16 %v4737
        %v4802 = vunpack.c.l.b16 %v4738
        %v4803 = vunpack.c.l.b16 %v4739
        %v4804 = vunpack.c.l.b16 %v4740
        %v4805 = vunpack.c.l.b16 %v4741
        %v4806 = vunpack.c.l.b16 %v4742
        %v4807 = vunpack.c.l.b16 %v4743
        %v4808 = vunpack.c.l.b16 %v4744
        %v4809 = vunpack.c.l.b16 %v4745
        %v4810 = vunpack.c.l.b16 %v4746
        %v4811 = vunpack.c.l.b16 %v4747
        %v4812 = vunpack.c.l.b16 %v4748
        %v4813 = vunpack.c.l.b16 %v4749
        %v4814 = vunpack.c.l.b16 %v4750
        %v4815 = vunpack.c.l.b16 %v4751
        %v4816 = vunpack.c.l.b16 %v4752
        %v4817 = vunpack.c.l.b16 %v4753
        %v4818 = vunpack.c.l.b16 %v4754
        %v4819 = vunpack.c.l.b16 %v4755
        %v4820 = vunpack.c.l.b16 %v4756
        %v4821 = vunpack.c.l.b16 %v4757
        %v4822 = vunpack.c.l.b16 %v4758
        %v4823 = vunpack.c.l.b16 %v4759
        %v4824 = vunpack.c.l.b16 %v4760
        %v4825 = vunpack.c.l.b16 %v4761
        %v4826 = vpack.c.b16 %v4795, %v4794
        %v4827 = vpack.c.b16 %v4797, %v4796
        %v4828 = vpack.c.b16 %v4799, %v4798
        %v4829 = vpack.c.b16 %v4801, %v4800
        %v4830 = vpack.c.b16 %v4803, %v4802
        %v4831 = vpack.c.b16 %v4805, %v4804
        %v4832 = vpack.c.b16 %v4807, %v4806
        %v4833 = vpack.c.b16 %v4809, %v4808
        %v4834 = vpack.c.b16 %v4811, %v4810
        %v4835 = vpack.c.b16 %v4813, %v4812
        %v4836 = vpack.c.b16 %v4815, %v4814
        %v4837 = vpack.c.b16 %v4817, %v4816
        %v4838 = vpack.c.b16 %v4819, %v4818
        %v4839 = vpack.c.b16 %v4821, %v4820
        %v4840 = vpack.c.b16 %v4823, %v4822
        %v4841 = vpack.c.b16 %v4825, %v4824
        %4858 = vmatprep.subr.bf16.mxu0 0
        %4859 = vmatpush1.bf16.msra.mxu0 %v4826
        %4860 = vmatprep.subr.bf16.mxu0 0
        %4861 = vmatpush1.bf16.msra.mxu0 %v4827
        %4862 = vmatprep.subr.bf16.mxu0 0
        %4863 = vmatpush1.bf16.msra.mxu0 %v4828
        %4864 = vmatprep.subr.bf16.mxu0 0
        %4865 = vmatpush1.bf16.msra.mxu0 %v4829
        %4866 = vmatprep.subr.bf16.mxu0 0
        %4867 = vmatpush1.bf16.msra.mxu0 %v4830
        %4868 = vmatprep.subr.bf16.mxu0 0
        %4869 = vmatpush1.bf16.msra.mxu0 %v4831
        %4870 = vmatprep.subr.bf16.mxu0 0
        %4871 = vmatpush1.bf16.msra.mxu0 %v4832
        %4872 = vmatprep.subr.bf16.mxu0 0
        %4873 = vmatpush1.bf16.msra.mxu0 %v4833
        %4874 = vmatprep.subr.bf16.mxu0 0
        %4875 = vmatpush1.bf16.msra.mxu0 %v4834
        %4876 = vmatprep.subr.bf16.mxu0 0
        %4877 = vmatpush1.bf16.msra.mxu0 %v4835
        %4878 = vmatprep.subr.bf16.mxu0 0
        %4879 = vmatpush1.bf16.msra.mxu0 %v4836
        %4880 = vmatprep.subr.bf16.mxu0 0
        %4881 = vmatpush1.bf16.msra.mxu0 %v4837
        %4882 = vmatprep.subr.bf16.mxu0 0
        %4883 = vmatpush1.bf16.msra.mxu0 %v4838
        %4884 = vmatprep.subr.bf16.mxu0 0
        %4885 = vmatpush1.bf16.msra.mxu0 %v4839
        %4886 = vmatprep.subr.bf16.mxu0 0
        %4887 = vmatpush1.bf16.msra.mxu0 %v4840
        %4888 = vmatprep.subr.bf16.mxu0 0
        %4889 = vmatpush1.bf16.msra.mxu0 %v4841
        %4890 = vmatprep.mubr.bf16.mxu0 %v4728
        %4891 = vmatmul.mubr.bf16.gmra.mrb[0].mxu0 %v4727
        %v4892 = vpop.f32.mrb[0].mxu0
        %v4893 = vadd.f32 0.0, %v4892
        %v4894 = vpop.f32.mrb[0].mxu0
        %v4895 = vpop.f32.mrb[0].mxu0
        %v4896 = vpop.f32.mrb[0].mxu0
        %4897 = vdwg.mxu0
        %v4898 = vadd.f32 %v4729, %v4893
        %v4899 = vld [vmem:[%s11 + $0x80] sm:$0xf]
        %v4900 = vld [vmem:[%s11 + $0x84] sm:$0xf]
        %v4901 = vld [vmem:[%s11 + $0x88] sm:$0xf]
        %v4902 = vld [vmem:[%s11 + $0x8c] sm:$0xf]
        %v4903 = vld [vmem:[%s11 + $0x90] sm:$0xf]
        %v4904 = vld [vmem:[%s11 + $0x94] sm:$0xf]
        %v4905 = vld [vmem:[%s11 + $0x98] sm:$0xf]
        %v4906 = vld [vmem:[%s11 + $0x9c] sm:$0xf]
        %v4907 = vld [vmem:[%s11 + $0xa0] sm:$0xf]
        %v4908 = vld [vmem:[%s11 + $0xa4] sm:$0xf]
        %v4909 = vld [vmem:[%s11 + $0xa8] sm:$0xf]
        %v4910 = vld [vmem:[%s11 + $0xac] sm:$0xf]
        %v4911 = vld [vmem:[%s11 + $0xb0] sm:$0xf]
        %v4912 = vld [vmem:[%s11 + $0xb4] sm:$0xf]
        %v4913 = vld [vmem:[%s11 + $0xb8] sm:$0xf]
        %v4914 = vld [vmem:[%s11 + $0xbc] sm:$0xf]
        %v4915 = vld [vmem:[%s11 + $0xc0] sm:$0xf]
        %v4916 = vld [vmem:[%s11 + $0xc4] sm:$0xf]
        %v4917 = vld [vmem:[%s11 + $0xc8] sm:$0xf]
        %v4918 = vld [vmem:[%s11 + $0xcc] sm:$0xf]
        %v4919 = vld [vmem:[%s11 + $0xd0] sm:$0xf]
        %v4920 = vld [vmem:[%s11 + $0xd4] sm:$0xf]
        %v4921 = vld [vmem:[%s11 + $0xd8] sm:$0xf]
        %v4922 = vld [vmem:[%s11 + $0xdc] sm:$0xf]
        %v4923 = vld [vmem:[%s11 + $0xe0] sm:$0xf]
        %v4924 = vld [vmem:[%s11 + $0xe4] sm:$0xf]
        %v4925 = vld [vmem:[%s11 + $0xe8] sm:$0xf]
        %v4926 = vld [vmem:[%s11 + $0xec] sm:$0xf]
        %v4927 = vld [vmem:[%s11 + $0xf0] sm:$0xf]
        %v4928 = vld [vmem:[%s11 + $0xf4] sm:$0xf]
        %v4929 = vld [vmem:[%s11 + $0xf8] sm:$0xf]
        %v4930 = vld [vmem:[%s11 + $0xfc] sm:$0xf]
        %v4932 = vshrl.u32 %v4727, 16
        %v4935 = vshrl.u32 %v4728, 16
        %v4971 = vunpack.c.l.b16 %v4899
        %v4972 = vunpack.c.l.b16 %v4900
        %v4973 = vunpack.c.l.b16 %v4901
        %v4974 = vunpack.c.l.b16 %v4902
        %v4975 = vunpack.c.l.b16 %v4903
        %v4976 = vunpack.c.l.b16 %v4904
        %v4977 = vunpack.c.l.b16 %v4905
        %v4978 = vunpack.c.l.b16 %v4906
        %v4979 = vunpack.c.l.b16 %v4907
        %v4980 = vunpack.c.l.b16 %v4908
        %v4981 = vunpack.c.l.b16 %v4909
        %v4982 = vunpack.c.l.b16 %v4910
        %v4983 = vunpack.c.l.b16 %v4911
        %v4984 = vunpack.c.l.b16 %v4912
        %v4985 = vunpack.c.l.b16 %v4913
        %v4986 = vunpack.c.l.b16 %v4914
        %v4987 = vunpack.c.l.b16 %v4915
        %v4988 = vunpack.c.l.b16 %v4916
        %v4989 = vunpack.c.l.b16 %v4917
        %v4990 = vunpack.c.l.b16 %v4918
        %v4991 = vunpack.c.l.b16 %v4919
        %v4992 = vunpack.c.l.b16 %v4920
        %v4993 = vunpack.c.l.b16 %v4921
        %v4994 = vunpack.c.l.b16 %v4922
        %v4995 = vunpack.c.l.b16 %v4923
        %v4996 = vunpack.c.l.b16 %v4924
        %v4997 = vunpack.c.l.b16 %v4925
        %v4998 = vunpack.c.l.b16 %v4926
        %v4999 = vunpack.c.l.b16 %v4927
        %v5000 = vunpack.c.l.b16 %v4928
        %v5001 = vunpack.c.l.b16 %v4929
        %v5002 = vunpack.c.l.b16 %v4930
        %v5003 = vpack.c.b16 %v4972, %v4971
        %v5004 = vpack.c.b16 %v4974, %v4973
        %v5005 = vpack.c.b16 %v4976, %v4975
        %v5006 = vpack.c.b16 %v4978, %v4977
        %v5007 = vpack.c.b16 %v4980, %v4979
        %v5008 = vpack.c.b16 %v4982, %v4981
        %v5009 = vpack.c.b16 %v4984, %v4983
        %v5010 = vpack.c.b16 %v4986, %v4985
        %v5011 = vpack.c.b16 %v4988, %v4987
        %v5012 = vpack.c.b16 %v4990, %v4989
        %v5013 = vpack.c.b16 %v4992, %v4991
        %v5014 = vpack.c.b16 %v4994, %v4993
        %v5015 = vpack.c.b16 %v4996, %v4995
        %v5016 = vpack.c.b16 %v4998, %v4997
        %v5017 = vpack.c.b16 %v5000, %v4999
        %v5018 = vpack.c.b16 %v5002, %v5001
        %5035 = vmatprep.subr.bf16.mxu0 0
        %5036 = vmatpush1.bf16.msra.mxu0 %v5003
        %5037 = vmatprep.subr.bf16.mxu0 0
        %5038 = vmatpush1.bf16.msra.mxu0 %v5004
        %5039 = vmatprep.subr.bf16.mxu0 0
        %5040 = vmatpush1.bf16.msra.mxu0 %v5005
        %5041 = vmatprep.subr.bf16.mxu0 0
        %5042 = vmatpush1.bf16.msra.mxu0 %v5006
        %5043 = vmatprep.subr.bf16.mxu0 0
        %5044 = vmatpush1.bf16.msra.mxu0 %v5007
        %5045 = vmatprep.subr.bf16.mxu0 0
        %5046 = vmatpush1.bf16.msra.mxu0 %v5008
        %5047 = vmatprep.subr.bf16.mxu0 0
        %5048 = vmatpush1.bf16.msra.mxu0 %v5009
        %5049 = vmatprep.subr.bf16.mxu0 0
        %5050 = vmatpush1.bf16.msra.mxu0 %v5010
        %5051 = vmatprep.subr.bf16.mxu0 0
        %5052 = vmatpush1.bf16.msra.mxu0 %v5011
        %5053 = vmatprep.subr.bf16.mxu0 0
        %5054 = vmatpush1.bf16.msra.mxu0 %v5012
        %5055 = vmatprep.subr.bf16.mxu0 0
        %5056 = vmatpush1.bf16.msra.mxu0 %v5013
        %5057 = vmatprep.subr.bf16.mxu0 0
        %5058 = vmatpush1.bf16.msra.mxu0 %v5014
        %5059 = vmatprep.subr.bf16.mxu0 0
        %5060 = vmatpush1.bf16.msra.mxu0 %v5015
        %5061 = vmatprep.subr.bf16.mxu0 0
        %5062 = vmatpush1.bf16.msra.mxu0 %v5016
        %5063 = vmatprep.subr.bf16.mxu0 0
        %5064 = vmatpush1.bf16.msra.mxu0 %v5017
        %5065 = vmatprep.subr.bf16.mxu0 0
        %5066 = vmatpush1.bf16.msra.mxu0 %v5018
        %5067 = vmatprep.mubr.bf16.mxu0 %v4935
        %5068 = vmatmul.mubr.bf16.gmra.mrb[0].mxu0 %v4932
        %v5069 = vpop.f32.mrb[0].mxu0
        %v5070 = vadd.f32 0.0, %v5069
        %v5071 = vpop.f32.mrb[0].mxu0
        %v5072 = vpop.f32.mrb[0].mxu0
        %v5073 = vpop.f32.mrb[0].mxu0
        %5074 = vdwg.mxu0
        %v5075 = vadd.f32 %v4898, %v5070
        %v5076 = vld [vmem:[%s11 + $0x100] sm:$0xf]
        %v5077 = vld [vmem:[%s11 + $0x104] sm:$0xf]
        %v5078 = vld [vmem:[%s11 + $0x108] sm:$0xf]
        %v5079 = vld [vmem:[%s11 + $0x10c] sm:$0xf]
        %v5080 = vld [vmem:[%s11 + $0x110] sm:$0xf]
        %v5081 = vld [vmem:[%s11 + $0x114] sm:$0xf]
        %v5082 = vld [vmem:[%s11 + $0x118] sm:$0xf]
        %v5083 = vld [vmem:[%s11 + $0x11c] sm:$0xf]
        %v5084 = vld [vmem:[%s11 + $0x120] sm:$0xf]
        %v5085 = vld [vmem:[%s11 + $0x124] sm:$0xf]
        %v5086 = vld [vmem:[%s11 + $0x128] sm:$0xf]
        %v5087 = vld [vmem:[%s11 + $0x12c] sm:$0xf]
        %v5088 = vld [vmem:[%s11 + $0x130] sm:$0xf]
        %v5089 = vld [vmem:[%s11 + $0x134] sm:$0xf]
        %v5090 = vld [vmem:[%s11 + $0x138] sm:$0xf]
        %v5091 = vld [vmem:[%s11 + $0x13c] sm:$0xf]
        %v5092 = vld [vmem:[%s11 + $0x140] sm:$0xf]
        %v5093 = vld [vmem:[%s11 + $0x144] sm:$0xf]
        %v5094 = vld [vmem:[%s11 + $0x148] sm:$0xf]
        %v5095 = vld [vmem:[%s11 + $0x14c] sm:$0xf]
        %v5096 = vld [vmem:[%s11 + $0x150] sm:$0xf]
        %v5097 = vld [vmem:[%s11 + $0x154] sm:$0xf]
        %v5098 = vld [vmem:[%s11 + $0x158] sm:$0xf]
        %v5099 = vld [vmem:[%s11 + $0x15c] sm:$0xf]
        %v5100 = vld [vmem:[%s11 + $0x160] sm:$0xf]
        %v5101 = vld [vmem:[%s11 + $0x164] sm:$0xf]
        %v5102 = vld [vmem:[%s11 + $0x168] sm:$0xf]
        %v5103 = vld [vmem:[%s11 + $0x16c] sm:$0xf]
        %v5104 = vld [vmem:[%s11 + $0x170] sm:$0xf]
        %v5105 = vld [vmem:[%s11 + $0x174] sm:$0xf]
        %v5106 = vld [vmem:[%s11 + $0x178] sm:$0xf]
        %v5107 = vld [vmem:[%s11 + $0x17c] sm:$0xf]
        %v5110 = vrot.slane %v4727, 1
        %v5111 = vrot.slane %v4728, 1
        %v5146 = vunpack.c.l.b16 %v5076
        %v5147 = vunpack.c.l.b16 %v5077
        %v5148 = vunpack.c.l.b16 %v5078
        %v5149 = vunpack.c.l.b16 %v5079
        %v5150 = vunpack.c.l.b16 %v5080
        %v5151 = vunpack.c.l.b16 %v5081
        %v5152 = vunpack.c.l.b16 %v5082
        %v5153 = vunpack.c.l.b16 %v5083
        %v5154 = vunpack.c.l.b16 %v5084
        %v5155 = vunpack.c.l.b16 %v5085
        %v5156 = vunpack.c.l.b16 %v5086
        %v5157 = vunpack.c.l.b16 %v5087
        %v5158 = vunpack.c.l.b16 %v5088
        %v5159 = vunpack.c.l.b16 %v5089
        %v5160 = vunpack.c.l.b16 %v5090
        %v5161 = vunpack.c.l.b16 %v5091
        %v5162 = vunpack.c.l.b16 %v5092
        %v5163 = vunpack.c.l.b16 %v5093
        %v5164 = vunpack.c.l.b16 %v5094
        %v5165 = vunpack.c.l.b16 %v5095
        %v5166 = vunpack.c.l.b16 %v5096
        %v5167 = vunpack.c.l.b16 %v5097
        %v5168 = vunpack.c.l.b16 %v5098
        %v5169 = vunpack.c.l.b16 %v5099
        %v5170 = vunpack.c.l.b16 %v5100
        %v5171 = vunpack.c.l.b16 %v5101
        %v5172 = vunpack.c.l.b16 %v5102
        %v5173 = vunpack.c.l.b16 %v5103
        %v5174 = vunpack.c.l.b16 %v5104
        %v5175 = vunpack.c.l.b16 %v5105
        %v5176 = vunpack.c.l.b16 %v5106
        %v5177 = vunpack.c.l.b16 %v5107
        %v5178 = vpack.c.b16 %v5147, %v5146
        %v5179 = vpack.c.b16 %v5149, %v5148
        %v5180 = vpack.c.b16 %v5151, %v5150
        %v5181 = vpack.c.b16 %v5153, %v5152
        %v5182 = vpack.c.b16 %v5155, %v5154
        %v5183 = vpack.c.b16 %v5157, %v5156
        %v5184 = vpack.c.b16 %v5159, %v5158
        %v5185 = vpack.c.b16 %v5161, %v5160
        %v5186 = vpack.c.b16 %v5163, %v5162
        %v5187 = vpack.c.b16 %v5165, %v5164
        %v5188 = vpack.c.b16 %v5167, %v5166
        %v5189 = vpack.c.b16 %v5169, %v5168
        %v5190 = vpack.c.b16 %v5171, %v5170
        %v5191 = vpack.c.b16 %v5173, %v5172
        %v5192 = vpack.c.b16 %v5175, %v5174
        %v5193 = vpack.c.b16 %v5177, %v5176
        %5210 = vmatprep.subr.bf16.mxu0 0
        %5211 = vmatpush1.bf16.msra.mxu0 %v5178
        %5212 = vmatprep.subr.bf16.mxu0 0
        %5213 = vmatpush1.bf16.msra.mxu0 %v5179
        %5214 = vmatprep.subr.bf16.mxu0 0
        %5215 = vmatpush1.bf16.msra.mxu0 %v5180
        %5216 = vmatprep.subr.bf16.mxu0 0
        %5217 = vmatpush1.bf16.msra.mxu0 %v5181
        %5218 = vmatprep.subr.bf16.mxu0 0
        %5219 = vmatpush1.bf16.msra.mxu0 %v5182
        %5220 = vmatprep.subr.bf16.mxu0 0
        %5221 = vmatpush1.bf16.msra.mxu0 %v5183
        %5222 = vmatprep.subr.bf16.mxu0 0
        %5223 = vmatpush1.bf16.msra.mxu0 %v5184
        %5224 = vmatprep.subr.bf16.mxu0 0
        %5225 = vmatpush1.bf16.msra.mxu0 %v5185
        %5226 = vmatprep.subr.bf16.mxu0 0
        %5227 = vmatpush1.bf16.msra.mxu0 %v5186
        %5228 = vmatprep.subr.bf16.mxu0 0
        %5229 = vmatpush1.bf16.msra.mxu0 %v5187
        %5230 = vmatprep.subr.bf16.mxu0 0
        %5231 = vmatpush1.bf16.msra.mxu0 %v5188
        %5232 = vmatprep.subr.bf16.mxu0 0
        %5233 = vmatpush1.bf16.msra.mxu0 %v5189
        %5234 = vmatprep.subr.bf16.mxu0 0
        %5235 = vmatpush1.bf16.msra.mxu0 %v5190
        %5236 = vmatprep.subr.bf16.mxu0 0
        %5237 = vmatpush1.bf16.msra.mxu0 %v5191
        %5238 = vmatprep.subr.bf16.mxu0 0
        %5239 = vmatpush1.bf16.msra.mxu0 %v5192
        %5240 = vmatprep.subr.bf16.mxu0 0
        %5241 = vmatpush1.bf16.msra.mxu0 %v5193
        %5242 = vmatprep.mubr.bf16.mxu0 %v5111
        %5243 = vmatmul.mubr.bf16.gmra.mrb[0].mxu0 %v5110
        %v5244 = vpop.f32.mrb[0].mxu0
        %v5245 = vadd.f32 0.0, %v5244
        %v5246 = vpop.f32.mrb[0].mxu0
        %v5247 = vpop.f32.mrb[0].mxu0
        %v5248 = vpop.f32.mrb[0].mxu0
        %5249 = vdwg.mxu0
        %v5250 = vadd.f32 %v5075, %v5245
        %v5251 = vld [vmem:[%s11 + $0x180] sm:$0xf]
        %v5252 = vld [vmem:[%s11 + $0x184] sm:$0xf]
        %v5253 = vld [vmem:[%s11 + $0x188] sm:$0xf]
        %v5254 = vld [vmem:[%s11 + $0x18c] sm:$0xf]
        %v5255 = vld [vmem:[%s11 + $0x190] sm:$0xf]
        %v5256 = vld [vmem:[%s11 + $0x194] sm:$0xf]
        %v5257 = vld [vmem:[%s11 + $0x198] sm:$0xf]
        %v5258 = vld [vmem:[%s11 + $0x19c] sm:$0xf]
        %v5259 = vld [vmem:[%s11 + $0x1a0] sm:$0xf]
        %v5260 = vld [vmem:[%s11 + $0x1a4] sm:$0xf]
        %v5261 = vld [vmem:[%s11 + $0x1a8] sm:$0xf]
        %v5262 = vld [vmem:[%s11 + $0x1ac] sm:$0xf]
        %v5263 = vld [vmem:[%s11 + $0x1b0] sm:$0xf]
        %v5264 = vld [vmem:[%s11 + $0x1b4] sm:$0xf]
        %v5265 = vld [vmem:[%s11 + $0x1b8] sm:$0xf]
        %v5266 = vld [vmem:[%s11 + $0x1bc] sm:$0xf]
        %v5267 = vld [vmem:[%s11 + $0x1c0] sm:$0xf]
        %v5268 = vld [vmem:[%s11 + $0x1c4] sm:$0xf]
        %v5269 = vld [vmem:[%s11 + $0x1c8] sm:$0xf]
        %v5270 = vld [vmem:[%s11 + $0x1cc] sm:$0xf]
        %v5271 = vld [vmem:[%s11 + $0x1d0] sm:$0xf]
        %v5272 = vld [vmem:[%s11 + $0x1d4] sm:$0xf]
        %v5273 = vld [vmem:[%s11 + $0x1d8] sm:$0xf]
        %v5274 = vld [vmem:[%s11 + $0x1dc] sm:$0xf]
        %v5275 = vld [vmem:[%s11 + $0x1e0] sm:$0xf]
        %v5276 = vld [vmem:[%s11 + $0x1e4] sm:$0xf]
        %v5277 = vld [vmem:[%s11 + $0x1e8] sm:$0xf]
        %v5278 = vld [vmem:[%s11 + $0x1ec] sm:$0xf]
        %v5279 = vld [vmem:[%s11 + $0x1f0] sm:$0xf]
        %v5280 = vld [vmem:[%s11 + $0x1f4] sm:$0xf]
        %v5281 = vld [vmem:[%s11 + $0x1f8] sm:$0xf]
        %v5282 = vld [vmem:[%s11 + $0x1fc] sm:$0xf]
        %v5283 = vrot.slane %v4932, 1
        %v5284 = vrot.slane %v4935, 1
        %v5319 = vunpack.c.l.b16 %v5251
        %v5320 = vunpack.c.l.b16 %v5252
        %v5321 = vunpack.c.l.b16 %v5253
        %v5322 = vunpack.c.l.b16 %v5254
        %v5323 = vunpack.c.l.b16 %v5255
        %v5324 = vunpack.c.l.b16 %v5256
        %v5325 = vunpack.c.l.b16 %v5257
        %v5326 = vunpack.c.l.b16 %v5258
        %v5327 = vunpack.c.l.b16 %v5259
        %v5328 = vunpack.c.l.b16 %v5260
        %v5329 = vunpack.c.l.b16 %v5261
        %v5330 = vunpack.c.l.b16 %v5262
        %v5331 = vunpack.c.l.b16 %v5263
        %v5332 = vunpack.c.l.b16 %v5264
        %v5333 = vunpack.c.l.b16 %v5265
        %v5334 = vunpack.c.l.b16 %v5266
        %v5335 = vunpack.c.l.b16 %v5267
        %v5336 = vunpack.c.l.b16 %v5268
        %v5337 = vunpack.c.l.b16 %v5269
        %v5338 = vunpack.c.l.b16 %v5270
        %v5339 = vunpack.c.l.b16 %v5271
        %v5340 = vunpack.c.l.b16 %v5272
        %v5341 = vunpack.c.l.b16 %v5273
        %v5342 = vunpack.c.l.b16 %v5274
        %v5343 = vunpack.c.l.b16 %v5275
        %v5344 = vunpack.c.l.b16 %v5276
        %v5345 = vunpack.c.l.b16 %v5277
        %v5346 = vunpack.c.l.b16 %v5278
        %v5347 = vunpack.c.l.b16 %v5279
        %v5348 = vunpack.c.l.b16 %v5280
        %v5349 = vunpack.c.l.b16 %v5281
        %v5350 = vunpack.c.l.b16 %v5282
        %v5351 = vpack.c.b16 %v5320, %v5319
        %v5352 = vpack.c.b16 %v5322, %v5321
        %v5353 = vpack.c.b16 %v5324, %v5323
        %v5354 = vpack.c.b16 %v5326, %v5325
        %v5355 = vpack.c.b16 %v5328, %v5327
        %v5356 = vpack.c.b16 %v5330, %v5329
        %v5357 = vpack.c.b16 %v5332, %v5331
        %v5358 = vpack.c.b16 %v5334, %v5333
        %v5359 = vpack.c.b16 %v5336, %v5335
        %v5360 = vpack.c.b16 %v5338, %v5337
        %v5361 = vpack.c.b16 %v5340, %v5339
        %v5362 = vpack.c.b16 %v5342, %v5341
        %v5363 = vpack.c.b16 %v5344, %v5343
        %v5364 = vpack.c.b16 %v5346, %v5345
        %v5365 = vpack.c.b16 %v5348, %v5347
        %v5366 = vpack.c.b16 %v5350, %v5349
        %5383 = vmatprep.subr.bf16.mxu0 0
        %5384 = vmatpush1.bf16.msra.mxu0 %v5351
        %5385 = vmatprep.subr.bf16.mxu0 0
        %5386 = vmatpush1.bf16.msra.mxu0 %v5352
        %5387 = vmatprep.subr.bf16.mxu0 0
        %5388 = vmatpush1.bf16.msra.mxu0 %v5353
        %5389 = vmatprep.subr.bf16.mxu0 0
        %5390 = vmatpush1.bf16.msra.mxu0 %v5354
        %5391 = vmatprep.subr.bf16.mxu0 0
        %5392 = vmatpush1.bf16.msra.mxu0 %v5355
        %5393 = vmatprep.subr.bf16.mxu0 0
        %5394 = vmatpush1.bf16.msra.mxu0 %v5356
        %5395 = vmatprep.subr.bf16.mxu0 0
        %5396 = vmatpush1.bf16.msra.mxu0 %v5357
        %5397 = vmatprep.subr.bf16.mxu0 0
        %5398 = vmatpush1.bf16.msra.mxu0 %v5358
        %5399 = vmatprep.subr.bf16.mxu0 0
        %5400 = vmatpush1.bf16.msra.mxu0 %v5359
        %5401 = vmatprep.subr.bf16.mxu0 0
        %5402 = vmatpush1.bf16.msra.mxu0 %v5360
        %5403 = vmatprep.subr.bf16.mxu0 0
        %5404 = vmatpush1.bf16.msra.mxu0 %v5361
        %5405 = vmatprep.subr.bf16.mxu0 0
        %5406 = vmatpush1.bf16.msra.mxu0 %v5362
        %5407 = vmatprep.subr.bf16.mxu0 0
        %5408 = vmatpush1.bf16.msra.mxu0 %v5363
        %5409 = vmatprep.subr.bf16.mxu0 0
        %5410 = vmatpush1.bf16.msra.mxu0 %v5364
        %5411 = vmatprep.subr.bf16.mxu0 0
        %5412 = vmatpush1.bf16.msra.mxu0 %v5365
        %5413 = vmatprep.subr.bf16.mxu0 0
        %5414 = vmatpush1.bf16.msra.mxu0 %v5366
        %5415 = vmatprep.mubr.bf16.mxu0 %v5284
        %5416 = vmatmul.mubr.bf16.gmra.mrb[0].mxu0 %v5283
        %v5417 = vpop.f32.mrb[0].mxu0
        %v5418 = vadd.f32 0.0, %v5417
        %v5419 = vpop.f32.mrb[0].mxu0
        %v5420 = vpop.f32.mrb[0].mxu0
        %v5421 = vpop.f32.mrb[0].mxu0
        %5422 = vdwg.mxu0
        %v5423 = vadd.f32 %v5250, %v5418
        %v5424 = vmul.f32 %v5423, 0.5
        %v5425 = vmul.f32 %v5424, 1.442695
        %v5426 = vpow.pop %v5425
        %v5427 = vld [vmem:[%s481] sm:$0x1]
        %5429 = vrot.lane.b32.xlu0 %v5427, 10
        %v5430 = vpop.permute.xlu0 %5429
        %v5432 = vmul.f32 %v5426, %v5430
        %5434 = vrot.lane.b32.xlu0 %v5432, 118
        %v5435 = vpop.permute.xlu0 %5434
        %v5437 = vadd.f32 %v5423, %v5435
        %vm5438 = vcmask 73728
        %5439 = vst.msk [vmem:[%s473] sm:$0x1] %vm5438, %v5437
        %s5440 = sand.u32 %s320, 1
        %s5441 = scalar_lea.sflag [#allocation4], %s5440
        %s5442 = sand.u32 %s320, 1
        %s5443 = scalar_lea.vmem [#allocation7], %s5442
        // Predicated region
        $region81: #{encode_sample.1} parent=71 // pred_check
          %p5444 = pneg %p330
        $region82: #{encode_sample.1} parent=71 // pred_check_branch
          %5446 = sbr.rel (%p5444) target = $region84
        $region83: #{encode_sample.1} parent=71 // pred_region
          %s5448 = ssub.s32 16, 16
          %5449 = vsyncadd %s5441, %s5448
          %s5450 = smul.addr %s29, 16
          %s5451 = scalar_lea.hbm %s13, %s5450
          %s5453 = sshll.u32 %s5443, 4
          %s5454 = int_to_ptr.vmem [resolvable:$true] %s5453
          %5456 = dma.vmem_to_hbm [thread:$0]  %s5454, 16, %s5451, %s5441
        $region84: #{encode_sample.1} parent=71 // pred_fallthru
          _
      $region72: #{encode_sample.1} parent=5 // pred_fallthru
        _
      %p5457 = scmp.le.s32.totalorder 2, %s24
      // Predicated region
      $region85: #{encode_sample.1} parent=5 // pred_check
        %p5458 = pneg %p5457
      $region86: #{encode_sample.1} parent=5 // pred_check_branch
        %5460 = sbr.rel (%p5458) target = $region88
      $region87: #{encode_sample.1} parent=5 // pred_region
        %s5461 = ssub.s32 %s24, 2
        // Predicated region
        $region89: #{encode_sample.1} parent=87 // pred_check
          %p5462 = pneg %p336
        $region90: #{encode_sample.1} parent=87 // pred_check_branch
          %5464 = sbr.rel (%p5462) target = $region92
        $region91: #{encode_sample.1} parent=87 // pred_region
          %s5465 = sand.u32 %s321, 1
          %s5466 = scalar_lea.sflag [#allocation4], %s5465
          %s5467 = sand.u32 %s321, 1
          %s5468 = scalar_lea.vmem [#allocation7], %s5467
          %5469 = dma.done %s5466, 16
        $region92: #{encode_sample.1} parent=87 // pred_fallthru
          _
      $region88: #{encode_sample.1} parent=5 // pred_fallthru
        _
    $region6: #{encode_sample.1} parent=1 // loop_footer
      %s28 = sadd.s32 1, %s24
    $region7: #{encode_sample.1} parent=1 // loop_footer_branch
      %23 = sbr.rel target = $region3
    $region8: #{encode_sample.1} parent=1 // loop_exit
      _
    %5470 = vsyncpa [#allocation3], 1
    %s5471 = scalar_lea.sflag [#allocation3], 1
    %5472 = vsyncpa %s5471, 1
    %5473 = vsyncpa [#allocation6], 1
    %5474 = vsyncpa [#allocation4], 1
    %s5475 = scalar_lea.sflag [#allocation4], 1
    %5476 = vsyncpa %s5475, 1

</llo_original>
